<compile_context>
chip_gen: v5e
topology: v5e:2x2
jax: 0.10.0
libtpu: 0.0.40
codegen_flags: <defaults>
</compile_context>

<pallas_src>
import functools

import jax
import jax.numpy as jnp
from jax.experimental import pallas as pl
from jax.experimental.pallas import tpu as pltpu


# ------------------------------ Fused kernel ------------------------------- #

def _inputproj_kernel(x_ref, w_ref, b_ref, o_ref, *, H, W, C_in, C_out,
                      neg_slope):
    # x_ref: (1, (H+3)*(W+2), C_in)  zero-padded NHWC image, flattened over (y, x)
    # w_ref: (9, C_in, C_out)        tap t = dy*3 + dx
    # b_ref: (1, C_out)
    # o_ref: (1, H, W, C_out)
    Wp = W + 2                       # padded row stride
    rows = H * Wp                    # accumulator rows (2 wrap columns per row
                                     # are junk and dropped at store time)

    acc = jnp.zeros((rows, C_out), jnp.float32)

    # 3x3 conv as 9 shifted contiguous row-slices; per-input-channel VPU FMAs.
    for t in range(9):
        dy, dx = divmod(t, 3)
        off = dy * Wp + dx
        patch = x_ref[0, off:off + rows, :].astype(jnp.float32)   # (rows, C_in)
        w_t = w_ref[t].astype(jnp.float32)                        # (C_in, C_out)
        for c in range(C_in):
            acc = acc + patch[:, c:c + 1] * w_t[c:c + 1, :]

    # Bias + LeakyReLU fused.
    acc = acc + b_ref[...].astype(jnp.float32)
    acc = jnp.where(acc >= 0.0, acc, neg_slope * acc)
    acc = acc.astype(o_ref.dtype)

    # Store lane-dense (last dim C_out), dropping the 2 wrap columns per row.
    for i in range(H):
        o_ref[0, i, :, :] = jax.lax.slice(acc, (i * Wp, 0), (i * Wp + W, C_out))


@jax.jit
def inputproj_forward(x, w, b):
    """InputProj forward.

    x: (B, C_in, H, W)  NCHW (PyTorch layout)
    w: (C_out, C_in, 3, 3)  Conv2d weight, OIHW (PyTorch layout)
    b: (C_out,)
    returns: (B, H*W, C_out)
    """
    neg_slope = 0.01                               # nn.LeakyReLU default
    B, C_in, H, W = x.shape
    C_out = w.shape[0]
    Wp = W + 2

    # NCHW -> NHWC, zero-pad: 1 top / 1 left / 1 right / 2 bottom (the extra
    # bottom row gives slack so the shifted slices never go OOB), then flatten
    # (y, x) so each conv tap is one contiguous row slice inside the kernel.
    x_nhwc = jnp.transpose(x, (0, 2, 3, 1))
    x_pad = jnp.pad(x_nhwc, ((0, 0), (1, 2), (1, 1), (0, 0)))
    x_flat = x_pad.reshape(B, (H + 3) * Wp, C_in)

    # (C_out, C_in, 3, 3) -> (9, C_in, C_out), tap index t = dy*3 + dx.
    w_taps = jnp.transpose(w, (2, 3, 1, 0)).reshape(9, C_in, C_out)
    b2 = b.reshape(1, C_out)

    kernel = functools.partial(_inputproj_kernel, H=H, W=W, C_in=C_in,
                               C_out=C_out, neg_slope=neg_slope)

    out = pl.pallas_call(
        kernel,
        out_shape=jax.ShapeDtypeStruct((B, H, W, C_out), x.dtype),
        grid=(B,),
        in_specs=[
            pl.BlockSpec((1, (H + 3) * Wp, C_in), lambda i: (i, 0, 0)),
            pl.BlockSpec((9, C_in, C_out), lambda i: (0, 0, 0)),
            pl.BlockSpec((1, C_out), lambda i: (0, 0)),
        ],
        out_specs=pl.BlockSpec((1, H, W, C_out), lambda i: (i, 0, 0, 0)),
        compiler_params=pltpu.CompilerParams(
            dimension_semantics=("parallel",)),
    )(x_flat, w_taps, b2)

    # (B, H, W, C_out) -> (B, H*W, C_out): contiguous, free metadata reshape.
    return out.reshape(B, H * W, C_out)


# --------------------------- Pure-JAX reference ---------------------------- #

def inputproj_reference(x, w, b, neg_slope=0.01):
    y = jax.lax.conv_general_dilated(
        x, w, window_strides=(1, 1), padding=((1, 1), (1, 1)),
        dimension_numbers=("NCHW", "OIHW", "NCHW"),
        precision=jax.lax.Precision.HIGHEST)
    y = y + b[None, :, None, None]
    y = jnp.where(y >= 0.0, y, neg_slope * y)
    B, C_out, H, W = y.shape
    return y.reshape(B, C_out, H * W).transpose(0, 2, 1)   # (B, H*W, C_out)


# ---------------------------------- Main ----------------------------------- #

if __name__ == "__main__":
    # Small shapes consistent with the module defaults: in_channel=3 (RGB),
    # out_channel=64, spatial 16x16, batch 2.
    B, C_in, H, W = 2, 3, 16, 16
    C_out = 64

    key = jax.random.PRNGKey(0)
    kx, kw, kb = jax.random.split(key, 3)

    x = jax.random.normal(kx, (B, C_in, H, W), jnp.float32)
    w = 0.1 * jax.random.normal(kw, (C_out, C_in, 3, 3), jnp.float32)  # OIHW
    b = 0.1 * jax.random.normal(kb, (C_out,), jnp.float32)

    out = inputproj_forward(x, w, b)
    out = jax.block_until_ready(out)

    ref = inputproj_reference(x, w, b)
    assert out.shape == (B, H * W, C_out)
    assert jnp.allclose(out, ref, atol=1e-4, rtol=1e-4), "mismatch vs reference"

    print("KERNEL_OK")
</pallas_src>

<mosaic_0001>
module attributes {stable_mosaic.version = 11 : i64} {
  func.func @_inputproj_kernel(%arg0: i32, %arg1: memref<1x342x3xf32, #tpu.memory_space<vmem>>, %arg2: memref<9x3x64xf32, #tpu.memory_space<vmem>>, %arg3: memref<1x64xf32, #tpu.memory_space<vmem>>, %arg4: memref<1x16x16x64xf32, #tpu.memory_space<vmem>>) attributes {dimension_semantics = [#tpu.dimension_semantics<parallel>], iteration_bounds = array<i64: 2>, scalar_prefetch = 0 : i64, scratch_operands = 0 : i64, tpu.core_type = #tpu.core_type<tc>, window_params = [{transform_indices = @transform_0, window_bounds = array<i64: 1, 342, 3>}, {pipeline_mode = #tpu.pipeline_mode<synchronous>, transform_indices = @transform_1, window_bounds = array<i64: 9, 3, 64>}, {pipeline_mode = #tpu.pipeline_mode<synchronous>, transform_indices = @transform_2, window_bounds = array<i64: 1, 64>}, {transform_indices = @transform_3, window_bounds = array<i64: 1, 16, 16, 64>}]} {
    %cst = arith.constant 0.000000e+00 : f32
    %0 = vector.broadcast %cst : f32 to vector<288x64xf32>
    %c0 = arith.constant 0 : index
    %c0_0 = arith.constant 0 : index
    %c0_1 = arith.constant 0 : index
    %1 = vector.load %arg1[%c0, %c0_0, %c0_1] : memref<1x342x3xf32, #tpu.memory_space<vmem>>, vector<1x288x3xf32>
    %2 = vector.shape_cast %1 : vector<1x288x3xf32> to vector<288x3xf32>
    %c0_2 = arith.constant 0 : index
    %c0_3 = arith.constant 0 : index
    %c0_4 = arith.constant 0 : index
    %3 = vector.load %arg2[%c0_2, %c0_3, %c0_4] : memref<9x3x64xf32, #tpu.memory_space<vmem>>, vector<1x3x64xf32>
    %4 = vector.shape_cast %3 : vector<1x3x64xf32> to vector<3x64xf32>
    %5 = vector.extract_strided_slice %2 {offsets = [0, 0], sizes = [288, 1], strides = [1, 1]} : vector<288x3xf32> to vector<288x1xf32>
    %6 = vector.extract_strided_slice %4 {offsets = [0, 0], sizes = [1, 64], strides = [1, 1]} : vector<3x64xf32> to vector<1x64xf32>
    %7 = vector.broadcast %5 : vector<288x1xf32> to vector<288x64xf32>
    %8 = vector.broadcast %6 : vector<1x64xf32> to vector<288x64xf32>
    %9 = arith.mulf %7, %8 : vector<288x64xf32>
    %10 = arith.addf %0, %9 : vector<288x64xf32>
    %11 = vector.extract_strided_slice %2 {offsets = [0, 1], sizes = [288, 1], strides = [1, 1]} : vector<288x3xf32> to vector<288x1xf32>
    %12 = vector.extract_strided_slice %4 {offsets = [1, 0], sizes = [1, 64], strides = [1, 1]} : vector<3x64xf32> to vector<1x64xf32>
    %13 = vector.broadcast %11 : vector<288x1xf32> to vector<288x64xf32>
    %14 = vector.broadcast %12 : vector<1x64xf32> to vector<288x64xf32>
    %15 = arith.mulf %13, %14 : vector<288x64xf32>
    %16 = arith.addf %10, %15 : vector<288x64xf32>
    %17 = vector.extract_strided_slice %2 {offsets = [0, 2], sizes = [288, 1], strides = [1, 1]} : vector<288x3xf32> to vector<288x1xf32>
    %18 = vector.extract_strided_slice %4 {offsets = [2, 0], sizes = [1, 64], strides = [1, 1]} : vector<3x64xf32> to vector<1x64xf32>
    %19 = vector.broadcast %17 : vector<288x1xf32> to vector<288x64xf32>
    %20 = vector.broadcast %18 : vector<1x64xf32> to vector<288x64xf32>
    %21 = arith.mulf %19, %20 : vector<288x64xf32>
    %22 = arith.addf %16, %21 : vector<288x64xf32>
    %c0_5 = arith.constant 0 : index
    %c1 = arith.constant 1 : index
    %c0_6 = arith.constant 0 : index
    %23 = vector.load %arg1[%c0_5, %c1, %c0_6] : memref<1x342x3xf32, #tpu.memory_space<vmem>>, vector<1x288x3xf32>
    %24 = vector.shape_cast %23 : vector<1x288x3xf32> to vector<288x3xf32>
    %c1_7 = arith.constant 1 : index
    %c0_8 = arith.constant 0 : index
    %c0_9 = arith.constant 0 : index
    %25 = vector.load %arg2[%c1_7, %c0_8, %c0_9] : memref<9x3x64xf32, #tpu.memory_space<vmem>>, vector<1x3x64xf32>
    %26 = vector.shape_cast %25 : vector<1x3x64xf32> to vector<3x64xf32>
    %27 = vector.extract_strided_slice %24 {offsets = [0, 0], sizes = [288, 1], strides = [1, 1]} : vector<288x3xf32> to vector<288x1xf32>
    %28 = vector.extract_strided_slice %26 {offsets = [0, 0], sizes = [1, 64], strides = [1, 1]} : vector<3x64xf32> to vector<1x64xf32>
    %29 = vector.broadcast %27 : vector<288x1xf32> to vector<288x64xf32>
    %30 = vector.broadcast %28 : vector<1x64xf32> to vector<288x64xf32>
    %31 = arith.mulf %29, %30 : vector<288x64xf32>
    %32 = arith.addf %22, %31 : vector<288x64xf32>
    %33 = vector.extract_strided_slice %24 {offsets = [0, 1], sizes = [288, 1], strides = [1, 1]} : vector<288x3xf32> to vector<288x1xf32>
    %34 = vector.extract_strided_slice %26 {offsets = [1, 0], sizes = [1, 64], strides = [1, 1]} : vector<3x64xf32> to vector<1x64xf32>
    %35 = vector.broadcast %33 : vector<288x1xf32> to vector<288x64xf32>
    %36 = vector.broadcast %34 : vector<1x64xf32> to vector<288x64xf32>
    %37 = arith.mulf %35, %36 : vector<288x64xf32>
    %38 = arith.addf %32, %37 : vector<288x64xf32>
    %39 = vector.extract_strided_slice %24 {offsets = [0, 2], sizes = [288, 1], strides = [1, 1]} : vector<288x3xf32> to vector<288x1xf32>
    %40 = vector.extract_strided_slice %26 {offsets = [2, 0], sizes = [1, 64], strides = [1, 1]} : vector<3x64xf32> to vector<1x64xf32>
    %41 = vector.broadcast %39 : vector<288x1xf32> to vector<288x64xf32>
    %42 = vector.broadcast %40 : vector<1x64xf32> to vector<288x64xf32>
    %43 = arith.mulf %41, %42 : vector<288x64xf32>
    %44 = arith.addf %38, %43 : vector<288x64xf32>
    %c0_10 = arith.constant 0 : index
    %c2 = arith.constant 2 : index
    %c0_11 = arith.constant 0 : index
    %45 = vector.load %arg1[%c0_10, %c2, %c0_11] : memref<1x342x3xf32, #tpu.memory_space<vmem>>, vector<1x288x3xf32>
    %46 = vector.shape_cast %45 : vector<1x288x3xf32> to vector<288x3xf32>
    %c2_12 = arith.constant 2 : index
    %c0_13 = arith.constant 0 : index
    %c0_14 = arith.constant 0 : index
    %47 = vector.load %arg2[%c2_12, %c0_13, %c0_14] : memref<9x3x64xf32, #tpu.memory_space<vmem>>, vector<1x3x64xf32>
    %48 = vector.shape_cast %47 : vector<1x3x64xf32> to vector<3x64xf32>
    %49 = vector.extract_strided_slice %46 {offsets = [0, 0], sizes = [288, 1], strides = [1, 1]} : vector<288x3xf32> to vector<288x1xf32>
    %50 = vector.extract_strided_slice %48 {offsets = [0, 0], sizes = [1, 64], strides = [1, 1]} : vector<3x64xf32> to vector<1x64xf32>
    %51 = vector.broadcast %49 : vector<288x1xf32> to vector<288x64xf32>
    %52 = vector.broadcast %50 : vector<1x64xf32> to vector<288x64xf32>
    %53 = arith.mulf %51, %52 : vector<288x64xf32>
    %54 = arith.addf %44, %53 : vector<288x64xf32>
    %55 = vector.extract_strided_slice %46 {offsets = [0, 1], sizes = [288, 1], strides = [1, 1]} : vector<288x3xf32> to vector<288x1xf32>
    %56 = vector.extract_strided_slice %48 {offsets = [1, 0], sizes = [1, 64], strides = [1, 1]} : vector<3x64xf32> to vector<1x64xf32>
    %57 = vector.broadcast %55 : vector<288x1xf32> to vector<288x64xf32>
    %58 = vector.broadcast %56 : vector<1x64xf32> to vector<288x64xf32>
    %59 = arith.mulf %57, %58 : vector<288x64xf32>
    %60 = arith.addf %54, %59 : vector<288x64xf32>
    %61 = vector.extract_strided_slice %46 {offsets = [0, 2], sizes = [288, 1], strides = [1, 1]} : vector<288x3xf32> to vector<288x1xf32>
    %62 = vector.extract_strided_slice %48 {offsets = [2, 0], sizes = [1, 64], strides = [1, 1]} : vector<3x64xf32> to vector<1x64xf32>
    %63 = vector.broadcast %61 : vector<288x1xf32> to vector<288x64xf32>
    %64 = vector.broadcast %62 : vector<1x64xf32> to vector<288x64xf32>
    %65 = arith.mulf %63, %64 : vector<288x64xf32>
    %66 = arith.addf %60, %65 : vector<288x64xf32>
    %c0_15 = arith.constant 0 : index
    %c18 = arith.constant 18 : index
    %c0_16 = arith.constant 0 : index
    %67 = vector.load %arg1[%c0_15, %c18, %c0_16] : memref<1x342x3xf32, #tpu.memory_space<vmem>>, vector<1x288x3xf32>
    %68 = vector.shape_cast %67 : vector<1x288x3xf32> to vector<288x3xf32>
    %c3 = arith.constant 3 : index
    %c0_17 = arith.constant 0 : index
    %c0_18 = arith.constant 0 : index
    %69 = vector.load %arg2[%c3, %c0_17, %c0_18] : memref<9x3x64xf32, #tpu.memory_space<vmem>>, vector<1x3x64xf32>
    %70 = vector.shape_cast %69 : vector<1x3x64xf32> to vector<3x64xf32>
    %71 = vector.extract_strided_slice %68 {offsets = [0, 0], sizes = [288, 1], strides = [1, 1]} : vector<288x3xf32> to vector<288x1xf32>
    %72 = vector.extract_strided_slice %70 {offsets = [0, 0], sizes = [1, 64], strides = [1, 1]} : vector<3x64xf32> to vector<1x64xf32>
    %73 = vector.broadcast %71 : vector<288x1xf32> to vector<288x64xf32>
    %74 = vector.broadcast %72 : vector<1x64xf32> to vector<288x64xf32>
    %75 = arith.mulf %73, %74 : vector<288x64xf32>
    %76 = arith.addf %66, %75 : vector<288x64xf32>
    %77 = vector.extract_strided_slice %68 {offsets = [0, 1], sizes = [288, 1], strides = [1, 1]} : vector<288x3xf32> to vector<288x1xf32>
    %78 = vector.extract_strided_slice %70 {offsets = [1, 0], sizes = [1, 64], strides = [1, 1]} : vector<3x64xf32> to vector<1x64xf32>
    %79 = vector.broadcast %77 : vector<288x1xf32> to vector<288x64xf32>
    %80 = vector.broadcast %78 : vector<1x64xf32> to vector<288x64xf32>
    %81 = arith.mulf %79, %80 : vector<288x64xf32>
    %82 = arith.addf %76, %81 : vector<288x64xf32>
    %83 = vector.extract_strided_slice %68 {offsets = [0, 2], sizes = [288, 1], strides = [1, 1]} : vector<288x3xf32> to vector<288x1xf32>
    %84 = vector.extract_strided_slice %70 {offsets = [2, 0], sizes = [1, 64], strides = [1, 1]} : vector<3x64xf32> to vector<1x64xf32>
    %85 = vector.broadcast %83 : vector<288x1xf32> to vector<288x64xf32>
    %86 = vector.broadcast %84 : vector<1x64xf32> to vector<288x64xf32>
    %87 = arith.mulf %85, %86 : vector<288x64xf32>
    %88 = arith.addf %82, %87 : vector<288x64xf32>
    %c0_19 = arith.constant 0 : index
    %c19 = arith.constant 19 : index
    %c0_20 = arith.constant 0 : index
    %89 = vector.load %arg1[%c0_19, %c19, %c0_20] : memref<1x342x3xf32, #tpu.memory_space<vmem>>, vector<1x288x3xf32>
    %90 = vector.shape_cast %89 : vector<1x288x3xf32> to vector<288x3xf32>
    %c4 = arith.constant 4 : index
    %c0_21 = arith.constant 0 : index
    %c0_22 = arith.constant 0 : index
    %91 = vector.load %arg2[%c4, %c0_21, %c0_22] : memref<9x3x64xf32, #tpu.memory_space<vmem>>, vector<1x3x64xf32>
    %92 = vector.shape_cast %91 : vector<1x3x64xf32> to vector<3x64xf32>
    %93 = vector.extract_strided_slice %90 {offsets = [0, 0], sizes = [288, 1], strides = [1, 1]} : vector<288x3xf32> to vector<288x1xf32>
    %94 = vector.extract_strided_slice %92 {offsets = [0, 0], sizes = [1, 64], strides = [1, 1]} : vector<3x64xf32> to vector<1x64xf32>
    %95 = vector.broadcast %93 : vector<288x1xf32> to vector<288x64xf32>
    %96 = vector.broadcast %94 : vector<1x64xf32> to vector<288x64xf32>
    %97 = arith.mulf %95, %96 : vector<288x64xf32>
    %98 = arith.addf %88, %97 : vector<288x64xf32>
    %99 = vector.extract_strided_slice %90 {offsets = [0, 1], sizes = [288, 1], strides = [1, 1]} : vector<288x3xf32> to vector<288x1xf32>
    %100 = vector.extract_strided_slice %92 {offsets = [1, 0], sizes = [1, 64], strides = [1, 1]} : vector<3x64xf32> to vector<1x64xf32>
    %101 = vector.broadcast %99 : vector<288x1xf32> to vector<288x64xf32>
    %102 = vector.broadcast %100 : vector<1x64xf32> to vector<288x64xf32>
    %103 = arith.mulf %101, %102 : vector<288x64xf32>
    %104 = arith.addf %98, %103 : vector<288x64xf32>
    %105 = vector.extract_strided_slice %90 {offsets = [0, 2], sizes = [288, 1], strides = [1, 1]} : vector<288x3xf32> to vector<288x1xf32>
    %106 = vector.extract_strided_slice %92 {offsets = [2, 0], sizes = [1, 64], strides = [1, 1]} : vector<3x64xf32> to vector<1x64xf32>
    %107 = vector.broadcast %105 : vector<288x1xf32> to vector<288x64xf32>
    %108 = vector.broadcast %106 : vector<1x64xf32> to vector<288x64xf32>
    %109 = arith.mulf %107, %108 : vector<288x64xf32>
    %110 = arith.addf %104, %109 : vector<288x64xf32>
    %c0_23 = arith.constant 0 : index
    %c20 = arith.constant 20 : index
    %c0_24 = arith.constant 0 : index
    %111 = vector.load %arg1[%c0_23, %c20, %c0_24] : memref<1x342x3xf32, #tpu.memory_space<vmem>>, vector<1x288x3xf32>
    %112 = vector.shape_cast %111 : vector<1x288x3xf32> to vector<288x3xf32>
    %c5 = arith.constant 5 : index
    %c0_25 = arith.constant 0 : index
    %c0_26 = arith.constant 0 : index
    %113 = vector.load %arg2[%c5, %c0_25, %c0_26] : memref<9x3x64xf32, #tpu.memory_space<vmem>>, vector<1x3x64xf32>
    %114 = vector.shape_cast %113 : vector<1x3x64xf32> to vector<3x64xf32>
    %115 = vector.extract_strided_slice %112 {offsets = [0, 0], sizes = [288, 1], strides = [1, 1]} : vector<288x3xf32> to vector<288x1xf32>
    %116 = vector.extract_strided_slice %114 {offsets = [0, 0], sizes = [1, 64], strides = [1, 1]} : vector<3x64xf32> to vector<1x64xf32>
    %117 = vector.broadcast %115 : vector<288x1xf32> to vector<288x64xf32>
    %118 = vector.broadcast %116 : vector<1x64xf32> to vector<288x64xf32>
    %119 = arith.mulf %117, %118 : vector<288x64xf32>
    %120 = arith.addf %110, %119 : vector<288x64xf32>
    %121 = vector.extract_strided_slice %112 {offsets = [0, 1], sizes = [288, 1], strides = [1, 1]} : vector<288x3xf32> to vector<288x1xf32>
    %122 = vector.extract_strided_slice %114 {offsets = [1, 0], sizes = [1, 64], strides = [1, 1]} : vector<3x64xf32> to vector<1x64xf32>
    %123 = vector.broadcast %121 : vector<288x1xf32> to vector<288x64xf32>
    %124 = vector.broadcast %122 : vector<1x64xf32> to vector<288x64xf32>
    %125 = arith.mulf %123, %124 : vector<288x64xf32>
    %126 = arith.addf %120, %125 : vector<288x64xf32>
    %127 = vector.extract_strided_slice %112 {offsets = [0, 2], sizes = [288, 1], strides = [1, 1]} : vector<288x3xf32> to vector<288x1xf32>
    %128 = vector.extract_strided_slice %114 {offsets = [2, 0], sizes = [1, 64], strides = [1, 1]} : vector<3x64xf32> to vector<1x64xf32>
    %129 = vector.broadcast %127 : vector<288x1xf32> to vector<288x64xf32>
    %130 = vector.broadcast %128 : vector<1x64xf32> to vector<288x64xf32>
    %131 = arith.mulf %129, %130 : vector<288x64xf32>
    %132 = arith.addf %126, %131 : vector<288x64xf32>
    %c0_27 = arith.constant 0 : index
    %c36 = arith.constant 36 : index
    %c0_28 = arith.constant 0 : index
    %133 = vector.load %arg1[%c0_27, %c36, %c0_28] : memref<1x342x3xf32, #tpu.memory_space<vmem>>, vector<1x288x3xf32>
    %134 = vector.shape_cast %133 : vector<1x288x3xf32> to vector<288x3xf32>
    %c6 = arith.constant 6 : index
    %c0_29 = arith.constant 0 : index
    %c0_30 = arith.constant 0 : index
    %135 = vector.load %arg2[%c6, %c0_29, %c0_30] : memref<9x3x64xf32, #tpu.memory_space<vmem>>, vector<1x3x64xf32>
    %136 = vector.shape_cast %135 : vector<1x3x64xf32> to vector<3x64xf32>
    %137 = vector.extract_strided_slice %134 {offsets = [0, 0], sizes = [288, 1], strides = [1, 1]} : vector<288x3xf32> to vector<288x1xf32>
    %138 = vector.extract_strided_slice %136 {offsets = [0, 0], sizes = [1, 64], strides = [1, 1]} : vector<3x64xf32> to vector<1x64xf32>
    %139 = vector.broadcast %137 : vector<288x1xf32> to vector<288x64xf32>
    %140 = vector.broadcast %138 : vector<1x64xf32> to vector<288x64xf32>
    %141 = arith.mulf %139, %140 : vector<288x64xf32>
    %142 = arith.addf %132, %141 : vector<288x64xf32>
    %143 = vector.extract_strided_slice %134 {offsets = [0, 1], sizes = [288, 1], strides = [1, 1]} : vector<288x3xf32> to vector<288x1xf32>
    %144 = vector.extract_strided_slice %136 {offsets = [1, 0], sizes = [1, 64], strides = [1, 1]} : vector<3x64xf32> to vector<1x64xf32>
    %145 = vector.broadcast %143 : vector<288x1xf32> to vector<288x64xf32>
    %146 = vector.broadcast %144 : vector<1x64xf32> to vector<288x64xf32>
    %147 = arith.mulf %145, %146 : vector<288x64xf32>
    %148 = arith.addf %142, %147 : vector<288x64xf32>
    %149 = vector.extract_strided_slice %134 {offsets = [0, 2], sizes = [288, 1], strides = [1, 1]} : vector<288x3xf32> to vector<288x1xf32>
    %150 = vector.extract_strided_slice %136 {offsets = [2, 0], sizes = [1, 64], strides = [1, 1]} : vector<3x64xf32> to vector<1x64xf32>
    %151 = vector.broadcast %149 : vector<288x1xf32> to vector<288x64xf32>
    %152 = vector.broadcast %150 : vector<1x64xf32> to vector<288x64xf32>
    %153 = arith.mulf %151, %152 : vector<288x64xf32>
    %154 = arith.addf %148, %153 : vector<288x64xf32>
    %c0_31 = arith.constant 0 : index
    %c37 = arith.constant 37 : index
    %c0_32 = arith.constant 0 : index
    %155 = vector.load %arg1[%c0_31, %c37, %c0_32] : memref<1x342x3xf32, #tpu.memory_space<vmem>>, vector<1x288x3xf32>
    %156 = vector.shape_cast %155 : vector<1x288x3xf32> to vector<288x3xf32>
    %c7 = arith.constant 7 : index
    %c0_33 = arith.constant 0 : index
    %c0_34 = arith.constant 0 : index
    %157 = vector.load %arg2[%c7, %c0_33, %c0_34] : memref<9x3x64xf32, #tpu.memory_space<vmem>>, vector<1x3x64xf32>
    %158 = vector.shape_cast %157 : vector<1x3x64xf32> to vector<3x64xf32>
    %159 = vector.extract_strided_slice %156 {offsets = [0, 0], sizes = [288, 1], strides = [1, 1]} : vector<288x3xf32> to vector<288x1xf32>
    %160 = vector.extract_strided_slice %158 {offsets = [0, 0], sizes = [1, 64], strides = [1, 1]} : vector<3x64xf32> to vector<1x64xf32>
    %161 = vector.broadcast %159 : vector<288x1xf32> to vector<288x64xf32>
    %162 = vector.broadcast %160 : vector<1x64xf32> to vector<288x64xf32>
    %163 = arith.mulf %161, %162 : vector<288x64xf32>
    %164 = arith.addf %154, %163 : vector<288x64xf32>
    %165 = vector.extract_strided_slice %156 {offsets = [0, 1], sizes = [288, 1], strides = [1, 1]} : vector<288x3xf32> to vector<288x1xf32>
    %166 = vector.extract_strided_slice %158 {offsets = [1, 0], sizes = [1, 64], strides = [1, 1]} : vector<3x64xf32> to vector<1x64xf32>
    %167 = vector.broadcast %165 : vector<288x1xf32> to vector<288x64xf32>
    %168 = vector.broadcast %166 : vector<1x64xf32> to vector<288x64xf32>
    %169 = arith.mulf %167, %168 : vector<288x64xf32>
    %170 = arith.addf %164, %169 : vector<288x64xf32>
    %171 = vector.extract_strided_slice %156 {offsets = [0, 2], sizes = [288, 1], strides = [1, 1]} : vector<288x3xf32> to vector<288x1xf32>
    %172 = vector.extract_strided_slice %158 {offsets = [2, 0], sizes = [1, 64], strides = [1, 1]} : vector<3x64xf32> to vector<1x64xf32>
    %173 = vector.broadcast %171 : vector<288x1xf32> to vector<288x64xf32>
    %174 = vector.broadcast %172 : vector<1x64xf32> to vector<288x64xf32>
    %175 = arith.mulf %173, %174 : vector<288x64xf32>
    %176 = arith.addf %170, %175 : vector<288x64xf32>
    %c0_35 = arith.constant 0 : index
    %c38 = arith.constant 38 : index
    %c0_36 = arith.constant 0 : index
    %177 = vector.load %arg1[%c0_35, %c38, %c0_36] : memref<1x342x3xf32, #tpu.memory_space<vmem>>, vector<1x288x3xf32>
    %178 = vector.shape_cast %177 : vector<1x288x3xf32> to vector<288x3xf32>
    %c8 = arith.constant 8 : index
    %c0_37 = arith.constant 0 : index
    %c0_38 = arith.constant 0 : index
    %179 = vector.load %arg2[%c8, %c0_37, %c0_38] : memref<9x3x64xf32, #tpu.memory_space<vmem>>, vector<1x3x64xf32>
    %180 = vector.shape_cast %179 : vector<1x3x64xf32> to vector<3x64xf32>
    %181 = vector.extract_strided_slice %178 {offsets = [0, 0], sizes = [288, 1], strides = [1, 1]} : vector<288x3xf32> to vector<288x1xf32>
    %182 = vector.extract_strided_slice %180 {offsets = [0, 0], sizes = [1, 64], strides = [1, 1]} : vector<3x64xf32> to vector<1x64xf32>
    %183 = vector.broadcast %181 : vector<288x1xf32> to vector<288x64xf32>
    %184 = vector.broadcast %182 : vector<1x64xf32> to vector<288x64xf32>
    %185 = arith.mulf %183, %184 : vector<288x64xf32>
    %186 = arith.addf %176, %185 : vector<288x64xf32>
    %187 = vector.extract_strided_slice %178 {offsets = [0, 1], sizes = [288, 1], strides = [1, 1]} : vector<288x3xf32> to vector<288x1xf32>
    %188 = vector.extract_strided_slice %180 {offsets = [1, 0], sizes = [1, 64], strides = [1, 1]} : vector<3x64xf32> to vector<1x64xf32>
    %189 = vector.broadcast %187 : vector<288x1xf32> to vector<288x64xf32>
    %190 = vector.broadcast %188 : vector<1x64xf32> to vector<288x64xf32>
    %191 = arith.mulf %189, %190 : vector<288x64xf32>
    %192 = arith.addf %186, %191 : vector<288x64xf32>
    %193 = vector.extract_strided_slice %178 {offsets = [0, 2], sizes = [288, 1], strides = [1, 1]} : vector<288x3xf32> to vector<288x1xf32>
    %194 = vector.extract_strided_slice %180 {offsets = [2, 0], sizes = [1, 64], strides = [1, 1]} : vector<3x64xf32> to vector<1x64xf32>
    %195 = vector.broadcast %193 : vector<288x1xf32> to vector<288x64xf32>
    %196 = vector.broadcast %194 : vector<1x64xf32> to vector<288x64xf32>
    %197 = arith.mulf %195, %196 : vector<288x64xf32>
    %198 = arith.addf %192, %197 : vector<288x64xf32>
    %c0_39 = arith.constant 0 : index
    %c0_40 = arith.constant 0 : index
    %199 = vector.load %arg3[%c0_39, %c0_40] : memref<1x64xf32, #tpu.memory_space<vmem>>, vector<1x64xf32>
    %200 = vector.broadcast %199 : vector<1x64xf32> to vector<288x64xf32>
    %201 = arith.addf %198, %200 : vector<288x64xf32>
    %cst_41 = arith.constant 0.000000e+00 : f32
    %202 = vector.broadcast %cst_41 : f32 to vector<288x64xf32>
    %203 = arith.cmpf oge, %201, %202 : vector<288x64xf32>
    %cst_42 = arith.constant 0.00999999977 : f32
    %204 = vector.broadcast %cst_42 : f32 to vector<288x64xf32>
    %205 = arith.mulf %204, %201 : vector<288x64xf32>
    %206 = arith.select %203, %201, %205 : vector<288x64xi1>, vector<288x64xf32>
    %207 = vector.extract_strided_slice %206 {offsets = [0, 0], sizes = [16, 64], strides = [1, 1]} : vector<288x64xf32> to vector<16x64xf32>
    %c0_43 = arith.constant 0 : index
    %c0_44 = arith.constant 0 : index
    %c0_45 = arith.constant 0 : index
    %c0_46 = arith.constant 0 : index
    %208 = vector.load %arg4[%c0_43, %c0_44, %c0_45, %c0_46] : memref<1x16x16x64xf32, #tpu.memory_space<vmem>>, vector<1x1x16x64xf32>
    %209 = vector.shape_cast %208 : vector<1x1x16x64xf32> to vector<16x64xf32>
    %210 = vector.shape_cast %207 : vector<16x64xf32> to vector<1x1x16x64xf32>
    tpu.vector_store %arg4[%c0_43, %c0_44, %c0_45, %c0_46], %210 {strides = array<i32>} : memref<1x16x16x64xf32, #tpu.memory_space<vmem>>, vector<1x1x16x64xf32>,
    %211 = vector.extract_strided_slice %206 {offsets = [18, 0], sizes = [16, 64], strides = [1, 1]} : vector<288x64xf32> to vector<16x64xf32>
    %c0_47 = arith.constant 0 : index
    %c1_48 = arith.constant 1 : index
    %c0_49 = arith.constant 0 : index
    %c0_50 = arith.constant 0 : index
    %212 = vector.load %arg4[%c0_47, %c1_48, %c0_49, %c0_50] : memref<1x16x16x64xf32, #tpu.memory_space<vmem>>, vector<1x1x16x64xf32>
    %213 = vector.shape_cast %212 : vector<1x1x16x64xf32> to vector<16x64xf32>
    %214 = vector.shape_cast %211 : vector<16x64xf32> to vector<1x1x16x64xf32>
    tpu.vector_store %arg4[%c0_47, %c1_48, %c0_49, %c0_50], %214 {strides = array<i32>} : memref<1x16x16x64xf32, #tpu.memory_space<vmem>>, vector<1x1x16x64xf32>,
    %215 = vector.extract_strided_slice %206 {offsets = [36, 0], sizes = [16, 64], strides = [1, 1]} : vector<288x64xf32> to vector<16x64xf32>
    %c0_51 = arith.constant 0 : index
    %c2_52 = arith.constant 2 : index
    %c0_53 = arith.constant 0 : index
    %c0_54 = arith.constant 0 : index
    %216 = vector.load %arg4[%c0_51, %c2_52, %c0_53, %c0_54] : memref<1x16x16x64xf32, #tpu.memory_space<vmem>>, vector<1x1x16x64xf32>
    %217 = vector.shape_cast %216 : vector<1x1x16x64xf32> to vector<16x64xf32>
    %218 = vector.shape_cast %215 : vector<16x64xf32> to vector<1x1x16x64xf32>
    tpu.vector_store %arg4[%c0_51, %c2_52, %c0_53, %c0_54], %218 {strides = array<i32>} : memref<1x16x16x64xf32, #tpu.memory_space<vmem>>, vector<1x1x16x64xf32>,
    %219 = vector.extract_strided_slice %206 {offsets = [54, 0], sizes = [16, 64], strides = [1, 1]} : vector<288x64xf32> to vector<16x64xf32>
    %c0_55 = arith.constant 0 : index
    %c3_56 = arith.constant 3 : index
    %c0_57 = arith.constant 0 : index
    %c0_58 = arith.constant 0 : index
    %220 = vector.load %arg4[%c0_55, %c3_56, %c0_57, %c0_58] : memref<1x16x16x64xf32, #tpu.memory_space<vmem>>, vector<1x1x16x64xf32>
    %221 = vector.shape_cast %220 : vector<1x1x16x64xf32> to vector<16x64xf32>
    %222 = vector.shape_cast %219 : vector<16x64xf32> to vector<1x1x16x64xf32>
    tpu.vector_store %arg4[%c0_55, %c3_56, %c0_57, %c0_58], %222 {strides = array<i32>} : memref<1x16x16x64xf32, #tpu.memory_space<vmem>>, vector<1x1x16x64xf32>,
    %223 = vector.extract_strided_slice %206 {offsets = [72, 0], sizes = [16, 64], strides = [1, 1]} : vector<288x64xf32> to vector<16x64xf32>
    %c0_59 = arith.constant 0 : index
    %c4_60 = arith.constant 4 : index
    %c0_61 = arith.constant 0 : index
    %c0_62 = arith.constant 0 : index
    %224 = vector.load %arg4[%c0_59, %c4_60, %c0_61, %c0_62] : memref<1x16x16x64xf32, #tpu.memory_space<vmem>>, vector<1x1x16x64xf32>
    %225 = vector.shape_cast %224 : vector<1x1x16x64xf32> to vector<16x64xf32>
    %226 = vector.shape_cast %223 : vector<16x64xf32> to vector<1x1x16x64xf32>
    tpu.vector_store %arg4[%c0_59, %c4_60, %c0_61, %c0_62], %226 {strides = array<i32>} : memref<1x16x16x64xf32, #tpu.memory_space<vmem>>, vector<1x1x16x64xf32>,
    %227 = vector.extract_strided_slice %206 {offsets = [90, 0], sizes = [16, 64], strides = [1, 1]} : vector<288x64xf32> to vector<16x64xf32>
    %c0_63 = arith.constant 0 : index
    %c5_64 = arith.constant 5 : index
    %c0_65 = arith.constant 0 : index
    %c0_66 = arith.constant 0 : index
    %228 = vector.load %arg4[%c0_63, %c5_64, %c0_65, %c0_66] : memref<1x16x16x64xf32, #tpu.memory_space<vmem>>, vector<1x1x16x64xf32>
    %229 = vector.shape_cast %228 : vector<1x1x16x64xf32> to vector<16x64xf32>
    %230 = vector.shape_cast %227 : vector<16x64xf32> to vector<1x1x16x64xf32>
    tpu.vector_store %arg4[%c0_63, %c5_64, %c0_65, %c0_66], %230 {strides = array<i32>} : memref<1x16x16x64xf32, #tpu.memory_space<vmem>>, vector<1x1x16x64xf32>,
    %231 = vector.extract_strided_slice %206 {offsets = [108, 0], sizes = [16, 64], strides = [1, 1]} : vector<288x64xf32> to vector<16x64xf32>
    %c0_67 = arith.constant 0 : index
    %c6_68 = arith.constant 6 : index
    %c0_69 = arith.constant 0 : index
    %c0_70 = arith.constant 0 : index
    %232 = vector.load %arg4[%c0_67, %c6_68, %c0_69, %c0_70] : memref<1x16x16x64xf32, #tpu.memory_space<vmem>>, vector<1x1x16x64xf32>
    %233 = vector.shape_cast %232 : vector<1x1x16x64xf32> to vector<16x64xf32>
    %234 = vector.shape_cast %231 : vector<16x64xf32> to vector<1x1x16x64xf32>
    tpu.vector_store %arg4[%c0_67, %c6_68, %c0_69, %c0_70], %234 {strides = array<i32>} : memref<1x16x16x64xf32, #tpu.memory_space<vmem>>, vector<1x1x16x64xf32>,
    %235 = vector.extract_strided_slice %206 {offsets = [126, 0], sizes = [16, 64], strides = [1, 1]} : vector<288x64xf32> to vector<16x64xf32>
    %c0_71 = arith.constant 0 : index
    %c7_72 = arith.constant 7 : index
    %c0_73 = arith.constant 0 : index
    %c0_74 = arith.constant 0 : index
    %236 = vector.load %arg4[%c0_71, %c7_72, %c0_73, %c0_74] : memref<1x16x16x64xf32, #tpu.memory_space<vmem>>, vector<1x1x16x64xf32>
    %237 = vector.shape_cast %236 : vector<1x1x16x64xf32> to vector<16x64xf32>
    %238 = vector.shape_cast %235 : vector<16x64xf32> to vector<1x1x16x64xf32>
    tpu.vector_store %arg4[%c0_71, %c7_72, %c0_73, %c0_74], %238 {strides = array<i32>} : memref<1x16x16x64xf32, #tpu.memory_space<vmem>>, vector<1x1x16x64xf32>,
    %239 = vector.extract_strided_slice %206 {offsets = [144, 0], sizes = [16, 64], strides = [1, 1]} : vector<288x64xf32> to vector<16x64xf32>
    %c0_75 = arith.constant 0 : index
    %c8_76 = arith.constant 8 : index
    %c0_77 = arith.constant 0 : index
    %c0_78 = arith.constant 0 : index
    %240 = vector.load %arg4[%c0_75, %c8_76, %c0_77, %c0_78] : memref<1x16x16x64xf32, #tpu.memory_space<vmem>>, vector<1x1x16x64xf32>
    %241 = vector.shape_cast %240 : vector<1x1x16x64xf32> to vector<16x64xf32>
    %242 = vector.shape_cast %239 : vector<16x64xf32> to vector<1x1x16x64xf32>
    tpu.vector_store %arg4[%c0_75, %c8_76, %c0_77, %c0_78], %242 {strides = array<i32>} : memref<1x16x16x64xf32, #tpu.memory_space<vmem>>, vector<1x1x16x64xf32>,
    %243 = vector.extract_strided_slice %206 {offsets = [162, 0], sizes = [16, 64], strides = [1, 1]} : vector<288x64xf32> to vector<16x64xf32>
    %c0_79 = arith.constant 0 : index
    %c9 = arith.constant 9 : index
    %c0_80 = arith.constant 0 : index
    %c0_81 = arith.constant 0 : index
    %244 = vector.load %arg4[%c0_79, %c9, %c0_80, %c0_81] : memref<1x16x16x64xf32, #tpu.memory_space<vmem>>, vector<1x1x16x64xf32>
    %245 = vector.shape_cast %244 : vector<1x1x16x64xf32> to vector<16x64xf32>
    %246 = vector.shape_cast %243 : vector<16x64xf32> to vector<1x1x16x64xf32>
    tpu.vector_store %arg4[%c0_79, %c9, %c0_80, %c0_81], %246 {strides = array<i32>} : memref<1x16x16x64xf32, #tpu.memory_space<vmem>>, vector<1x1x16x64xf32>,
    %247 = vector.extract_strided_slice %206 {offsets = [180, 0], sizes = [16, 64], strides = [1, 1]} : vector<288x64xf32> to vector<16x64xf32>
    %c0_82 = arith.constant 0 : index
    %c10 = arith.constant 10 : index
    %c0_83 = arith.constant 0 : index
    %c0_84 = arith.constant 0 : index
    %248 = vector.load %arg4[%c0_82, %c10, %c0_83, %c0_84] : memref<1x16x16x64xf32, #tpu.memory_space<vmem>>, vector<1x1x16x64xf32>
    %249 = vector.shape_cast %248 : vector<1x1x16x64xf32> to vector<16x64xf32>
    %250 = vector.shape_cast %247 : vector<16x64xf32> to vector<1x1x16x64xf32>
    tpu.vector_store %arg4[%c0_82, %c10, %c0_83, %c0_84], %250 {strides = array<i32>} : memref<1x16x16x64xf32, #tpu.memory_space<vmem>>, vector<1x1x16x64xf32>,
    %251 = vector.extract_strided_slice %206 {offsets = [198, 0], sizes = [16, 64], strides = [1, 1]} : vector<288x64xf32> to vector<16x64xf32>
    %c0_85 = arith.constant 0 : index
    %c11 = arith.constant 11 : index
    %c0_86 = arith.constant 0 : index
    %c0_87 = arith.constant 0 : index
    %252 = vector.load %arg4[%c0_85, %c11, %c0_86, %c0_87] : memref<1x16x16x64xf32, #tpu.memory_space<vmem>>, vector<1x1x16x64xf32>
    %253 = vector.shape_cast %252 : vector<1x1x16x64xf32> to vector<16x64xf32>
    %254 = vector.shape_cast %251 : vector<16x64xf32> to vector<1x1x16x64xf32>
    tpu.vector_store %arg4[%c0_85, %c11, %c0_86, %c0_87], %254 {strides = array<i32>} : memref<1x16x16x64xf32, #tpu.memory_space<vmem>>, vector<1x1x16x64xf32>,
    %255 = vector.extract_strided_slice %206 {offsets = [216, 0], sizes = [16, 64], strides = [1, 1]} : vector<288x64xf32> to vector<16x64xf32>
    %c0_88 = arith.constant 0 : index
    %c12 = arith.constant 12 : index
    %c0_89 = arith.constant 0 : index
    %c0_90 = arith.constant 0 : index
    %256 = vector.load %arg4[%c0_88, %c12, %c0_89, %c0_90] : memref<1x16x16x64xf32, #tpu.memory_space<vmem>>, vector<1x1x16x64xf32>
    %257 = vector.shape_cast %256 : vector<1x1x16x64xf32> to vector<16x64xf32>
    %258 = vector.shape_cast %255 : vector<16x64xf32> to vector<1x1x16x64xf32>
    tpu.vector_store %arg4[%c0_88, %c12, %c0_89, %c0_90], %258 {strides = array<i32>} : memref<1x16x16x64xf32, #tpu.memory_space<vmem>>, vector<1x1x16x64xf32>,
    %259 = vector.extract_strided_slice %206 {offsets = [234, 0], sizes = [16, 64], strides = [1, 1]} : vector<288x64xf32> to vector<16x64xf32>
    %c0_91 = arith.constant 0 : index
    %c13 = arith.constant 13 : index
    %c0_92 = arith.constant 0 : index
    %c0_93 = arith.constant 0 : index
    %260 = vector.load %arg4[%c0_91, %c13, %c0_92, %c0_93] : memref<1x16x16x64xf32, #tpu.memory_space<vmem>>, vector<1x1x16x64xf32>
    %261 = vector.shape_cast %260 : vector<1x1x16x64xf32> to vector<16x64xf32>
    %262 = vector.shape_cast %259 : vector<16x64xf32> to vector<1x1x16x64xf32>
    tpu.vector_store %arg4[%c0_91, %c13, %c0_92, %c0_93], %262 {strides = array<i32>} : memref<1x16x16x64xf32, #tpu.memory_space<vmem>>, vector<1x1x16x64xf32>,
    %263 = vector.extract_strided_slice %206 {offsets = [252, 0], sizes = [16, 64], strides = [1, 1]} : vector<288x64xf32> to vector<16x64xf32>
    %c0_94 = arith.constant 0 : index
    %c14 = arith.constant 14 : index
    %c0_95 = arith.constant 0 : index
    %c0_96 = arith.constant 0 : index
    %264 = vector.load %arg4[%c0_94, %c14, %c0_95, %c0_96] : memref<1x16x16x64xf32, #tpu.memory_space<vmem>>, vector<1x1x16x64xf32>
    %265 = vector.shape_cast %264 : vector<1x1x16x64xf32> to vector<16x64xf32>
    %266 = vector.shape_cast %263 : vector<16x64xf32> to vector<1x1x16x64xf32>
    tpu.vector_store %arg4[%c0_94, %c14, %c0_95, %c0_96], %266 {strides = array<i32>} : memref<1x16x16x64xf32, #tpu.memory_space<vmem>>, vector<1x1x16x64xf32>,
    %267 = vector.extract_strided_slice %206 {offsets = [270, 0], sizes = [16, 64], strides = [1, 1]} : vector<288x64xf32> to vector<16x64xf32>
    %c0_97 = arith.constant 0 : index
    %c15 = arith.constant 15 : index
    %c0_98 = arith.constant 0 : index
    %c0_99 = arith.constant 0 : index
    %268 = vector.load %arg4[%c0_97, %c15, %c0_98, %c0_99] : memref<1x16x16x64xf32, #tpu.memory_space<vmem>>, vector<1x1x16x64xf32>
    %269 = vector.shape_cast %268 : vector<1x1x16x64xf32> to vector<16x64xf32>
    %270 = vector.shape_cast %267 : vector<16x64xf32> to vector<1x1x16x64xf32>
    tpu.vector_store %arg4[%c0_97, %c15, %c0_98, %c0_99], %270 {strides = array<i32>} : memref<1x16x16x64xf32, #tpu.memory_space<vmem>>, vector<1x1x16x64xf32>,
    return
  }
  func.func @transform_0(%arg0: i32) -> (i32, i32, i32) {
    %c0_i32 = arith.constant 0 : i32
    %c0_i32_0 = arith.constant 0 : i32
    %c0_i32_1 = arith.constant 0 : i32
    return %arg0, %c0_i32, %c0_i32_0 : i32, i32, i32
  }
  func.func @transform_1(%arg0: i32) -> (i32, i32, i32) {
    %c0_i32 = arith.constant 0 : i32
    %c0_i32_0 = arith.constant 0 : i32
    %c0_i32_1 = arith.constant 0 : i32
    %c0_i32_2 = arith.constant 0 : i32
    return %c0_i32, %c0_i32_0, %c0_i32_1 : i32, i32, i32
  }
  func.func @transform_2(%arg0: i32) -> (i32, i32) {
    %c0_i32 = arith.constant 0 : i32
    %c0_i32_0 = arith.constant 0 : i32
    %c0_i32_1 = arith.constant 0 : i32
    return %c0_i32, %c0_i32_0 : i32, i32
  }
  func.func @transform_3(%arg0: i32) -> (i32, i32, i32, i32) {
    %c0_i32 = arith.constant 0 : i32
    %c0_i32_0 = arith.constant 0 : i32
    %c0_i32_1 = arith.constant 0 : i32
    %c0_i32_2 = arith.constant 0 : i32
    return %arg0, %c0_i32, %c0_i32_0, %c0_i32_1 : i32, i32, i32, i32
  }
}

</mosaic_0001>

<llo_original>
// kernel: inputproj_forward.1
$region0: #{inputproj_forward.1}
  #allocation0 [shape = 'u32[]', space=smem, size = 0x4, offset = 0x4, fixed_abs, tag = 'smem constant byte address 0x4 - core index']
  #allocation1 [shape = 'u32[72,128]{1,0:T(1,128)}', space=vmem, size = 0x9000, scoped, tag = 'internal scratch']
  %s0 = inlined_call_operand.vmem [shape: f32[2,342,3], index: 0, kind: input, shape index: {}]
  %s1 = inlined_call_operand.vmem [shape: f32[9,3,64], index: 1, kind: input, shape index: {}]
  %s2 = inlined_call_operand.vmem [shape: f32[1,64], index: 2, kind: input, shape index: {}]
  %s3 = inlined_call_operand.vmem [shape: f32[2,16,16,64], index: 3, kind: output, shape index: {}]
  %s4 = sld [smem:[#allocation0]]
  $region45: #{inputproj_forward.1} parent=0
    _
  %s6 = ssub.s32 1, %s4
  %s7 = scalar_select 0, %s6, %s4
  loop: start=0, step=1, limit=4
  $region2: #{inputproj_forward.1} parent=0 // loop_pre_header
    _
  $region3: #{inputproj_forward.1} parent=0 // loop_header
    %s9 = sphi 0, %s13
    %p10 = scmp.ge.s32.totalorder %s9, 4
    %s19 = sphi 0, %s21
    %s22 = sphi 0, %s19
    %s23 = sphi 0, %s22
    %s39 = sphi 0, %s23
    %s43 = sphi 0, %s43
    %s45 = sphi 0, %s43
    %s46 = sphi 0, %s45
    %s60 = sphi 0, %s46
    %s64 = sphi 0, %s64
    %s66 = sphi 0, %s64
    %s67 = sphi 0, %s66
    %s81 = sphi 0, %s67
    %s87 = sphi 0, %s89
    %s90 = sphi 0, %s87
    %s91 = sphi 0, %s90
    %s107 = sphi 0, %s91
  $region4: #{inputproj_forward.1} parent=0 // loop_header_branch
    %12 = sbr.rel (%p10) target = $region8
  $region5: #{inputproj_forward.1} parent=0 // loop_body
    %s14 = ssub.s32 %s9, 1
    %s15 = ssub.s32 %s9, 2
    %s16 = sadd.s32 %s9, 1
    %s17 = ssub.s32 %s9, %s16
    %p18 = scmp.eq.s32.totalorder %s17, 0
    %s20 = sadd.s32 %s19, 1
    %s21 = scalar_select %p18, %s19, %s20
    %p24 = pneg %p18
    %p25 = scmp.eq.s32.totalorder %s9, 1
    %p26 = por %p24, %p25
    %p27 = scmp.ne.s32.totalorder %s19, %s22
    %p28 = scmp.eq.s32.totalorder %s9, 0
    %p29 = por %p27, %p28
    %p30 = scmp.ne.s32.totalorder %s19, %s22
    %p31 = scmp.eq.s32.totalorder %s14, 1
    %p32 = por %p30, %p31
    %p33 = scmp.ne.s32.totalorder %s22, %s23
    %p34 = scmp.eq.s32.totalorder %s14, 0
    %p35 = por %p33, %p34
    %p36 = scmp.ne.s32.totalorder %s22, %s23
    %p37 = scmp.eq.s32.totalorder %s15, 1
    %p38 = por %p36, %p37
    %p40 = scmp.ne.s32.totalorder %s23, %s39
    %p41 = scmp.eq.s32.totalorder %s15, 0
    %p42 = por %p40, %p41
    %s44 = sadd.s32 %s43, 1
    %p47 = scmp.eq.s32.totalorder %s9, 1
    %p48 = scmp.ne.s32.totalorder %s43, %s45
    %p49 = scmp.eq.s32.totalorder %s9, 0
    %p50 = por %p48, %p49
    %p51 = scmp.ne.s32.totalorder %s43, %s45
    %p52 = scmp.eq.s32.totalorder %s14, 1
    %p53 = por %p51, %p52
    %p54 = scmp.ne.s32.totalorder %s45, %s46
    %p55 = scmp.eq.s32.totalorder %s14, 0
    %p56 = por %p54, %p55
    %p57 = scmp.ne.s32.totalorder %s45, %s46
    %p58 = scmp.eq.s32.totalorder %s15, 1
    %p59 = por %p57, %p58
    %p61 = scmp.ne.s32.totalorder %s46, %s60
    %p62 = scmp.eq.s32.totalorder %s15, 0
    %p63 = por %p61, %p62
    %s65 = sadd.s32 %s64, 1
    %p68 = scmp.eq.s32.totalorder %s9, 1
    %p69 = scmp.ne.s32.totalorder %s64, %s66
    %p70 = scmp.eq.s32.totalorder %s9, 0
    %p71 = por %p69, %p70
    %p72 = scmp.ne.s32.totalorder %s64, %s66
    %p73 = scmp.eq.s32.totalorder %s14, 1
    %p74 = por %p72, %p73
    %p75 = scmp.ne.s32.totalorder %s66, %s67
    %p76 = scmp.eq.s32.totalorder %s14, 0
    %p77 = por %p75, %p76
    %p78 = scmp.ne.s32.totalorder %s66, %s67
    %p79 = scmp.eq.s32.totalorder %s15, 1
    %p80 = por %p78, %p79
    %p82 = scmp.ne.s32.totalorder %s67, %s81
    %p83 = scmp.eq.s32.totalorder %s15, 0
    %p84 = por %p82, %p83
    %s85 = ssub.s32 %s9, %s16
    %p86 = scmp.eq.s32.totalorder %s85, 0
    %s88 = sadd.s32 %s87, 1
    %s89 = scalar_select %p86, %s87, %s88
    %p92 = pneg %p86
    %p93 = scmp.eq.s32.totalorder %s9, 1
    %p94 = por %p92, %p93
    %p95 = scmp.ne.s32.totalorder %s87, %s90
    %p96 = scmp.eq.s32.totalorder %s9, 0
    %p97 = por %p95, %p96
    %p98 = scmp.ne.s32.totalorder %s87, %s90
    %p99 = scmp.eq.s32.totalorder %s14, 1
    %p100 = por %p98, %p99
    %p101 = scmp.ne.s32.totalorder %s90, %s91
    %p102 = scmp.eq.s32.totalorder %s14, 0
    %p103 = por %p101, %p102
    %p104 = scmp.ne.s32.totalorder %s90, %s91
    %p105 = scmp.eq.s32.totalorder %s15, 1
    %p106 = por %p104, %p105
    %p108 = scmp.ne.s32.totalorder %s91, %s107
    %p109 = scmp.eq.s32.totalorder %s15, 0
    %p110 = por %p108, %p109
    %p111 = scmp.le.s32.totalorder 1, %s9
    %p112 = scmp.lt.s32.totalorder %s9, 3
    %p113 = pnand %p111, %p112
    %p114 = pneg %p113
    // Predicated region
    $region9: #{inputproj_forward.1} parent=5 // pred_check
      _
    $region10: #{inputproj_forward.1} parent=5 // pred_check_branch
      %116 = sbr.rel (%p113) target = $region12
    $region11: #{inputproj_forward.1} parent=5 // pred_region
      %s117 = ssub.s32 %s9, 1
      // Predicated region
      $region13: #{inputproj_forward.1} parent=11 // pred_check
        %p118 = pneg %p56
      $region14: #{inputproj_forward.1} parent=11 // pred_check_branch
        %120 = sbr.rel (%p118) target = $region16
      $region15: #{inputproj_forward.1} parent=11 // pred_region
        _
      $region16: #{inputproj_forward.1} parent=11 // pred_fallthru
        _
      // Predicated region
      $region17: #{inputproj_forward.1} parent=11 // pred_check
        %p121 = pneg %p77
      $region18: #{inputproj_forward.1} parent=11 // pred_check_branch
        %123 = sbr.rel (%p121) target = $region20
      $region19: #{inputproj_forward.1} parent=11 // pred_region
        _
      $region20: #{inputproj_forward.1} parent=11 // pred_fallthru
        _
    $region12: #{inputproj_forward.1} parent=5 // pred_fallthru
      _
    %p124 = scmp.lt.s32.totalorder %s9, 2
    // Predicated region
    $region21: #{inputproj_forward.1} parent=5 // pred_check
      %p125 = pneg %p124
    $region22: #{inputproj_forward.1} parent=5 // pred_check_branch
      %127 = sbr.rel (%p125) target = $region24
    $region23: #{inputproj_forward.1} parent=5 // pred_region
      // Predicated region
      $region25: #{inputproj_forward.1} parent=23 // pred_check
        %p128 = pneg %p29
      $region26: #{inputproj_forward.1} parent=23 // pred_check_branch
        %130 = sbr.rel (%p128) target = $region28
      $region27: #{inputproj_forward.1} parent=23 // pred_region
        %p131 = scmp.lt.s32.totalorder %s9, 1
        %s132 = scalar_select %p131, %s9, 1
        %s133 = smul.addr %s132, 43
        %s134 = smul.addr %s133, 8
        %s135 = scalar_lea.vmem %s0, %s134
      $region28: #{inputproj_forward.1} parent=23 // pred_fallthru
        _
    $region24: #{inputproj_forward.1} parent=5 // pred_fallthru
      _
    %p136 = scmp.le.s32.totalorder 1, %s9
    %p137 = scmp.lt.s32.totalorder %s9, 3
    %p138 = pnand %p136, %p137
    %p139 = pneg %p138
    // Predicated region
    $region29: #{inputproj_forward.1} parent=5 // pred_check
      _
    $region30: #{inputproj_forward.1} parent=5 // pred_check_branch
      %141 = sbr.rel (%p138) target = $region32
    $region31: #{inputproj_forward.1} parent=5 // pred_region
      %s142 = ssub.s32 %s9, 1
      %p143 = scmp.lt.s32.totalorder %s14, 1
      %s144 = scalar_select %p143, %s14, 1
      %s145 = smul.addr %s144, 43
      %s146 = smul.addr %s145, 8
      %s147 = scalar_lea.vmem %s0, %s146
      %p148 = pneg %p35
      %p149 = pneg %p32
      %p150 = pneg %p56
      %p151 = pneg %p53
      %p152 = pneg %p77
      %p153 = pneg %p74
      %p154 = pneg %p103
      %p155 = pneg %p100
      %p156 = scmp.lt.s32.totalorder %s14, 1
      %s157 = scalar_select %p156, %s14, 1
      %s158 = smul.addr %s157, 32
      %s159 = smul.addr %s158, 8
      %s160 = scalar_lea.vmem %s3, %s159
      %p161 = scmp.lt.s32.totalorder %s14, 1
      %s162 = scalar_select %p161, %s14, 1
      %s163 = smul.addr %s162, 43
      %s164 = smul.addr %s163, 8
      %s165 = scalar_lea.vmem %s0, %s164
      %p166 = scmp.lt.s32.totalorder %s14, 1
      %s167 = scalar_select %p166, %s14, 1
      %s168 = smul.addr %s167, 32
      %s169 = smul.addr %s168, 8
      %s170 = scalar_lea.vmem %s3, %s169
      %v171 = vld [vmem:[%s165] sm:$0xff]
      %v172 = vld [vmem:[%s165 + $0x8] sm:$0xff]
      %v173 = vld [vmem:[%s165 + $0x10] sm:$0xff]
      %v174 = vld [vmem:[%s165 + $0x18] sm:$0xff]
      %v175 = vld [vmem:[%s165 + $0x20] sm:$0xff]
      %v176 = vld [vmem:[%s165 + $0x28] sm:$0xff]
      %v177 = vld [vmem:[%s165 + $0x30] sm:$0xff]
      %v178 = vld [vmem:[%s165 + $0x38] sm:$0xff]
      %v179 = vld [vmem:[%s165 + $0x40] sm:$0xff]
      %v180 = vld [vmem:[%s165 + $0x48] sm:$0xff]
      %v181 = vld [vmem:[%s165 + $0x50] sm:$0xff]
      %v182 = vld [vmem:[%s165 + $0x58] sm:$0xff]
      %v183 = vld [vmem:[%s165 + $0x60] sm:$0xff]
      %v184 = vld [vmem:[%s165 + $0x68] sm:$0xff]
      %v185 = vld [vmem:[%s165 + $0x70] sm:$0xff]
      %v186 = vld [vmem:[%s165 + $0x78] sm:$0xff]
      %v187 = vld [vmem:[%s165 + $0x80] sm:$0xff]
      %v188 = vld [vmem:[%s165 + $0x88] sm:$0xff]
      %v189 = vld [vmem:[%s165 + $0x90] sm:$0xff]
      %v190 = vld [vmem:[%s165 + $0x98] sm:$0xff]
      %v191 = vld [vmem:[%s165 + $0xa0] sm:$0xff]
      %v192 = vld [vmem:[%s165 + $0xa8] sm:$0xff]
      %v193 = vld [vmem:[%s165 + $0xb0] sm:$0xff]
      %v194 = vld [vmem:[%s165 + $0xb8] sm:$0xff]
      %v195 = vld [vmem:[%s165 + $0xc0] sm:$0xff]
      %v196 = vld [vmem:[%s165 + $0xc8] sm:$0xff]
      %v197 = vld [vmem:[%s165 + $0xd0] sm:$0xff]
      %v198 = vld [vmem:[%s165 + $0xd8] sm:$0xff]
      %v199 = vld [vmem:[%s165 + $0xe0] sm:$0xff]
      %v200 = vld [vmem:[%s165 + $0xe8] sm:$0xff]
      %v201 = vld [vmem:[%s165 + $0xf0] sm:$0xff]
      %v202 = vld [vmem:[%s165 + $0xf8] sm:$0xff]
      %v203 = vld [vmem:[%s165 + $0x100] sm:$0xff]
      %v204 = vld [vmem:[%s165 + $0x108] sm:$0xff]
      %v205 = vld [vmem:[%s165 + $0x110] sm:$0xff]
      %v206 = vld [vmem:[%s165 + $0x118] sm:$0xff]
      %v207 = vld [vmem:[%s1] sm:$0x7]
      %209 = vset.pattern.permute.xlu0 0
      %210 = vperm.xlu0 %209, %v171
      %v211 = vpop.permute.xlu0 %210
      %214 = vset.pattern.permute.xlu0 0
      %215 = vperm.xlu0 %214, %v172
      %v216 = vpop.permute.xlu0 %215
      %219 = vset.pattern.permute.xlu0 0
      %220 = vperm.xlu0 %219, %v173
      %v221 = vpop.permute.xlu0 %220
      %224 = vset.pattern.permute.xlu0 0
      %225 = vperm.xlu0 %224, %v174
      %v226 = vpop.permute.xlu0 %225
      %229 = vset.pattern.permute.xlu0 0
      %230 = vperm.xlu0 %229, %v175
      %v231 = vpop.permute.xlu0 %230
      %234 = vset.pattern.permute.xlu0 0
      %235 = vperm.xlu0 %234, %v176
      %v236 = vpop.permute.xlu0 %235
      %239 = vset.pattern.permute.xlu0 0
      %240 = vperm.xlu0 %239, %v177
      %v241 = vpop.permute.xlu0 %240
      %244 = vset.pattern.permute.xlu0 0
      %245 = vperm.xlu0 %244, %v178
      %v246 = vpop.permute.xlu0 %245
      %249 = vset.pattern.permute.xlu0 0
      %250 = vperm.xlu0 %249, %v179
      %v251 = vpop.permute.xlu0 %250
      %254 = vset.pattern.permute.xlu0 0
      %255 = vperm.xlu0 %254, %v180
      %v256 = vpop.permute.xlu0 %255
      %259 = vset.pattern.permute.xlu0 0
      %260 = vperm.xlu0 %259, %v181
      %v261 = vpop.permute.xlu0 %260
      %264 = vset.pattern.permute.xlu0 0
      %265 = vperm.xlu0 %264, %v182
      %v266 = vpop.permute.xlu0 %265
      %269 = vset.pattern.permute.xlu0 0
      %270 = vperm.xlu0 %269, %v183
      %v271 = vpop.permute.xlu0 %270
      %274 = vset.pattern.permute.xlu0 0
      %275 = vperm.xlu0 %274, %v184
      %v276 = vpop.permute.xlu0 %275
      %279 = vset.pattern.permute.xlu0 0
      %280 = vperm.xlu0 %279, %v185
      %v281 = vpop.permute.xlu0 %280
      %284 = vset.pattern.permute.xlu0 0
      %285 = vperm.xlu0 %284, %v186
      %v286 = vpop.permute.xlu0 %285
      %289 = vset.pattern.permute.xlu0 0
      %290 = vperm.xlu0 %289, %v187
      %v291 = vpop.permute.xlu0 %290
      %294 = vset.pattern.permute.xlu0 0
      %295 = vperm.xlu0 %294, %v188
      %v296 = vpop.permute.xlu0 %295
      %299 = vset.pattern.permute.xlu0 0
      %300 = vperm.xlu0 %299, %v189
      %v301 = vpop.permute.xlu0 %300
      %304 = vset.pattern.permute.xlu0 0
      %305 = vperm.xlu0 %304, %v190
      %v306 = vpop.permute.xlu0 %305
      %309 = vset.pattern.permute.xlu0 0
      %310 = vperm.xlu0 %309, %v191
      %v311 = vpop.permute.xlu0 %310
      %314 = vset.pattern.permute.xlu0 0
      %315 = vperm.xlu0 %314, %v192
      %v316 = vpop.permute.xlu0 %315
      %319 = vset.pattern.permute.xlu0 0
      %320 = vperm.xlu0 %319, %v193
      %v321 = vpop.permute.xlu0 %320
      %324 = vset.pattern.permute.xlu0 0
      %325 = vperm.xlu0 %324, %v194
      %v326 = vpop.permute.xlu0 %325
      %329 = vset.pattern.permute.xlu0 0
      %330 = vperm.xlu0 %329, %v195
      %v331 = vpop.permute.xlu0 %330
      %334 = vset.pattern.permute.xlu0 0
      %335 = vperm.xlu0 %334, %v196
      %v336 = vpop.permute.xlu0 %335
      %339 = vset.pattern.permute.xlu0 0
      %340 = vperm.xlu0 %339, %v197
      %v341 = vpop.permute.xlu0 %340
      %344 = vset.pattern.permute.xlu0 0
      %345 = vperm.xlu0 %344, %v198
      %v346 = vpop.permute.xlu0 %345
      %349 = vset.pattern.permute.xlu0 0
      %350 = vperm.xlu0 %349, %v199
      %v351 = vpop.permute.xlu0 %350
      %354 = vset.pattern.permute.xlu0 0
      %355 = vperm.xlu0 %354, %v200
      %v356 = vpop.permute.xlu0 %355
      %359 = vset.pattern.permute.xlu0 0
      %360 = vperm.xlu0 %359, %v201
      %v361 = vpop.permute.xlu0 %360
      %364 = vset.pattern.permute.xlu0 0
      %365 = vperm.xlu0 %364, %v202
      %v366 = vpop.permute.xlu0 %365
      %369 = vset.pattern.permute.xlu0 0
      %370 = vperm.xlu0 %369, %v203
      %v371 = vpop.permute.xlu0 %370
      %374 = vset.pattern.permute.xlu0 0
      %375 = vperm.xlu0 %374, %v204
      %v376 = vpop.permute.xlu0 %375
      %379 = vset.pattern.permute.xlu0 0
      %380 = vperm.xlu0 %379, %v205
      %v381 = vpop.permute.xlu0 %380
      %384 = vset.pattern.permute.xlu0 0
      %385 = vperm.xlu0 %384, %v206
      %v386 = vpop.permute.xlu0 %385
      %v388 = vperm.slane %v207, 0
      %v389 = vmul.f32 %v211, %v388
      %v390 = vmul.f32 %v216, %v388
      %v391 = vmul.f32 %v221, %v388
      %v392 = vmul.f32 %v226, %v388
      %v393 = vmul.f32 %v231, %v388
      %v394 = vmul.f32 %v236, %v388
      %v395 = vmul.f32 %v241, %v388
      %v396 = vmul.f32 %v246, %v388
      %v397 = vmul.f32 %v251, %v388
      %v398 = vmul.f32 %v256, %v388
      %v399 = vmul.f32 %v261, %v388
      %v400 = vmul.f32 %v266, %v388
      %v401 = vmul.f32 %v271, %v388
      %v402 = vmul.f32 %v276, %v388
      %v403 = vmul.f32 %v281, %v388
      %v404 = vmul.f32 %v286, %v388
      %v405 = vmul.f32 %v291, %v388
      %v406 = vmul.f32 %v296, %v388
      %v407 = vmul.f32 %v301, %v388
      %v408 = vmul.f32 %v306, %v388
      %v409 = vmul.f32 %v311, %v388
      %v410 = vmul.f32 %v316, %v388
      %v411 = vmul.f32 %v321, %v388
      %v412 = vmul.f32 %v326, %v388
      %v413 = vmul.f32 %v331, %v388
      %v414 = vmul.f32 %v336, %v388
      %v415 = vmul.f32 %v341, %v388
      %v416 = vmul.f32 %v346, %v388
      %v417 = vmul.f32 %v351, %v388
      %v418 = vmul.f32 %v356, %v388
      %v419 = vmul.f32 %v361, %v388
      %v420 = vmul.f32 %v366, %v388
      %v421 = vmul.f32 %v371, %v388
      %v422 = vmul.f32 %v376, %v388
      %v423 = vmul.f32 %v381, %v388
      %v424 = vmul.f32 %v386, %v388
      %v425 = vadd.f32 %v389, 0.0
      %v426 = vadd.f32 %v390, 0.0
      %v427 = vadd.f32 %v391, 0.0
      %v428 = vadd.f32 %v392, 0.0
      %v429 = vadd.f32 %v393, 0.0
      %v430 = vadd.f32 %v394, 0.0
      %v431 = vadd.f32 %v395, 0.0
      %v432 = vadd.f32 %v396, 0.0
      %v433 = vadd.f32 %v397, 0.0
      %v434 = vadd.f32 %v398, 0.0
      %v435 = vadd.f32 %v399, 0.0
      %v436 = vadd.f32 %v400, 0.0
      %v437 = vadd.f32 %v401, 0.0
      %v438 = vadd.f32 %v402, 0.0
      %v439 = vadd.f32 %v403, 0.0
      %v440 = vadd.f32 %v404, 0.0
      %v441 = vadd.f32 %v405, 0.0
      %v442 = vadd.f32 %v406, 0.0
      %v443 = vadd.f32 %v407, 0.0
      %v444 = vadd.f32 %v408, 0.0
      %v445 = vadd.f32 %v409, 0.0
      %v446 = vadd.f32 %v410, 0.0
      %v447 = vadd.f32 %v411, 0.0
      %v448 = vadd.f32 %v412, 0.0
      %v449 = vadd.f32 %v413, 0.0
      %v450 = vadd.f32 %v414, 0.0
      %v451 = vadd.f32 %v415, 0.0
      %v452 = vadd.f32 %v416, 0.0
      %v453 = vadd.f32 %v417, 0.0
      %v454 = vadd.f32 %v418, 0.0
      %v455 = vadd.f32 %v419, 0.0
      %v456 = vadd.f32 %v420, 0.0
      %v457 = vadd.f32 %v421, 0.0
      %v458 = vadd.f32 %v422, 0.0
      %v459 = vadd.f32 %v423, 0.0
      %v460 = vadd.f32 %v424, 0.0
      %461 = vset.pattern.permute.xlu0 1
      %462 = vperm.xlu0 %461, %v171
      %v463 = vpop.permute.xlu0 %462
      %465 = vset.pattern.permute.xlu0 1
      %466 = vperm.xlu0 %465, %v172
      %v467 = vpop.permute.xlu0 %466
      %469 = vset.pattern.permute.xlu0 1
      %470 = vperm.xlu0 %469, %v173
      %v471 = vpop.permute.xlu0 %470
      %473 = vset.pattern.permute.xlu0 1
      %474 = vperm.xlu0 %473, %v174
      %v475 = vpop.permute.xlu0 %474
      %477 = vset.pattern.permute.xlu0 1
      %478 = vperm.xlu0 %477, %v175
      %v479 = vpop.permute.xlu0 %478
      %481 = vset.pattern.permute.xlu0 1
      %482 = vperm.xlu0 %481, %v176
      %v483 = vpop.permute.xlu0 %482
      %485 = vset.pattern.permute.xlu0 1
      %486 = vperm.xlu0 %485, %v177
      %v487 = vpop.permute.xlu0 %486
      %489 = vset.pattern.permute.xlu0 1
      %490 = vperm.xlu0 %489, %v178
      %v491 = vpop.permute.xlu0 %490
      %493 = vset.pattern.permute.xlu0 1
      %494 = vperm.xlu0 %493, %v179
      %v495 = vpop.permute.xlu0 %494
      %497 = vset.pattern.permute.xlu0 1
      %498 = vperm.xlu0 %497, %v180
      %v499 = vpop.permute.xlu0 %498
      %501 = vset.pattern.permute.xlu0 1
      %502 = vperm.xlu0 %501, %v181
      %v503 = vpop.permute.xlu0 %502
      %505 = vset.pattern.permute.xlu0 1
      %506 = vperm.xlu0 %505, %v182
      %v507 = vpop.permute.xlu0 %506
      %509 = vset.pattern.permute.xlu0 1
      %510 = vperm.xlu0 %509, %v183
      %v511 = vpop.permute.xlu0 %510
      %513 = vset.pattern.permute.xlu0 1
      %514 = vperm.xlu0 %513, %v184
      %v515 = vpop.permute.xlu0 %514
      %517 = vset.pattern.permute.xlu0 1
      %518 = vperm.xlu0 %517, %v185
      %v519 = vpop.permute.xlu0 %518
      %521 = vset.pattern.permute.xlu0 1
      %522 = vperm.xlu0 %521, %v186
      %v523 = vpop.permute.xlu0 %522
      %525 = vset.pattern.permute.xlu0 1
      %526 = vperm.xlu0 %525, %v187
      %v527 = vpop.permute.xlu0 %526
      %529 = vset.pattern.permute.xlu0 1
      %530 = vperm.xlu0 %529, %v188
      %v531 = vpop.permute.xlu0 %530
      %533 = vset.pattern.permute.xlu0 1
      %534 = vperm.xlu0 %533, %v189
      %v535 = vpop.permute.xlu0 %534
      %537 = vset.pattern.permute.xlu0 1
      %538 = vperm.xlu0 %537, %v190
      %v539 = vpop.permute.xlu0 %538
      %541 = vset.pattern.permute.xlu0 1
      %542 = vperm.xlu0 %541, %v191
      %v543 = vpop.permute.xlu0 %542
      %545 = vset.pattern.permute.xlu0 1
      %546 = vperm.xlu0 %545, %v192
      %v547 = vpop.permute.xlu0 %546
      %549 = vset.pattern.permute.xlu0 1
      %550 = vperm.xlu0 %549, %v193
      %v551 = vpop.permute.xlu0 %550
      %553 = vset.pattern.permute.xlu0 1
      %554 = vperm.xlu0 %553, %v194
      %v555 = vpop.permute.xlu0 %554
      %557 = vset.pattern.permute.xlu0 1
      %558 = vperm.xlu0 %557, %v195
      %v559 = vpop.permute.xlu0 %558
      %561 = vset.pattern.permute.xlu0 1
      %562 = vperm.xlu0 %561, %v196
      %v563 = vpop.permute.xlu0 %562
      %565 = vset.pattern.permute.xlu0 1
      %566 = vperm.xlu0 %565, %v197
      %v567 = vpop.permute.xlu0 %566
      %569 = vset.pattern.permute.xlu0 1
      %570 = vperm.xlu0 %569, %v198
      %v571 = vpop.permute.xlu0 %570
      %573 = vset.pattern.permute.xlu0 1
      %574 = vperm.xlu0 %573, %v199
      %v575 = vpop.permute.xlu0 %574
      %577 = vset.pattern.permute.xlu0 1
      %578 = vperm.xlu0 %577, %v200
      %v579 = vpop.permute.xlu0 %578
      %581 = vset.pattern.permute.xlu0 1
      %582 = vperm.xlu0 %581, %v201
      %v583 = vpop.permute.xlu0 %582
      %585 = vset.pattern.permute.xlu0 1
      %586 = vperm.xlu0 %585, %v202
      %v587 = vpop.permute.xlu0 %586
      %589 = vset.pattern.permute.xlu0 1
      %590 = vperm.xlu0 %589, %v203
      %v591 = vpop.permute.xlu0 %590
      %593 = vset.pattern.permute.xlu0 1
      %594 = vperm.xlu0 %593, %v204
      %v595 = vpop.permute.xlu0 %594
      %597 = vset.pattern.permute.xlu0 1
      %598 = vperm.xlu0 %597, %v205
      %v599 = vpop.permute.xlu0 %598
      %601 = vset.pattern.permute.xlu0 1
      %602 = vperm.xlu0 %601, %v206
      %v603 = vpop.permute.xlu0 %602
      %v605 = vperm.slane %v207, 1
      %v606 = vmul.f32 %v463, %v605
      %v607 = vmul.f32 %v467, %v605
      %v608 = vmul.f32 %v471, %v605
      %v609 = vmul.f32 %v475, %v605
      %v610 = vmul.f32 %v479, %v605
      %v611 = vmul.f32 %v483, %v605
      %v612 = vmul.f32 %v487, %v605
      %v613 = vmul.f32 %v491, %v605
      %v614 = vmul.f32 %v495, %v605
      %v615 = vmul.f32 %v499, %v605
      %v616 = vmul.f32 %v503, %v605
      %v617 = vmul.f32 %v507, %v605
      %v618 = vmul.f32 %v511, %v605
      %v619 = vmul.f32 %v515, %v605
      %v620 = vmul.f32 %v519, %v605
      %v621 = vmul.f32 %v523, %v605
      %v622 = vmul.f32 %v527, %v605
      %v623 = vmul.f32 %v531, %v605
      %v624 = vmul.f32 %v535, %v605
      %v625 = vmul.f32 %v539, %v605
      %v626 = vmul.f32 %v543, %v605
      %v627 = vmul.f32 %v547, %v605
      %v628 = vmul.f32 %v551, %v605
      %v629 = vmul.f32 %v555, %v605
      %v630 = vmul.f32 %v559, %v605
      %v631 = vmul.f32 %v563, %v605
      %v632 = vmul.f32 %v567, %v605
      %v633 = vmul.f32 %v571, %v605
      %v634 = vmul.f32 %v575, %v605
      %v635 = vmul.f32 %v579, %v605
      %v636 = vmul.f32 %v583, %v605
      %v637 = vmul.f32 %v587, %v605
      %v638 = vmul.f32 %v591, %v605
      %v639 = vmul.f32 %v595, %v605
      %v640 = vmul.f32 %v599, %v605
      %v641 = vmul.f32 %v603, %v605
      %v642 = vadd.f32 %v425, %v606
      %v643 = vadd.f32 %v426, %v607
      %v644 = vadd.f32 %v427, %v608
      %v645 = vadd.f32 %v428, %v609
      %v646 = vadd.f32 %v429, %v610
      %v647 = vadd.f32 %v430, %v611
      %v648 = vadd.f32 %v431, %v612
      %v649 = vadd.f32 %v432, %v613
      %v650 = vadd.f32 %v433, %v614
      %v651 = vadd.f32 %v434, %v615
      %v652 = vadd.f32 %v435, %v616
      %v653 = vadd.f32 %v436, %v617
      %v654 = vadd.f32 %v437, %v618
      %v655 = vadd.f32 %v438, %v619
      %v656 = vadd.f32 %v439, %v620
      %v657 = vadd.f32 %v440, %v621
      %v658 = vadd.f32 %v441, %v622
      %v659 = vadd.f32 %v442, %v623
      %v660 = vadd.f32 %v443, %v624
      %v661 = vadd.f32 %v444, %v625
      %v662 = vadd.f32 %v445, %v626
      %v663 = vadd.f32 %v446, %v627
      %v664 = vadd.f32 %v447, %v628
      %v665 = vadd.f32 %v448, %v629
      %v666 = vadd.f32 %v449, %v630
      %v667 = vadd.f32 %v450, %v631
      %v668 = vadd.f32 %v451, %v632
      %v669 = vadd.f32 %v452, %v633
      %v670 = vadd.f32 %v453, %v634
      %v671 = vadd.f32 %v454, %v635
      %v672 = vadd.f32 %v455, %v636
      %v673 = vadd.f32 %v456, %v637
      %v674 = vadd.f32 %v457, %v638
      %v675 = vadd.f32 %v458, %v639
      %v676 = vadd.f32 %v459, %v640
      %v677 = vadd.f32 %v460, %v641
      %678 = vset.pattern.permute.xlu0 2
      %679 = vperm.xlu0 %678, %v171
      %v680 = vpop.permute.xlu0 %679
      %682 = vset.pattern.permute.xlu0 2
      %683 = vperm.xlu0 %682, %v172
      %v684 = vpop.permute.xlu0 %683
      %686 = vset.pattern.permute.xlu0 2
      %687 = vperm.xlu0 %686, %v173
      %v688 = vpop.permute.xlu0 %687
      %690 = vset.pattern.permute.xlu0 2
      %691 = vperm.xlu0 %690, %v174
      %v692 = vpop.permute.xlu0 %691
      %694 = vset.pattern.permute.xlu0 2
      %695 = vperm.xlu0 %694, %v175
      %v696 = vpop.permute.xlu0 %695
      %698 = vset.pattern.permute.xlu0 2
      %699 = vperm.xlu0 %698, %v176
      %v700 = vpop.permute.xlu0 %699
      %702 = vset.pattern.permute.xlu0 2
      %703 = vperm.xlu0 %702, %v177
      %v704 = vpop.permute.xlu0 %703
      %706 = vset.pattern.permute.xlu0 2
      %707 = vperm.xlu0 %706, %v178
      %v708 = vpop.permute.xlu0 %707
      %710 = vset.pattern.permute.xlu0 2
      %711 = vperm.xlu0 %710, %v179
      %v712 = vpop.permute.xlu0 %711
      %714 = vset.pattern.permute.xlu0 2
      %715 = vperm.xlu0 %714, %v180
      %v716 = vpop.permute.xlu0 %715
      %718 = vset.pattern.permute.xlu0 2
      %719 = vperm.xlu0 %718, %v181
      %v720 = vpop.permute.xlu0 %719
      %722 = vset.pattern.permute.xlu0 2
      %723 = vperm.xlu0 %722, %v182
      %v724 = vpop.permute.xlu0 %723
      %726 = vset.pattern.permute.xlu0 2
      %727 = vperm.xlu0 %726, %v183
      %v728 = vpop.permute.xlu0 %727
      %730 = vset.pattern.permute.xlu0 2
      %731 = vperm.xlu0 %730, %v184
      %v732 = vpop.permute.xlu0 %731
      %734 = vset.pattern.permute.xlu0 2
      %735 = vperm.xlu0 %734, %v185
      %v736 = vpop.permute.xlu0 %735
      %738 = vset.pattern.permute.xlu0 2
      %739 = vperm.xlu0 %738, %v186
      %v740 = vpop.permute.xlu0 %739
      %742 = vset.pattern.permute.xlu0 2
      %743 = vperm.xlu0 %742, %v187
      %v744 = vpop.permute.xlu0 %743
      %746 = vset.pattern.permute.xlu0 2
      %747 = vperm.xlu0 %746, %v188
      %v748 = vpop.permute.xlu0 %747
      %750 = vset.pattern.permute.xlu0 2
      %751 = vperm.xlu0 %750, %v189
      %v752 = vpop.permute.xlu0 %751
      %754 = vset.pattern.permute.xlu0 2
      %755 = vperm.xlu0 %754, %v190
      %v756 = vpop.permute.xlu0 %755
      %758 = vset.pattern.permute.xlu0 2
      %759 = vperm.xlu0 %758, %v191
      %v760 = vpop.permute.xlu0 %759
      %762 = vset.pattern.permute.xlu0 2
      %763 = vperm.xlu0 %762, %v192
      %v764 = vpop.permute.xlu0 %763
      %766 = vset.pattern.permute.xlu0 2
      %767 = vperm.xlu0 %766, %v193
      %v768 = vpop.permute.xlu0 %767
      %770 = vset.pattern.permute.xlu0 2
      %771 = vperm.xlu0 %770, %v194
      %v772 = vpop.permute.xlu0 %771
      %774 = vset.pattern.permute.xlu0 2
      %775 = vperm.xlu0 %774, %v195
      %v776 = vpop.permute.xlu0 %775
      %778 = vset.pattern.permute.xlu0 2
      %779 = vperm.xlu0 %778, %v196
      %v780 = vpop.permute.xlu0 %779
      %782 = vset.pattern.permute.xlu0 2
      %783 = vperm.xlu0 %782, %v197
      %v784 = vpop.permute.xlu0 %783
      %786 = vset.pattern.permute.xlu0 2
      %787 = vperm.xlu0 %786, %v198
      %v788 = vpop.permute.xlu0 %787
      %790 = vset.pattern.permute.xlu0 2
      %791 = vperm.xlu0 %790, %v199
      %v792 = vpop.permute.xlu0 %791
      %794 = vset.pattern.permute.xlu0 2
      %795 = vperm.xlu0 %794, %v200
      %v796 = vpop.permute.xlu0 %795
      %798 = vset.pattern.permute.xlu0 2
      %799 = vperm.xlu0 %798, %v201
      %v800 = vpop.permute.xlu0 %799
      %802 = vset.pattern.permute.xlu0 2
      %803 = vperm.xlu0 %802, %v202
      %v804 = vpop.permute.xlu0 %803
      %806 = vset.pattern.permute.xlu0 2
      %807 = vperm.xlu0 %806, %v203
      %v808 = vpop.permute.xlu0 %807
      %810 = vset.pattern.permute.xlu0 2
      %811 = vperm.xlu0 %810, %v204
      %v812 = vpop.permute.xlu0 %811
      %814 = vset.pattern.permute.xlu0 2
      %815 = vperm.xlu0 %814, %v205
      %v816 = vpop.permute.xlu0 %815
      %818 = vset.pattern.permute.xlu0 2
      %819 = vperm.xlu0 %818, %v206
      %v820 = vpop.permute.xlu0 %819
      %v822 = vperm.slane %v207, 2
      %v823 = vmul.f32 %v680, %v822
      %v824 = vmul.f32 %v684, %v822
      %v825 = vmul.f32 %v688, %v822
      %v826 = vmul.f32 %v692, %v822
      %v827 = vmul.f32 %v696, %v822
      %v828 = vmul.f32 %v700, %v822
      %v829 = vmul.f32 %v704, %v822
      %v830 = vmul.f32 %v708, %v822
      %v831 = vmul.f32 %v712, %v822
      %v832 = vmul.f32 %v716, %v822
      %v833 = vmul.f32 %v720, %v822
      %v834 = vmul.f32 %v724, %v822
      %v835 = vmul.f32 %v728, %v822
      %v836 = vmul.f32 %v732, %v822
      %v837 = vmul.f32 %v736, %v822
      %v838 = vmul.f32 %v740, %v822
      %v839 = vmul.f32 %v744, %v822
      %v840 = vmul.f32 %v748, %v822
      %v841 = vmul.f32 %v752, %v822
      %v842 = vmul.f32 %v756, %v822
      %v843 = vmul.f32 %v760, %v822
      %v844 = vmul.f32 %v764, %v822
      %v845 = vmul.f32 %v768, %v822
      %v846 = vmul.f32 %v772, %v822
      %v847 = vmul.f32 %v776, %v822
      %v848 = vmul.f32 %v780, %v822
      %v849 = vmul.f32 %v784, %v822
      %v850 = vmul.f32 %v788, %v822
      %v851 = vmul.f32 %v792, %v822
      %v852 = vmul.f32 %v796, %v822
      %v853 = vmul.f32 %v800, %v822
      %v854 = vmul.f32 %v804, %v822
      %v855 = vmul.f32 %v808, %v822
      %v856 = vmul.f32 %v812, %v822
      %v857 = vmul.f32 %v816, %v822
      %v858 = vmul.f32 %v820, %v822
      %v859 = vadd.f32 %v642, %v823
      %v860 = vadd.f32 %v643, %v824
      %v861 = vadd.f32 %v644, %v825
      %v862 = vadd.f32 %v645, %v826
      %v863 = vadd.f32 %v646, %v827
      %v864 = vadd.f32 %v647, %v828
      %v865 = vadd.f32 %v648, %v829
      %v866 = vadd.f32 %v649, %v830
      %v867 = vadd.f32 %v650, %v831
      %v868 = vadd.f32 %v651, %v832
      %v869 = vadd.f32 %v652, %v833
      %v870 = vadd.f32 %v653, %v834
      %v871 = vadd.f32 %v654, %v835
      %v872 = vadd.f32 %v655, %v836
      %v873 = vadd.f32 %v656, %v837
      %v874 = vadd.f32 %v657, %v838
      %v875 = vadd.f32 %v658, %v839
      %v876 = vadd.f32 %v659, %v840
      %v877 = vadd.f32 %v660, %v841
      %v878 = vadd.f32 %v661, %v842
      %v879 = vadd.f32 %v662, %v843
      %v880 = vadd.f32 %v663, %v844
      %v881 = vadd.f32 %v664, %v845
      %v882 = vadd.f32 %v665, %v846
      %v883 = vadd.f32 %v666, %v847
      %v884 = vadd.f32 %v667, %v848
      %v885 = vadd.f32 %v668, %v849
      %v886 = vadd.f32 %v669, %v850
      %v887 = vadd.f32 %v670, %v851
      %v888 = vadd.f32 %v671, %v852
      %v889 = vadd.f32 %v672, %v853
      %v890 = vadd.f32 %v673, %v854
      %v891 = vadd.f32 %v674, %v855
      %v892 = vadd.f32 %v675, %v856
      %v893 = vadd.f32 %v676, %v857
      %v894 = vadd.f32 %v677, %v858
      %v895 = vld [vmem:[%s165 + $0x1] sm:$0xff]
      %v896 = vld [vmem:[%s165 + $0x9] sm:$0xff]
      %v897 = vld [vmem:[%s165 + $0x11] sm:$0xff]
      %v898 = vld [vmem:[%s165 + $0x19] sm:$0xff]
      %v899 = vld [vmem:[%s165 + $0x21] sm:$0xff]
      %v900 = vld [vmem:[%s165 + $0x29] sm:$0xff]
      %v901 = vld [vmem:[%s165 + $0x31] sm:$0xff]
      %v902 = vld [vmem:[%s165 + $0x39] sm:$0xff]
      %v903 = vld [vmem:[%s165 + $0x41] sm:$0xff]
      %v904 = vld [vmem:[%s165 + $0x49] sm:$0xff]
      %v905 = vld [vmem:[%s165 + $0x51] sm:$0xff]
      %v906 = vld [vmem:[%s165 + $0x59] sm:$0xff]
      %v907 = vld [vmem:[%s165 + $0x61] sm:$0xff]
      %v908 = vld [vmem:[%s165 + $0x69] sm:$0xff]
      %v909 = vld [vmem:[%s165 + $0x71] sm:$0xff]
      %v910 = vld [vmem:[%s165 + $0x79] sm:$0xff]
      %v911 = vld [vmem:[%s165 + $0x81] sm:$0xff]
      %v912 = vld [vmem:[%s165 + $0x89] sm:$0xff]
      %v913 = vld [vmem:[%s165 + $0x91] sm:$0xff]
      %v914 = vld [vmem:[%s165 + $0x99] sm:$0xff]
      %v915 = vld [vmem:[%s165 + $0xa1] sm:$0xff]
      %v916 = vld [vmem:[%s165 + $0xa9] sm:$0xff]
      %v917 = vld [vmem:[%s165 + $0xb1] sm:$0xff]
      %v918 = vld [vmem:[%s165 + $0xb9] sm:$0xff]
      %v919 = vld [vmem:[%s165 + $0xc1] sm:$0xff]
      %v920 = vld [vmem:[%s165 + $0xc9] sm:$0xff]
      %v921 = vld [vmem:[%s165 + $0xd1] sm:$0xff]
      %v922 = vld [vmem:[%s165 + $0xd9] sm:$0xff]
      %v923 = vld [vmem:[%s165 + $0xe1] sm:$0xff]
      %v924 = vld [vmem:[%s165 + $0xe9] sm:$0xff]
      %v925 = vld [vmem:[%s165 + $0xf1] sm:$0xff]
      %v926 = vld [vmem:[%s165 + $0xf9] sm:$0xff]
      %v927 = vld [vmem:[%s165 + $0x101] sm:$0xff]
      %v928 = vld [vmem:[%s165 + $0x109] sm:$0xff]
      %v929 = vld [vmem:[%s165 + $0x111] sm:$0xff]
      %v930 = vld [vmem:[%s165 + $0x119] sm:$0xff]
      %s931 = scalar_lea.vmem %s1, 4
      %v932 = vld [vmem:[%s931] sm:$0x7]
      %934 = vset.pattern.permute.xlu0 0
      %935 = vperm.xlu0 %934, %v895
      %v936 = vpop.permute.xlu0 %935
      %939 = vset.pattern.permute.xlu0 0
      %940 = vperm.xlu0 %939, %v896
      %v941 = vpop.permute.xlu0 %940
      %944 = vset.pattern.permute.xlu0 0
      %945 = vperm.xlu0 %944, %v897
      %v946 = vpop.permute.xlu0 %945
      %949 = vset.pattern.permute.xlu0 0
      %950 = vperm.xlu0 %949, %v898
      %v951 = vpop.permute.xlu0 %950
      %954 = vset.pattern.permute.xlu0 0
      %955 = vperm.xlu0 %954, %v899
      %v956 = vpop.permute.xlu0 %955
      %959 = vset.pattern.permute.xlu0 0
      %960 = vperm.xlu0 %959, %v900
      %v961 = vpop.permute.xlu0 %960
      %964 = vset.pattern.permute.xlu0 0
      %965 = vperm.xlu0 %964, %v901
      %v966 = vpop.permute.xlu0 %965
      %969 = vset.pattern.permute.xlu0 0
      %970 = vperm.xlu0 %969, %v902
      %v971 = vpop.permute.xlu0 %970
      %974 = vset.pattern.permute.xlu0 0
      %975 = vperm.xlu0 %974, %v903
      %v976 = vpop.permute.xlu0 %975
      %979 = vset.pattern.permute.xlu0 0
      %980 = vperm.xlu0 %979, %v904
      %v981 = vpop.permute.xlu0 %980
      %984 = vset.pattern.permute.xlu0 0
      %985 = vperm.xlu0 %984, %v905
      %v986 = vpop.permute.xlu0 %985
      %989 = vset.pattern.permute.xlu0 0
      %990 = vperm.xlu0 %989, %v906
      %v991 = vpop.permute.xlu0 %990
      %994 = vset.pattern.permute.xlu0 0
      %995 = vperm.xlu0 %994, %v907
      %v996 = vpop.permute.xlu0 %995
      %999 = vset.pattern.permute.xlu0 0
      %1000 = vperm.xlu0 %999, %v908
      %v1001 = vpop.permute.xlu0 %1000
      %1004 = vset.pattern.permute.xlu0 0
      %1005 = vperm.xlu0 %1004, %v909
      %v1006 = vpop.permute.xlu0 %1005
      %1009 = vset.pattern.permute.xlu0 0
      %1010 = vperm.xlu0 %1009, %v910
      %v1011 = vpop.permute.xlu0 %1010
      %1014 = vset.pattern.permute.xlu0 0
      %1015 = vperm.xlu0 %1014, %v911
      %v1016 = vpop.permute.xlu0 %1015
      %1019 = vset.pattern.permute.xlu0 0
      %1020 = vperm.xlu0 %1019, %v912
      %v1021 = vpop.permute.xlu0 %1020
      %1024 = vset.pattern.permute.xlu0 0
      %1025 = vperm.xlu0 %1024, %v913
      %v1026 = vpop.permute.xlu0 %1025
      %1029 = vset.pattern.permute.xlu0 0
      %1030 = vperm.xlu0 %1029, %v914
      %v1031 = vpop.permute.xlu0 %1030
      %1034 = vset.pattern.permute.xlu0 0
      %1035 = vperm.xlu0 %1034, %v915
      %v1036 = vpop.permute.xlu0 %1035
      %1039 = vset.pattern.permute.xlu0 0
      %1040 = vperm.xlu0 %1039, %v916
      %v1041 = vpop.permute.xlu0 %1040
      %1044 = vset.pattern.permute.xlu0 0
      %1045 = vperm.xlu0 %1044, %v917
      %v1046 = vpop.permute.xlu0 %1045
      %1049 = vset.pattern.permute.xlu0 0
      %1050 = vperm.xlu0 %1049, %v918
      %v1051 = vpop.permute.xlu0 %1050
      %1054 = vset.pattern.permute.xlu0 0
      %1055 = vperm.xlu0 %1054, %v919
      %v1056 = vpop.permute.xlu0 %1055
      %1059 = vset.pattern.permute.xlu0 0
      %1060 = vperm.xlu0 %1059, %v920
      %v1061 = vpop.permute.xlu0 %1060
      %1064 = vset.pattern.permute.xlu0 0
      %1065 = vperm.xlu0 %1064, %v921
      %v1066 = vpop.permute.xlu0 %1065
      %1069 = vset.pattern.permute.xlu0 0
      %1070 = vperm.xlu0 %1069, %v922
      %v1071 = vpop.permute.xlu0 %1070
      %1074 = vset.pattern.permute.xlu0 0
      %1075 = vperm.xlu0 %1074, %v923
      %v1076 = vpop.permute.xlu0 %1075
      %1079 = vset.pattern.permute.xlu0 0
      %1080 = vperm.xlu0 %1079, %v924
      %v1081 = vpop.permute.xlu0 %1080
      %1084 = vset.pattern.permute.xlu0 0
      %1085 = vperm.xlu0 %1084, %v925
      %v1086 = vpop.permute.xlu0 %1085
      %1089 = vset.pattern.permute.xlu0 0
      %1090 = vperm.xlu0 %1089, %v926
      %v1091 = vpop.permute.xlu0 %1090
      %1094 = vset.pattern.permute.xlu0 0
      %1095 = vperm.xlu0 %1094, %v927
      %v1096 = vpop.permute.xlu0 %1095
      %1099 = vset.pattern.permute.xlu0 0
      %1100 = vperm.xlu0 %1099, %v928
      %v1101 = vpop.permute.xlu0 %1100
      %1104 = vset.pattern.permute.xlu0 0
      %1105 = vperm.xlu0 %1104, %v929
      %v1106 = vpop.permute.xlu0 %1105
      %1109 = vset.pattern.permute.xlu0 0
      %1110 = vperm.xlu0 %1109, %v930
      %v1111 = vpop.permute.xlu0 %1110
      %v1113 = vperm.slane %v932, 0
      %v1114 = vmul.f32 %v936, %v1113
      %v1115 = vmul.f32 %v941, %v1113
      %v1116 = vmul.f32 %v946, %v1113
      %v1117 = vmul.f32 %v951, %v1113
      %v1118 = vmul.f32 %v956, %v1113
      %v1119 = vmul.f32 %v961, %v1113
      %v1120 = vmul.f32 %v966, %v1113
      %v1121 = vmul.f32 %v971, %v1113
      %v1122 = vmul.f32 %v976, %v1113
      %v1123 = vmul.f32 %v981, %v1113
      %v1124 = vmul.f32 %v986, %v1113
      %v1125 = vmul.f32 %v991, %v1113
      %v1126 = vmul.f32 %v996, %v1113
      %v1127 = vmul.f32 %v1001, %v1113
      %v1128 = vmul.f32 %v1006, %v1113
      %v1129 = vmul.f32 %v1011, %v1113
      %v1130 = vmul.f32 %v1016, %v1113
      %v1131 = vmul.f32 %v1021, %v1113
      %v1132 = vmul.f32 %v1026, %v1113
      %v1133 = vmul.f32 %v1031, %v1113
      %v1134 = vmul.f32 %v1036, %v1113
      %v1135 = vmul.f32 %v1041, %v1113
      %v1136 = vmul.f32 %v1046, %v1113
      %v1137 = vmul.f32 %v1051, %v1113
      %v1138 = vmul.f32 %v1056, %v1113
      %v1139 = vmul.f32 %v1061, %v1113
      %v1140 = vmul.f32 %v1066, %v1113
      %v1141 = vmul.f32 %v1071, %v1113
      %v1142 = vmul.f32 %v1076, %v1113
      %v1143 = vmul.f32 %v1081, %v1113
      %v1144 = vmul.f32 %v1086, %v1113
      %v1145 = vmul.f32 %v1091, %v1113
      %v1146 = vmul.f32 %v1096, %v1113
      %v1147 = vmul.f32 %v1101, %v1113
      %v1148 = vmul.f32 %v1106, %v1113
      %v1149 = vmul.f32 %v1111, %v1113
      %v1150 = vadd.f32 %v859, %v1114
      %v1151 = vadd.f32 %v860, %v1115
      %v1152 = vadd.f32 %v861, %v1116
      %v1153 = vadd.f32 %v862, %v1117
      %v1154 = vadd.f32 %v863, %v1118
      %v1155 = vadd.f32 %v864, %v1119
      %v1156 = vadd.f32 %v865, %v1120
      %v1157 = vadd.f32 %v866, %v1121
      %v1158 = vadd.f32 %v867, %v1122
      %v1159 = vadd.f32 %v868, %v1123
      %v1160 = vadd.f32 %v869, %v1124
      %v1161 = vadd.f32 %v870, %v1125
      %v1162 = vadd.f32 %v871, %v1126
      %v1163 = vadd.f32 %v872, %v1127
      %v1164 = vadd.f32 %v873, %v1128
      %v1165 = vadd.f32 %v874, %v1129
      %v1166 = vadd.f32 %v875, %v1130
      %v1167 = vadd.f32 %v876, %v1131
      %v1168 = vadd.f32 %v877, %v1132
      %v1169 = vadd.f32 %v878, %v1133
      %v1170 = vadd.f32 %v879, %v1134
      %v1171 = vadd.f32 %v880, %v1135
      %v1172 = vadd.f32 %v881, %v1136
      %v1173 = vadd.f32 %v882, %v1137
      %v1174 = vadd.f32 %v883, %v1138
      %v1175 = vadd.f32 %v884, %v1139
      %v1176 = vadd.f32 %v885, %v1140
      %v1177 = vadd.f32 %v886, %v1141
      %v1178 = vadd.f32 %v887, %v1142
      %v1179 = vadd.f32 %v888, %v1143
      %v1180 = vadd.f32 %v889, %v1144
      %v1181 = vadd.f32 %v890, %v1145
      %v1182 = vadd.f32 %v891, %v1146
      %v1183 = vadd.f32 %v892, %v1147
      %v1184 = vadd.f32 %v893, %v1148
      %v1185 = vadd.f32 %v894, %v1149
      %1186 = vset.pattern.permute.xlu0 1
      %1187 = vperm.xlu0 %1186, %v895
      %v1188 = vpop.permute.xlu0 %1187
      %1190 = vset.pattern.permute.xlu0 1
      %1191 = vperm.xlu0 %1190, %v896
      %v1192 = vpop.permute.xlu0 %1191
      %1194 = vset.pattern.permute.xlu0 1
      %1195 = vperm.xlu0 %1194, %v897
      %v1196 = vpop.permute.xlu0 %1195
      %1198 = vset.pattern.permute.xlu0 1
      %1199 = vperm.xlu0 %1198, %v898
      %v1200 = vpop.permute.xlu0 %1199
      %1202 = vset.pattern.permute.xlu0 1
      %1203 = vperm.xlu0 %1202, %v899
      %v1204 = vpop.permute.xlu0 %1203
      %1206 = vset.pattern.permute.xlu0 1
      %1207 = vperm.xlu0 %1206, %v900
      %v1208 = vpop.permute.xlu0 %1207
      %1210 = vset.pattern.permute.xlu0 1
      %1211 = vperm.xlu0 %1210, %v901
      %v1212 = vpop.permute.xlu0 %1211
      %1214 = vset.pattern.permute.xlu0 1
      %1215 = vperm.xlu0 %1214, %v902
      %v1216 = vpop.permute.xlu0 %1215
      %1218 = vset.pattern.permute.xlu0 1
      %1219 = vperm.xlu0 %1218, %v903
      %v1220 = vpop.permute.xlu0 %1219
      %1222 = vset.pattern.permute.xlu0 1
      %1223 = vperm.xlu0 %1222, %v904
      %v1224 = vpop.permute.xlu0 %1223
      %1226 = vset.pattern.permute.xlu0 1
      %1227 = vperm.xlu0 %1226, %v905
      %v1228 = vpop.permute.xlu0 %1227
      %1230 = vset.pattern.permute.xlu0 1
      %1231 = vperm.xlu0 %1230, %v906
      %v1232 = vpop.permute.xlu0 %1231
      %1234 = vset.pattern.permute.xlu0 1
      %1235 = vperm.xlu0 %1234, %v907
      %v1236 = vpop.permute.xlu0 %1235
      %1238 = vset.pattern.permute.xlu0 1
      %1239 = vperm.xlu0 %1238, %v908
      %v1240 = vpop.permute.xlu0 %1239
      %1242 = vset.pattern.permute.xlu0 1
      %1243 = vperm.xlu0 %1242, %v909
      %v1244 = vpop.permute.xlu0 %1243
      %1246 = vset.pattern.permute.xlu0 1
      %1247 = vperm.xlu0 %1246, %v910
      %v1248 = vpop.permute.xlu0 %1247
      %1250 = vset.pattern.permute.xlu0 1
      %1251 = vperm.xlu0 %1250, %v911
      %v1252 = vpop.permute.xlu0 %1251
      %1254 = vset.pattern.permute.xlu0 1
      %1255 = vperm.xlu0 %1254, %v912
      %v1256 = vpop.permute.xlu0 %1255
      %1258 = vset.pattern.permute.xlu0 1
      %1259 = vperm.xlu0 %1258, %v913
      %v1260 = vpop.permute.xlu0 %1259
      %1262 = vset.pattern.permute.xlu0 1
      %1263 = vperm.xlu0 %1262, %v914
      %v1264 = vpop.permute.xlu0 %1263
      %1266 = vset.pattern.permute.xlu0 1
      %1267 = vperm.xlu0 %1266, %v915
      %v1268 = vpop.permute.xlu0 %1267
      %1270 = vset.pattern.permute.xlu0 1
      %1271 = vperm.xlu0 %1270, %v916
      %v1272 = vpop.permute.xlu0 %1271
      %1274 = vset.pattern.permute.xlu0 1
      %1275 = vperm.xlu0 %1274, %v917
      %v1276 = vpop.permute.xlu0 %1275
      %1278 = vset.pattern.permute.xlu0 1
      %1279 = vperm.xlu0 %1278, %v918
      %v1280 = vpop.permute.xlu0 %1279
      %1282 = vset.pattern.permute.xlu0 1
      %1283 = vperm.xlu0 %1282, %v919
      %v1284 = vpop.permute.xlu0 %1283
      %1286 = vset.pattern.permute.xlu0 1
      %1287 = vperm.xlu0 %1286, %v920
      %v1288 = vpop.permute.xlu0 %1287
      %1290 = vset.pattern.permute.xlu0 1
      %1291 = vperm.xlu0 %1290, %v921
      %v1292 = vpop.permute.xlu0 %1291
      %1294 = vset.pattern.permute.xlu0 1
      %1295 = vperm.xlu0 %1294, %v922
      %v1296 = vpop.permute.xlu0 %1295
      %1298 = vset.pattern.permute.xlu0 1
      %1299 = vperm.xlu0 %1298, %v923
      %v1300 = vpop.permute.xlu0 %1299
      %1302 = vset.pattern.permute.xlu0 1
      %1303 = vperm.xlu0 %1302, %v924
      %v1304 = vpop.permute.xlu0 %1303
      %1306 = vset.pattern.permute.xlu0 1
      %1307 = vperm.xlu0 %1306, %v925
      %v1308 = vpop.permute.xlu0 %1307
      %1310 = vset.pattern.permute.xlu0 1
      %1311 = vperm.xlu0 %1310, %v926
      %v1312 = vpop.permute.xlu0 %1311
      %1314 = vset.pattern.permute.xlu0 1
      %1315 = vperm.xlu0 %1314, %v927
      %v1316 = vpop.permute.xlu0 %1315
      %1318 = vset.pattern.permute.xlu0 1
      %1319 = vperm.xlu0 %1318, %v928
      %v1320 = vpop.permute.xlu0 %1319
      %1322 = vset.pattern.permute.xlu0 1
      %1323 = vperm.xlu0 %1322, %v929
      %v1324 = vpop.permute.xlu0 %1323
      %1326 = vset.pattern.permute.xlu0 1
      %1327 = vperm.xlu0 %1326, %v930
      %v1328 = vpop.permute.xlu0 %1327
      %v1330 = vperm.slane %v932, 1
      %v1331 = vmul.f32 %v1188, %v1330
      %v1332 = vmul.f32 %v1192, %v1330
      %v1333 = vmul.f32 %v1196, %v1330
      %v1334 = vmul.f32 %v1200, %v1330
      %v1335 = vmul.f32 %v1204, %v1330
      %v1336 = vmul.f32 %v1208, %v1330
      %v1337 = vmul.f32 %v1212, %v1330
      %v1338 = vmul.f32 %v1216, %v1330
      %v1339 = vmul.f32 %v1220, %v1330
      %v1340 = vmul.f32 %v1224, %v1330
      %v1341 = vmul.f32 %v1228, %v1330
      %v1342 = vmul.f32 %v1232, %v1330
      %v1343 = vmul.f32 %v1236, %v1330
      %v1344 = vmul.f32 %v1240, %v1330
      %v1345 = vmul.f32 %v1244, %v1330
      %v1346 = vmul.f32 %v1248, %v1330
      %v1347 = vmul.f32 %v1252, %v1330
      %v1348 = vmul.f32 %v1256, %v1330
      %v1349 = vmul.f32 %v1260, %v1330
      %v1350 = vmul.f32 %v1264, %v1330
      %v1351 = vmul.f32 %v1268, %v1330
      %v1352 = vmul.f32 %v1272, %v1330
      %v1353 = vmul.f32 %v1276, %v1330
      %v1354 = vmul.f32 %v1280, %v1330
      %v1355 = vmul.f32 %v1284, %v1330
      %v1356 = vmul.f32 %v1288, %v1330
      %v1357 = vmul.f32 %v1292, %v1330
      %v1358 = vmul.f32 %v1296, %v1330
      %v1359 = vmul.f32 %v1300, %v1330
      %v1360 = vmul.f32 %v1304, %v1330
      %v1361 = vmul.f32 %v1308, %v1330
      %v1362 = vmul.f32 %v1312, %v1330
      %v1363 = vmul.f32 %v1316, %v1330
      %v1364 = vmul.f32 %v1320, %v1330
      %v1365 = vmul.f32 %v1324, %v1330
      %v1366 = vmul.f32 %v1328, %v1330
      %v1367 = vadd.f32 %v1150, %v1331
      %v1368 = vadd.f32 %v1151, %v1332
      %v1369 = vadd.f32 %v1152, %v1333
      %v1370 = vadd.f32 %v1153, %v1334
      %v1371 = vadd.f32 %v1154, %v1335
      %v1372 = vadd.f32 %v1155, %v1336
      %v1373 = vadd.f32 %v1156, %v1337
      %v1374 = vadd.f32 %v1157, %v1338
      %v1375 = vadd.f32 %v1158, %v1339
      %v1376 = vadd.f32 %v1159, %v1340
      %v1377 = vadd.f32 %v1160, %v1341
      %v1378 = vadd.f32 %v1161, %v1342
      %v1379 = vadd.f32 %v1162, %v1343
      %v1380 = vadd.f32 %v1163, %v1344
      %v1381 = vadd.f32 %v1164, %v1345
      %v1382 = vadd.f32 %v1165, %v1346
      %v1383 = vadd.f32 %v1166, %v1347
      %v1384 = vadd.f32 %v1167, %v1348
      %v1385 = vadd.f32 %v1168, %v1349
      %v1386 = vadd.f32 %v1169, %v1350
      %v1387 = vadd.f32 %v1170, %v1351
      %v1388 = vadd.f32 %v1171, %v1352
      %v1389 = vadd.f32 %v1172, %v1353
      %v1390 = vadd.f32 %v1173, %v1354
      %v1391 = vadd.f32 %v1174, %v1355
      %v1392 = vadd.f32 %v1175, %v1356
      %v1393 = vadd.f32 %v1176, %v1357
      %v1394 = vadd.f32 %v1177, %v1358
      %v1395 = vadd.f32 %v1178, %v1359
      %v1396 = vadd.f32 %v1179, %v1360
      %v1397 = vadd.f32 %v1180, %v1361
      %v1398 = vadd.f32 %v1181, %v1362
      %v1399 = vadd.f32 %v1182, %v1363
      %v1400 = vadd.f32 %v1183, %v1364
      %v1401 = vadd.f32 %v1184, %v1365
      %v1402 = vadd.f32 %v1185, %v1366
      %1403 = vset.pattern.permute.xlu0 2
      %1404 = vperm.xlu0 %1403, %v895
      %v1405 = vpop.permute.xlu0 %1404
      %1407 = vset.pattern.permute.xlu0 2
      %1408 = vperm.xlu0 %1407, %v896
      %v1409 = vpop.permute.xlu0 %1408
      %1411 = vset.pattern.permute.xlu0 2
      %1412 = vperm.xlu0 %1411, %v897
      %v1413 = vpop.permute.xlu0 %1412
      %1415 = vset.pattern.permute.xlu0 2
      %1416 = vperm.xlu0 %1415, %v898
      %v1417 = vpop.permute.xlu0 %1416
      %1419 = vset.pattern.permute.xlu0 2
      %1420 = vperm.xlu0 %1419, %v899
      %v1421 = vpop.permute.xlu0 %1420
      %1423 = vset.pattern.permute.xlu0 2
      %1424 = vperm.xlu0 %1423, %v900
      %v1425 = vpop.permute.xlu0 %1424
      %1427 = vset.pattern.permute.xlu0 2
      %1428 = vperm.xlu0 %1427, %v901
      %v1429 = vpop.permute.xlu0 %1428
      %1431 = vset.pattern.permute.xlu0 2
      %1432 = vperm.xlu0 %1431, %v902
      %v1433 = vpop.permute.xlu0 %1432
      %1435 = vset.pattern.permute.xlu0 2
      %1436 = vperm.xlu0 %1435, %v903
      %v1437 = vpop.permute.xlu0 %1436
      %1439 = vset.pattern.permute.xlu0 2
      %1440 = vperm.xlu0 %1439, %v904
      %v1441 = vpop.permute.xlu0 %1440
      %1443 = vset.pattern.permute.xlu0 2
      %1444 = vperm.xlu0 %1443, %v905
      %v1445 = vpop.permute.xlu0 %1444
      %1447 = vset.pattern.permute.xlu0 2
      %1448 = vperm.xlu0 %1447, %v906
      %v1449 = vpop.permute.xlu0 %1448
      %1451 = vset.pattern.permute.xlu0 2
      %1452 = vperm.xlu0 %1451, %v907
      %v1453 = vpop.permute.xlu0 %1452
      %1455 = vset.pattern.permute.xlu0 2
      %1456 = vperm.xlu0 %1455, %v908
      %v1457 = vpop.permute.xlu0 %1456
      %1459 = vset.pattern.permute.xlu0 2
      %1460 = vperm.xlu0 %1459, %v909
      %v1461 = vpop.permute.xlu0 %1460
      %1463 = vset.pattern.permute.xlu0 2
      %1464 = vperm.xlu0 %1463, %v910
      %v1465 = vpop.permute.xlu0 %1464
      %1467 = vset.pattern.permute.xlu0 2
      %1468 = vperm.xlu0 %1467, %v911
      %v1469 = vpop.permute.xlu0 %1468
      %1471 = vset.pattern.permute.xlu0 2
      %1472 = vperm.xlu0 %1471, %v912
      %v1473 = vpop.permute.xlu0 %1472
      %1475 = vset.pattern.permute.xlu0 2
      %1476 = vperm.xlu0 %1475, %v913
      %v1477 = vpop.permute.xlu0 %1476
      %1479 = vset.pattern.permute.xlu0 2
      %1480 = vperm.xlu0 %1479, %v914
      %v1481 = vpop.permute.xlu0 %1480
      %1483 = vset.pattern.permute.xlu0 2
      %1484 = vperm.xlu0 %1483, %v915
      %v1485 = vpop.permute.xlu0 %1484
      %1487 = vset.pattern.permute.xlu0 2
      %1488 = vperm.xlu0 %1487, %v916
      %v1489 = vpop.permute.xlu0 %1488
      %1491 = vset.pattern.permute.xlu0 2
      %1492 = vperm.xlu0 %1491, %v917
      %v1493 = vpop.permute.xlu0 %1492
      %1495 = vset.pattern.permute.xlu0 2
      %1496 = vperm.xlu0 %1495, %v918
      %v1497 = vpop.permute.xlu0 %1496
      %1499 = vset.pattern.permute.xlu0 2
      %1500 = vperm.xlu0 %1499, %v919
      %v1501 = vpop.permute.xlu0 %1500
      %1503 = vset.pattern.permute.xlu0 2
      %1504 = vperm.xlu0 %1503, %v920
      %v1505 = vpop.permute.xlu0 %1504
      %1507 = vset.pattern.permute.xlu0 2
      %1508 = vperm.xlu0 %1507, %v921
      %v1509 = vpop.permute.xlu0 %1508
      %1511 = vset.pattern.permute.xlu0 2
      %1512 = vperm.xlu0 %1511, %v922
      %v1513 = vpop.permute.xlu0 %1512
      %1515 = vset.pattern.permute.xlu0 2
      %1516 = vperm.xlu0 %1515, %v923
      %v1517 = vpop.permute.xlu0 %1516
      %1519 = vset.pattern.permute.xlu0 2
      %1520 = vperm.xlu0 %1519, %v924
      %v1521 = vpop.permute.xlu0 %1520
      %1523 = vset.pattern.permute.xlu0 2
      %1524 = vperm.xlu0 %1523, %v925
      %v1525 = vpop.permute.xlu0 %1524
      %1527 = vset.pattern.permute.xlu0 2
      %1528 = vperm.xlu0 %1527, %v926
      %v1529 = vpop.permute.xlu0 %1528
      %1531 = vset.pattern.permute.xlu0 2
      %1532 = vperm.xlu0 %1531, %v927
      %v1533 = vpop.permute.xlu0 %1532
      %1535 = vset.pattern.permute.xlu0 2
      %1536 = vperm.xlu0 %1535, %v928
      %v1537 = vpop.permute.xlu0 %1536
      %1539 = vset.pattern.permute.xlu0 2
      %1540 = vperm.xlu0 %1539, %v929
      %v1541 = vpop.permute.xlu0 %1540
      %1543 = vset.pattern.permute.xlu0 2
      %1544 = vperm.xlu0 %1543, %v930
      %v1545 = vpop.permute.xlu0 %1544
      %v1547 = vperm.slane %v932, 2
      %v1548 = vmul.f32 %v1405, %v1547
      %v1549 = vmul.f32 %v1409, %v1547
      %v1550 = vmul.f32 %v1413, %v1547
      %v1551 = vmul.f32 %v1417, %v1547
      %v1552 = vmul.f32 %v1421, %v1547
      %v1553 = vmul.f32 %v1425, %v1547
      %v1554 = vmul.f32 %v1429, %v1547
      %v1555 = vmul.f32 %v1433, %v1547
      %v1556 = vmul.f32 %v1437, %v1547
      %v1557 = vmul.f32 %v1441, %v1547
      %v1558 = vmul.f32 %v1445, %v1547
      %v1559 = vmul.f32 %v1449, %v1547
      %v1560 = vmul.f32 %v1453, %v1547
      %v1561 = vmul.f32 %v1457, %v1547
      %v1562 = vmul.f32 %v1461, %v1547
      %v1563 = vmul.f32 %v1465, %v1547
      %v1564 = vmul.f32 %v1469, %v1547
      %v1565 = vmul.f32 %v1473, %v1547
      %v1566 = vmul.f32 %v1477, %v1547
      %v1567 = vmul.f32 %v1481, %v1547
      %v1568 = vmul.f32 %v1485, %v1547
      %v1569 = vmul.f32 %v1489, %v1547
      %v1570 = vmul.f32 %v1493, %v1547
      %v1571 = vmul.f32 %v1497, %v1547
      %v1572 = vmul.f32 %v1501, %v1547
      %v1573 = vmul.f32 %v1505, %v1547
      %v1574 = vmul.f32 %v1509, %v1547
      %v1575 = vmul.f32 %v1513, %v1547
      %v1576 = vmul.f32 %v1517, %v1547
      %v1577 = vmul.f32 %v1521, %v1547
      %v1578 = vmul.f32 %v1525, %v1547
      %v1579 = vmul.f32 %v1529, %v1547
      %v1580 = vmul.f32 %v1533, %v1547
      %v1581 = vmul.f32 %v1537, %v1547
      %v1582 = vmul.f32 %v1541, %v1547
      %v1583 = vmul.f32 %v1545, %v1547
      %v1584 = vadd.f32 %v1367, %v1548
      %v1585 = vadd.f32 %v1368, %v1549
      %v1586 = vadd.f32 %v1369, %v1550
      %v1587 = vadd.f32 %v1370, %v1551
      %v1588 = vadd.f32 %v1371, %v1552
      %v1589 = vadd.f32 %v1372, %v1553
      %v1590 = vadd.f32 %v1373, %v1554
      %v1591 = vadd.f32 %v1374, %v1555
      %v1592 = vadd.f32 %v1375, %v1556
      %v1593 = vadd.f32 %v1376, %v1557
      %v1594 = vadd.f32 %v1377, %v1558
      %v1595 = vadd.f32 %v1378, %v1559
      %v1596 = vadd.f32 %v1379, %v1560
      %v1597 = vadd.f32 %v1380, %v1561
      %v1598 = vadd.f32 %v1381, %v1562
      %v1599 = vadd.f32 %v1382, %v1563
      %v1600 = vadd.f32 %v1383, %v1564
      %v1601 = vadd.f32 %v1384, %v1565
      %v1602 = vadd.f32 %v1385, %v1566
      %v1603 = vadd.f32 %v1386, %v1567
      %v1604 = vadd.f32 %v1387, %v1568
      %v1605 = vadd.f32 %v1388, %v1569
      %v1606 = vadd.f32 %v1389, %v1570
      %v1607 = vadd.f32 %v1390, %v1571
      %v1608 = vadd.f32 %v1391, %v1572
      %v1609 = vadd.f32 %v1392, %v1573
      %v1610 = vadd.f32 %v1393, %v1574
      %v1611 = vadd.f32 %v1394, %v1575
      %v1612 = vadd.f32 %v1395, %v1576
      %v1613 = vadd.f32 %v1396, %v1577
      %v1614 = vadd.f32 %v1397, %v1578
      %v1615 = vadd.f32 %v1398, %v1579
      %v1616 = vadd.f32 %v1399, %v1580
      %v1617 = vadd.f32 %v1400, %v1581
      %v1618 = vadd.f32 %v1401, %v1582
      %v1619 = vadd.f32 %v1402, %v1583
      %v1620 = vld [vmem:[%s165 + $0x2] sm:$0xff]
      %v1621 = vld [vmem:[%s165 + $0xa] sm:$0xff]
      %v1622 = vld [vmem:[%s165 + $0x12] sm:$0xff]
      %v1623 = vld [vmem:[%s165 + $0x1a] sm:$0xff]
      %v1624 = vld [vmem:[%s165 + $0x22] sm:$0xff]
      %v1625 = vld [vmem:[%s165 + $0x2a] sm:$0xff]
      %v1626 = vld [vmem:[%s165 + $0x32] sm:$0xff]
      %v1627 = vld [vmem:[%s165 + $0x3a] sm:$0xff]
      %v1628 = vld [vmem:[%s165 + $0x42] sm:$0xff]
      %v1629 = vld [vmem:[%s165 + $0x4a] sm:$0xff]
      %v1630 = vld [vmem:[%s165 + $0x52] sm:$0xff]
      %v1631 = vld [vmem:[%s165 + $0x5a] sm:$0xff]
      %v1632 = vld [vmem:[%s165 + $0x62] sm:$0xff]
      %v1633 = vld [vmem:[%s165 + $0x6a] sm:$0xff]
      %v1634 = vld [vmem:[%s165 + $0x72] sm:$0xff]
      %v1635 = vld [vmem:[%s165 + $0x7a] sm:$0xff]
      %v1636 = vld [vmem:[%s165 + $0x82] sm:$0xff]
      %v1637 = vld [vmem:[%s165 + $0x8a] sm:$0xff]
      %v1638 = vld [vmem:[%s165 + $0x92] sm:$0xff]
      %v1639 = vld [vmem:[%s165 + $0x9a] sm:$0xff]
      %v1640 = vld [vmem:[%s165 + $0xa2] sm:$0xff]
      %v1641 = vld [vmem:[%s165 + $0xaa] sm:$0xff]
      %v1642 = vld [vmem:[%s165 + $0xb2] sm:$0xff]
      %v1643 = vld [vmem:[%s165 + $0xba] sm:$0xff]
      %v1644 = vld [vmem:[%s165 + $0xc2] sm:$0xff]
      %v1645 = vld [vmem:[%s165 + $0xca] sm:$0xff]
      %v1646 = vld [vmem:[%s165 + $0xd2] sm:$0xff]
      %v1647 = vld [vmem:[%s165 + $0xda] sm:$0xff]
      %v1648 = vld [vmem:[%s165 + $0xe2] sm:$0xff]
      %v1649 = vld [vmem:[%s165 + $0xea] sm:$0xff]
      %v1650 = vld [vmem:[%s165 + $0xf2] sm:$0xff]
      %v1651 = vld [vmem:[%s165 + $0xfa] sm:$0xff]
      %v1652 = vld [vmem:[%s165 + $0x102] sm:$0xff]
      %v1653 = vld [vmem:[%s165 + $0x10a] sm:$0xff]
      %v1654 = vld [vmem:[%s165 + $0x112] sm:$0xff]
      %v1655 = vld [vmem:[%s165 + $0x11a] sm:$0xff]
      %s1656 = scalar_lea.vmem %s1, 8
      %v1657 = vld [vmem:[%s1656] sm:$0x7]
      %1659 = vset.pattern.permute.xlu0 0
      %1660 = vperm.xlu0 %1659, %v1620
      %v1661 = vpop.permute.xlu0 %1660
      %1664 = vset.pattern.permute.xlu0 0
      %1665 = vperm.xlu0 %1664, %v1621
      %v1666 = vpop.permute.xlu0 %1665
      %1669 = vset.pattern.permute.xlu0 0
      %1670 = vperm.xlu0 %1669, %v1622
      %v1671 = vpop.permute.xlu0 %1670
      %1674 = vset.pattern.permute.xlu0 0
      %1675 = vperm.xlu0 %1674, %v1623
      %v1676 = vpop.permute.xlu0 %1675
      %1679 = vset.pattern.permute.xlu0 0
      %1680 = vperm.xlu0 %1679, %v1624
      %v1681 = vpop.permute.xlu0 %1680
      %1684 = vset.pattern.permute.xlu0 0
      %1685 = vperm.xlu0 %1684, %v1625
      %v1686 = vpop.permute.xlu0 %1685
      %1689 = vset.pattern.permute.xlu0 0
      %1690 = vperm.xlu0 %1689, %v1626
      %v1691 = vpop.permute.xlu0 %1690
      %1694 = vset.pattern.permute.xlu0 0
      %1695 = vperm.xlu0 %1694, %v1627
      %v1696 = vpop.permute.xlu0 %1695
      %1699 = vset.pattern.permute.xlu0 0
      %1700 = vperm.xlu0 %1699, %v1628
      %v1701 = vpop.permute.xlu0 %1700
      %1704 = vset.pattern.permute.xlu0 0
      %1705 = vperm.xlu0 %1704, %v1629
      %v1706 = vpop.permute.xlu0 %1705
      %1709 = vset.pattern.permute.xlu0 0
      %1710 = vperm.xlu0 %1709, %v1630
      %v1711 = vpop.permute.xlu0 %1710
      %1714 = vset.pattern.permute.xlu0 0
      %1715 = vperm.xlu0 %1714, %v1631
      %v1716 = vpop.permute.xlu0 %1715
      %1719 = vset.pattern.permute.xlu0 0
      %1720 = vperm.xlu0 %1719, %v1632
      %v1721 = vpop.permute.xlu0 %1720
      %1724 = vset.pattern.permute.xlu0 0
      %1725 = vperm.xlu0 %1724, %v1633
      %v1726 = vpop.permute.xlu0 %1725
      %1729 = vset.pattern.permute.xlu0 0
      %1730 = vperm.xlu0 %1729, %v1634
      %v1731 = vpop.permute.xlu0 %1730
      %1734 = vset.pattern.permute.xlu0 0
      %1735 = vperm.xlu0 %1734, %v1635
      %v1736 = vpop.permute.xlu0 %1735
      %1739 = vset.pattern.permute.xlu0 0
      %1740 = vperm.xlu0 %1739, %v1636
      %v1741 = vpop.permute.xlu0 %1740
      %1744 = vset.pattern.permute.xlu0 0
      %1745 = vperm.xlu0 %1744, %v1637
      %v1746 = vpop.permute.xlu0 %1745
      %1749 = vset.pattern.permute.xlu0 0
      %1750 = vperm.xlu0 %1749, %v1638
      %v1751 = vpop.permute.xlu0 %1750
      %1754 = vset.pattern.permute.xlu0 0
      %1755 = vperm.xlu0 %1754, %v1639
      %v1756 = vpop.permute.xlu0 %1755
      %1759 = vset.pattern.permute.xlu0 0
      %1760 = vperm.xlu0 %1759, %v1640
      %v1761 = vpop.permute.xlu0 %1760
      %1764 = vset.pattern.permute.xlu0 0
      %1765 = vperm.xlu0 %1764, %v1641
      %v1766 = vpop.permute.xlu0 %1765
      %1769 = vset.pattern.permute.xlu0 0
      %1770 = vperm.xlu0 %1769, %v1642
      %v1771 = vpop.permute.xlu0 %1770
      %1774 = vset.pattern.permute.xlu0 0
      %1775 = vperm.xlu0 %1774, %v1643
      %v1776 = vpop.permute.xlu0 %1775
      %1779 = vset.pattern.permute.xlu0 0
      %1780 = vperm.xlu0 %1779, %v1644
      %v1781 = vpop.permute.xlu0 %1780
      %1784 = vset.pattern.permute.xlu0 0
      %1785 = vperm.xlu0 %1784, %v1645
      %v1786 = vpop.permute.xlu0 %1785
      %1789 = vset.pattern.permute.xlu0 0
      %1790 = vperm.xlu0 %1789, %v1646
      %v1791 = vpop.permute.xlu0 %1790
      %1794 = vset.pattern.permute.xlu0 0
      %1795 = vperm.xlu0 %1794, %v1647
      %v1796 = vpop.permute.xlu0 %1795
      %1799 = vset.pattern.permute.xlu0 0
      %1800 = vperm.xlu0 %1799, %v1648
      %v1801 = vpop.permute.xlu0 %1800
      %1804 = vset.pattern.permute.xlu0 0
      %1805 = vperm.xlu0 %1804, %v1649
      %v1806 = vpop.permute.xlu0 %1805
      %1809 = vset.pattern.permute.xlu0 0
      %1810 = vperm.xlu0 %1809, %v1650
      %v1811 = vpop.permute.xlu0 %1810
      %1814 = vset.pattern.permute.xlu0 0
      %1815 = vperm.xlu0 %1814, %v1651
      %v1816 = vpop.permute.xlu0 %1815
      %1819 = vset.pattern.permute.xlu0 0
      %1820 = vperm.xlu0 %1819, %v1652
      %v1821 = vpop.permute.xlu0 %1820
      %1824 = vset.pattern.permute.xlu0 0
      %1825 = vperm.xlu0 %1824, %v1653
      %v1826 = vpop.permute.xlu0 %1825
      %1829 = vset.pattern.permute.xlu0 0
      %1830 = vperm.xlu0 %1829, %v1654
      %v1831 = vpop.permute.xlu0 %1830
      %1834 = vset.pattern.permute.xlu0 0
      %1835 = vperm.xlu0 %1834, %v1655
      %v1836 = vpop.permute.xlu0 %1835
      %v1838 = vperm.slane %v1657, 0
      %v1839 = vmul.f32 %v1661, %v1838
      %v1840 = vmul.f32 %v1666, %v1838
      %v1841 = vmul.f32 %v1671, %v1838
      %v1842 = vmul.f32 %v1676, %v1838
      %v1843 = vmul.f32 %v1681, %v1838
      %v1844 = vmul.f32 %v1686, %v1838
      %v1845 = vmul.f32 %v1691, %v1838
      %v1846 = vmul.f32 %v1696, %v1838
      %v1847 = vmul.f32 %v1701, %v1838
      %v1848 = vmul.f32 %v1706, %v1838
      %v1849 = vmul.f32 %v1711, %v1838
      %v1850 = vmul.f32 %v1716, %v1838
      %v1851 = vmul.f32 %v1721, %v1838
      %v1852 = vmul.f32 %v1726, %v1838
      %v1853 = vmul.f32 %v1731, %v1838
      %v1854 = vmul.f32 %v1736, %v1838
      %v1855 = vmul.f32 %v1741, %v1838
      %v1856 = vmul.f32 %v1746, %v1838
      %v1857 = vmul.f32 %v1751, %v1838
      %v1858 = vmul.f32 %v1756, %v1838
      %v1859 = vmul.f32 %v1761, %v1838
      %v1860 = vmul.f32 %v1766, %v1838
      %v1861 = vmul.f32 %v1771, %v1838
      %v1862 = vmul.f32 %v1776, %v1838
      %v1863 = vmul.f32 %v1781, %v1838
      %v1864 = vmul.f32 %v1786, %v1838
      %v1865 = vmul.f32 %v1791, %v1838
      %v1866 = vmul.f32 %v1796, %v1838
      %v1867 = vmul.f32 %v1801, %v1838
      %v1868 = vmul.f32 %v1806, %v1838
      %v1869 = vmul.f32 %v1811, %v1838
      %v1870 = vmul.f32 %v1816, %v1838
      %v1871 = vmul.f32 %v1821, %v1838
      %v1872 = vmul.f32 %v1826, %v1838
      %v1873 = vmul.f32 %v1831, %v1838
      %v1874 = vmul.f32 %v1836, %v1838
      %v1875 = vadd.f32 %v1584, %v1839
      %v1876 = vadd.f32 %v1585, %v1840
      %v1877 = vadd.f32 %v1586, %v1841
      %v1878 = vadd.f32 %v1587, %v1842
      %v1879 = vadd.f32 %v1588, %v1843
      %v1880 = vadd.f32 %v1589, %v1844
      %v1881 = vadd.f32 %v1590, %v1845
      %v1882 = vadd.f32 %v1591, %v1846
      %v1883 = vadd.f32 %v1592, %v1847
      %v1884 = vadd.f32 %v1593, %v1848
      %v1885 = vadd.f32 %v1594, %v1849
      %v1886 = vadd.f32 %v1595, %v1850
      %v1887 = vadd.f32 %v1596, %v1851
      %v1888 = vadd.f32 %v1597, %v1852
      %v1889 = vadd.f32 %v1598, %v1853
      %v1890 = vadd.f32 %v1599, %v1854
      %v1891 = vadd.f32 %v1600, %v1855
      %v1892 = vadd.f32 %v1601, %v1856
      %v1893 = vadd.f32 %v1602, %v1857
      %v1894 = vadd.f32 %v1603, %v1858
      %v1895 = vadd.f32 %v1604, %v1859
      %v1896 = vadd.f32 %v1605, %v1860
      %v1897 = vadd.f32 %v1606, %v1861
      %v1898 = vadd.f32 %v1607, %v1862
      %v1899 = vadd.f32 %v1608, %v1863
      %v1900 = vadd.f32 %v1609, %v1864
      %v1901 = vadd.f32 %v1610, %v1865
      %v1902 = vadd.f32 %v1611, %v1866
      %v1903 = vadd.f32 %v1612, %v1867
      %v1904 = vadd.f32 %v1613, %v1868
      %v1905 = vadd.f32 %v1614, %v1869
      %v1906 = vadd.f32 %v1615, %v1870
      %v1907 = vadd.f32 %v1616, %v1871
      %v1908 = vadd.f32 %v1617, %v1872
      %v1909 = vadd.f32 %v1618, %v1873
      %v1910 = vadd.f32 %v1619, %v1874
      %1911 = vset.pattern.permute.xlu0 1
      %1912 = vperm.xlu0 %1911, %v1620
      %v1913 = vpop.permute.xlu0 %1912
      %1915 = vset.pattern.permute.xlu0 1
      %1916 = vperm.xlu0 %1915, %v1621
      %v1917 = vpop.permute.xlu0 %1916
      %1919 = vset.pattern.permute.xlu0 1
      %1920 = vperm.xlu0 %1919, %v1622
      %v1921 = vpop.permute.xlu0 %1920
      %1923 = vset.pattern.permute.xlu0 1
      %1924 = vperm.xlu0 %1923, %v1623
      %v1925 = vpop.permute.xlu0 %1924
      %1927 = vset.pattern.permute.xlu0 1
      %1928 = vperm.xlu0 %1927, %v1624
      %v1929 = vpop.permute.xlu0 %1928
      %1931 = vset.pattern.permute.xlu0 1
      %1932 = vperm.xlu0 %1931, %v1625
      %v1933 = vpop.permute.xlu0 %1932
      %1935 = vset.pattern.permute.xlu0 1
      %1936 = vperm.xlu0 %1935, %v1626
      %v1937 = vpop.permute.xlu0 %1936
      %1939 = vset.pattern.permute.xlu0 1
      %1940 = vperm.xlu0 %1939, %v1627
      %v1941 = vpop.permute.xlu0 %1940
      %1943 = vset.pattern.permute.xlu0 1
      %1944 = vperm.xlu0 %1943, %v1628
      %v1945 = vpop.permute.xlu0 %1944
      %1947 = vset.pattern.permute.xlu0 1
      %1948 = vperm.xlu0 %1947, %v1629
      %v1949 = vpop.permute.xlu0 %1948
      %1951 = vset.pattern.permute.xlu0 1
      %1952 = vperm.xlu0 %1951, %v1630
      %v1953 = vpop.permute.xlu0 %1952
      %1955 = vset.pattern.permute.xlu0 1
      %1956 = vperm.xlu0 %1955, %v1631
      %v1957 = vpop.permute.xlu0 %1956
      %1959 = vset.pattern.permute.xlu0 1
      %1960 = vperm.xlu0 %1959, %v1632
      %v1961 = vpop.permute.xlu0 %1960
      %1963 = vset.pattern.permute.xlu0 1
      %1964 = vperm.xlu0 %1963, %v1633
      %v1965 = vpop.permute.xlu0 %1964
      %1967 = vset.pattern.permute.xlu0 1
      %1968 = vperm.xlu0 %1967, %v1634
      %v1969 = vpop.permute.xlu0 %1968
      %1971 = vset.pattern.permute.xlu0 1
      %1972 = vperm.xlu0 %1971, %v1635
      %v1973 = vpop.permute.xlu0 %1972
      %1975 = vset.pattern.permute.xlu0 1
      %1976 = vperm.xlu0 %1975, %v1636
      %v1977 = vpop.permute.xlu0 %1976
      %1979 = vset.pattern.permute.xlu0 1
      %1980 = vperm.xlu0 %1979, %v1637
      %v1981 = vpop.permute.xlu0 %1980
      %1983 = vset.pattern.permute.xlu0 1
      %1984 = vperm.xlu0 %1983, %v1638
      %v1985 = vpop.permute.xlu0 %1984
      %1987 = vset.pattern.permute.xlu0 1
      %1988 = vperm.xlu0 %1987, %v1639
      %v1989 = vpop.permute.xlu0 %1988
      %1991 = vset.pattern.permute.xlu0 1
      %1992 = vperm.xlu0 %1991, %v1640
      %v1993 = vpop.permute.xlu0 %1992
      %1995 = vset.pattern.permute.xlu0 1
      %1996 = vperm.xlu0 %1995, %v1641
      %v1997 = vpop.permute.xlu0 %1996
      %1999 = vset.pattern.permute.xlu0 1
      %2000 = vperm.xlu0 %1999, %v1642
      %v2001 = vpop.permute.xlu0 %2000
      %2003 = vset.pattern.permute.xlu0 1
      %2004 = vperm.xlu0 %2003, %v1643
      %v2005 = vpop.permute.xlu0 %2004
      %2007 = vset.pattern.permute.xlu0 1
      %2008 = vperm.xlu0 %2007, %v1644
      %v2009 = vpop.permute.xlu0 %2008
      %2011 = vset.pattern.permute.xlu0 1
      %2012 = vperm.xlu0 %2011, %v1645
      %v2013 = vpop.permute.xlu0 %2012
      %2015 = vset.pattern.permute.xlu0 1
      %2016 = vperm.xlu0 %2015, %v1646
      %v2017 = vpop.permute.xlu0 %2016
      %2019 = vset.pattern.permute.xlu0 1
      %2020 = vperm.xlu0 %2019, %v1647
      %v2021 = vpop.permute.xlu0 %2020
      %2023 = vset.pattern.permute.xlu0 1
      %2024 = vperm.xlu0 %2023, %v1648
      %v2025 = vpop.permute.xlu0 %2024
      %2027 = vset.pattern.permute.xlu0 1
      %2028 = vperm.xlu0 %2027, %v1649
      %v2029 = vpop.permute.xlu0 %2028
      %2031 = vset.pattern.permute.xlu0 1
      %2032 = vperm.xlu0 %2031, %v1650
      %v2033 = vpop.permute.xlu0 %2032
      %2035 = vset.pattern.permute.xlu0 1
      %2036 = vperm.xlu0 %2035, %v1651
      %v2037 = vpop.permute.xlu0 %2036
      %2039 = vset.pattern.permute.xlu0 1
      %2040 = vperm.xlu0 %2039, %v1652
      %v2041 = vpop.permute.xlu0 %2040
      %2043 = vset.pattern.permute.xlu0 1
      %2044 = vperm.xlu0 %2043, %v1653
      %v2045 = vpop.permute.xlu0 %2044
      %2047 = vset.pattern.permute.xlu0 1
      %2048 = vperm.xlu0 %2047, %v1654
      %v2049 = vpop.permute.xlu0 %2048
      %2051 = vset.pattern.permute.xlu0 1
      %2052 = vperm.xlu0 %2051, %v1655
      %v2053 = vpop.permute.xlu0 %2052
      %v2055 = vperm.slane %v1657, 1
      %v2056 = vmul.f32 %v1913, %v2055
      %v2057 = vmul.f32 %v1917, %v2055
      %v2058 = vmul.f32 %v1921, %v2055
      %v2059 = vmul.f32 %v1925, %v2055
      %v2060 = vmul.f32 %v1929, %v2055
      %v2061 = vmul.f32 %v1933, %v2055
      %v2062 = vmul.f32 %v1937, %v2055
      %v2063 = vmul.f32 %v1941, %v2055
      %v2064 = vmul.f32 %v1945, %v2055
      %v2065 = vmul.f32 %v1949, %v2055
      %v2066 = vmul.f32 %v1953, %v2055
      %v2067 = vmul.f32 %v1957, %v2055
      %v2068 = vmul.f32 %v1961, %v2055
      %v2069 = vmul.f32 %v1965, %v2055
      %v2070 = vmul.f32 %v1969, %v2055
      %v2071 = vmul.f32 %v1973, %v2055
      %v2072 = vmul.f32 %v1977, %v2055
      %v2073 = vmul.f32 %v1981, %v2055
      %v2074 = vmul.f32 %v1985, %v2055
      %v2075 = vmul.f32 %v1989, %v2055
      %v2076 = vmul.f32 %v1993, %v2055
      %v2077 = vmul.f32 %v1997, %v2055
      %v2078 = vmul.f32 %v2001, %v2055
      %v2079 = vmul.f32 %v2005, %v2055
      %v2080 = vmul.f32 %v2009, %v2055
      %v2081 = vmul.f32 %v2013, %v2055
      %v2082 = vmul.f32 %v2017, %v2055
      %v2083 = vmul.f32 %v2021, %v2055
      %v2084 = vmul.f32 %v2025, %v2055
      %v2085 = vmul.f32 %v2029, %v2055
      %v2086 = vmul.f32 %v2033, %v2055
      %v2087 = vmul.f32 %v2037, %v2055
      %v2088 = vmul.f32 %v2041, %v2055
      %v2089 = vmul.f32 %v2045, %v2055
      %v2090 = vmul.f32 %v2049, %v2055
      %v2091 = vmul.f32 %v2053, %v2055
      %v2092 = vadd.f32 %v1875, %v2056
      %v2093 = vadd.f32 %v1876, %v2057
      %v2094 = vadd.f32 %v1877, %v2058
      %v2095 = vadd.f32 %v1878, %v2059
      %v2096 = vadd.f32 %v1879, %v2060
      %v2097 = vadd.f32 %v1880, %v2061
      %v2098 = vadd.f32 %v1881, %v2062
      %v2099 = vadd.f32 %v1882, %v2063
      %v2100 = vadd.f32 %v1883, %v2064
      %v2101 = vadd.f32 %v1884, %v2065
      %v2102 = vadd.f32 %v1885, %v2066
      %v2103 = vadd.f32 %v1886, %v2067
      %v2104 = vadd.f32 %v1887, %v2068
      %v2105 = vadd.f32 %v1888, %v2069
      %v2106 = vadd.f32 %v1889, %v2070
      %v2107 = vadd.f32 %v1890, %v2071
      %v2108 = vadd.f32 %v1891, %v2072
      %v2109 = vadd.f32 %v1892, %v2073
      %v2110 = vadd.f32 %v1893, %v2074
      %v2111 = vadd.f32 %v1894, %v2075
      %v2112 = vadd.f32 %v1895, %v2076
      %v2113 = vadd.f32 %v1896, %v2077
      %v2114 = vadd.f32 %v1897, %v2078
      %v2115 = vadd.f32 %v1898, %v2079
      %v2116 = vadd.f32 %v1899, %v2080
      %v2117 = vadd.f32 %v1900, %v2081
      %v2118 = vadd.f32 %v1901, %v2082
      %v2119 = vadd.f32 %v1902, %v2083
      %v2120 = vadd.f32 %v1903, %v2084
      %v2121 = vadd.f32 %v1904, %v2085
      %v2122 = vadd.f32 %v1905, %v2086
      %v2123 = vadd.f32 %v1906, %v2087
      %v2124 = vadd.f32 %v1907, %v2088
      %v2125 = vadd.f32 %v1908, %v2089
      %v2126 = vadd.f32 %v1909, %v2090
      %v2127 = vadd.f32 %v1910, %v2091
      %2128 = vset.pattern.permute.xlu0 2
      %2129 = vperm.xlu0 %2128, %v1620
      %v2130 = vpop.permute.xlu0 %2129
      %2132 = vset.pattern.permute.xlu0 2
      %2133 = vperm.xlu0 %2132, %v1621
      %v2134 = vpop.permute.xlu0 %2133
      %2136 = vset.pattern.permute.xlu0 2
      %2137 = vperm.xlu0 %2136, %v1622
      %v2138 = vpop.permute.xlu0 %2137
      %2140 = vset.pattern.permute.xlu0 2
      %2141 = vperm.xlu0 %2140, %v1623
      %v2142 = vpop.permute.xlu0 %2141
      %2144 = vset.pattern.permute.xlu0 2
      %2145 = vperm.xlu0 %2144, %v1624
      %v2146 = vpop.permute.xlu0 %2145
      %2148 = vset.pattern.permute.xlu0 2
      %2149 = vperm.xlu0 %2148, %v1625
      %v2150 = vpop.permute.xlu0 %2149
      %2152 = vset.pattern.permute.xlu0 2
      %2153 = vperm.xlu0 %2152, %v1626
      %v2154 = vpop.permute.xlu0 %2153
      %2156 = vset.pattern.permute.xlu0 2
      %2157 = vperm.xlu0 %2156, %v1627
      %v2158 = vpop.permute.xlu0 %2157
      %2160 = vset.pattern.permute.xlu0 2
      %2161 = vperm.xlu0 %2160, %v1628
      %v2162 = vpop.permute.xlu0 %2161
      %2164 = vset.pattern.permute.xlu0 2
      %2165 = vperm.xlu0 %2164, %v1629
      %v2166 = vpop.permute.xlu0 %2165
      %2168 = vset.pattern.permute.xlu0 2
      %2169 = vperm.xlu0 %2168, %v1630
      %v2170 = vpop.permute.xlu0 %2169
      %2172 = vset.pattern.permute.xlu0 2
      %2173 = vperm.xlu0 %2172, %v1631
      %v2174 = vpop.permute.xlu0 %2173
      %2176 = vset.pattern.permute.xlu0 2
      %2177 = vperm.xlu0 %2176, %v1632
      %v2178 = vpop.permute.xlu0 %2177
      %2180 = vset.pattern.permute.xlu0 2
      %2181 = vperm.xlu0 %2180, %v1633
      %v2182 = vpop.permute.xlu0 %2181
      %2184 = vset.pattern.permute.xlu0 2
      %2185 = vperm.xlu0 %2184, %v1634
      %v2186 = vpop.permute.xlu0 %2185
      %2188 = vset.pattern.permute.xlu0 2
      %2189 = vperm.xlu0 %2188, %v1635
      %v2190 = vpop.permute.xlu0 %2189
      %2192 = vset.pattern.permute.xlu0 2
      %2193 = vperm.xlu0 %2192, %v1636
      %v2194 = vpop.permute.xlu0 %2193
      %2196 = vset.pattern.permute.xlu0 2
      %2197 = vperm.xlu0 %2196, %v1637
      %v2198 = vpop.permute.xlu0 %2197
      %2200 = vset.pattern.permute.xlu0 2
      %2201 = vperm.xlu0 %2200, %v1638
      %v2202 = vpop.permute.xlu0 %2201
      %2204 = vset.pattern.permute.xlu0 2
      %2205 = vperm.xlu0 %2204, %v1639
      %v2206 = vpop.permute.xlu0 %2205
      %2208 = vset.pattern.permute.xlu0 2
      %2209 = vperm.xlu0 %2208, %v1640
      %v2210 = vpop.permute.xlu0 %2209
      %2212 = vset.pattern.permute.xlu0 2
      %2213 = vperm.xlu0 %2212, %v1641
      %v2214 = vpop.permute.xlu0 %2213
      %2216 = vset.pattern.permute.xlu0 2
      %2217 = vperm.xlu0 %2216, %v1642
      %v2218 = vpop.permute.xlu0 %2217
      %2220 = vset.pattern.permute.xlu0 2
      %2221 = vperm.xlu0 %2220, %v1643
      %v2222 = vpop.permute.xlu0 %2221
      %2224 = vset.pattern.permute.xlu0 2
      %2225 = vperm.xlu0 %2224, %v1644
      %v2226 = vpop.permute.xlu0 %2225
      %2228 = vset.pattern.permute.xlu0 2
      %2229 = vperm.xlu0 %2228, %v1645
      %v2230 = vpop.permute.xlu0 %2229
      %2232 = vset.pattern.permute.xlu0 2
      %2233 = vperm.xlu0 %2232, %v1646
      %v2234 = vpop.permute.xlu0 %2233
      %2236 = vset.pattern.permute.xlu0 2
      %2237 = vperm.xlu0 %2236, %v1647
      %v2238 = vpop.permute.xlu0 %2237
      %2240 = vset.pattern.permute.xlu0 2
      %2241 = vperm.xlu0 %2240, %v1648
      %v2242 = vpop.permute.xlu0 %2241
      %2244 = vset.pattern.permute.xlu0 2
      %2245 = vperm.xlu0 %2244, %v1649
      %v2246 = vpop.permute.xlu0 %2245
      %2248 = vset.pattern.permute.xlu0 2
      %2249 = vperm.xlu0 %2248, %v1650
      %v2250 = vpop.permute.xlu0 %2249
      %2252 = vset.pattern.permute.xlu0 2
      %2253 = vperm.xlu0 %2252, %v1651
      %v2254 = vpop.permute.xlu0 %2253
      %2256 = vset.pattern.permute.xlu0 2
      %2257 = vperm.xlu0 %2256, %v1652
      %v2258 = vpop.permute.xlu0 %2257
      %2260 = vset.pattern.permute.xlu0 2
      %2261 = vperm.xlu0 %2260, %v1653
      %v2262 = vpop.permute.xlu0 %2261
      %2264 = vset.pattern.permute.xlu0 2
      %2265 = vperm.xlu0 %2264, %v1654
      %v2266 = vpop.permute.xlu0 %2265
      %2268 = vset.pattern.permute.xlu0 2
      %2269 = vperm.xlu0 %2268, %v1655
      %v2270 = vpop.permute.xlu0 %2269
      %v2272 = vperm.slane %v1657, 2
      %v2273 = vmul.f32 %v2130, %v2272
      %v2274 = vmul.f32 %v2134, %v2272
      %v2275 = vmul.f32 %v2138, %v2272
      %v2276 = vmul.f32 %v2142, %v2272
      %v2277 = vmul.f32 %v2146, %v2272
      %v2278 = vmul.f32 %v2150, %v2272
      %v2279 = vmul.f32 %v2154, %v2272
      %v2280 = vmul.f32 %v2158, %v2272
      %v2281 = vmul.f32 %v2162, %v2272
      %v2282 = vmul.f32 %v2166, %v2272
      %v2283 = vmul.f32 %v2170, %v2272
      %v2284 = vmul.f32 %v2174, %v2272
      %v2285 = vmul.f32 %v2178, %v2272
      %v2286 = vmul.f32 %v2182, %v2272
      %v2287 = vmul.f32 %v2186, %v2272
      %v2288 = vmul.f32 %v2190, %v2272
      %v2289 = vmul.f32 %v2194, %v2272
      %v2290 = vmul.f32 %v2198, %v2272
      %v2291 = vmul.f32 %v2202, %v2272
      %v2292 = vmul.f32 %v2206, %v2272
      %v2293 = vmul.f32 %v2210, %v2272
      %v2294 = vmul.f32 %v2214, %v2272
      %v2295 = vmul.f32 %v2218, %v2272
      %v2296 = vmul.f32 %v2222, %v2272
      %v2297 = vmul.f32 %v2226, %v2272
      %v2298 = vmul.f32 %v2230, %v2272
      %v2299 = vmul.f32 %v2234, %v2272
      %v2300 = vmul.f32 %v2238, %v2272
      %v2301 = vmul.f32 %v2242, %v2272
      %v2302 = vmul.f32 %v2246, %v2272
      %v2303 = vmul.f32 %v2250, %v2272
      %v2304 = vmul.f32 %v2254, %v2272
      %v2305 = vmul.f32 %v2258, %v2272
      %v2306 = vmul.f32 %v2262, %v2272
      %v2307 = vmul.f32 %v2266, %v2272
      %v2308 = vmul.f32 %v2270, %v2272
      %v2309 = vadd.f32 %v2092, %v2273
      %v2310 = vadd.f32 %v2093, %v2274
      %v2311 = vadd.f32 %v2094, %v2275
      %v2312 = vadd.f32 %v2095, %v2276
      %v2313 = vadd.f32 %v2096, %v2277
      %v2314 = vadd.f32 %v2097, %v2278
      %v2315 = vadd.f32 %v2098, %v2279
      %v2316 = vadd.f32 %v2099, %v2280
      %v2317 = vadd.f32 %v2100, %v2281
      %v2318 = vadd.f32 %v2101, %v2282
      %v2319 = vadd.f32 %v2102, %v2283
      %v2320 = vadd.f32 %v2103, %v2284
      %v2321 = vadd.f32 %v2104, %v2285
      %v2322 = vadd.f32 %v2105, %v2286
      %v2323 = vadd.f32 %v2106, %v2287
      %v2324 = vadd.f32 %v2107, %v2288
      %v2325 = vadd.f32 %v2108, %v2289
      %v2326 = vadd.f32 %v2109, %v2290
      %v2327 = vadd.f32 %v2110, %v2291
      %v2328 = vadd.f32 %v2111, %v2292
      %v2329 = vadd.f32 %v2112, %v2293
      %v2330 = vadd.f32 %v2113, %v2294
      %v2331 = vadd.f32 %v2114, %v2295
      %v2332 = vadd.f32 %v2115, %v2296
      %v2333 = vadd.f32 %v2116, %v2297
      %v2334 = vadd.f32 %v2117, %v2298
      %v2335 = vadd.f32 %v2118, %v2299
      %v2336 = vadd.f32 %v2119, %v2300
      %v2337 = vadd.f32 %v2120, %v2301
      %v2338 = vadd.f32 %v2121, %v2302
      %v2339 = vadd.f32 %v2122, %v2303
      %v2340 = vadd.f32 %v2123, %v2304
      %v2341 = vadd.f32 %v2124, %v2305
      %v2342 = vadd.f32 %v2125, %v2306
      %v2343 = vadd.f32 %v2126, %v2307
      %v2344 = vadd.f32 %v2127, %v2308
      %v2345 = vld [vmem:[%s165 + $0x12] sm:$0xff]
      %v2346 = vld [vmem:[%s165 + $0x1a] sm:$0xff]
      %v2347 = vld [vmem:[%s165 + $0x22] sm:$0xff]
      %v2348 = vld [vmem:[%s165 + $0x2a] sm:$0xff]
      %v2349 = vld [vmem:[%s165 + $0x32] sm:$0xff]
      %v2350 = vld [vmem:[%s165 + $0x3a] sm:$0xff]
      %v2351 = vld [vmem:[%s165 + $0x42] sm:$0xff]
      %v2352 = vld [vmem:[%s165 + $0x4a] sm:$0xff]
      %v2353 = vld [vmem:[%s165 + $0x52] sm:$0xff]
      %v2354 = vld [vmem:[%s165 + $0x5a] sm:$0xff]
      %v2355 = vld [vmem:[%s165 + $0x62] sm:$0xff]
      %v2356 = vld [vmem:[%s165 + $0x6a] sm:$0xff]
      %v2357 = vld [vmem:[%s165 + $0x72] sm:$0xff]
      %v2358 = vld [vmem:[%s165 + $0x7a] sm:$0xff]
      %v2359 = vld [vmem:[%s165 + $0x82] sm:$0xff]
      %v2360 = vld [vmem:[%s165 + $0x8a] sm:$0xff]
      %v2361 = vld [vmem:[%s165 + $0x92] sm:$0xff]
      %v2362 = vld [vmem:[%s165 + $0x9a] sm:$0xff]
      %v2363 = vld [vmem:[%s165 + $0xa2] sm:$0xff]
      %v2364 = vld [vmem:[%s165 + $0xaa] sm:$0xff]
      %v2365 = vld [vmem:[%s165 + $0xb2] sm:$0xff]
      %v2366 = vld [vmem:[%s165 + $0xba] sm:$0xff]
      %v2367 = vld [vmem:[%s165 + $0xc2] sm:$0xff]
      %v2368 = vld [vmem:[%s165 + $0xca] sm:$0xff]
      %v2369 = vld [vmem:[%s165 + $0xd2] sm:$0xff]
      %v2370 = vld [vmem:[%s165 + $0xda] sm:$0xff]
      %v2371 = vld [vmem:[%s165 + $0xe2] sm:$0xff]
      %v2372 = vld [vmem:[%s165 + $0xea] sm:$0xff]
      %v2373 = vld [vmem:[%s165 + $0xf2] sm:$0xff]
      %v2374 = vld [vmem:[%s165 + $0xfa] sm:$0xff]
      %v2375 = vld [vmem:[%s165 + $0x102] sm:$0xff]
      %v2376 = vld [vmem:[%s165 + $0x10a] sm:$0xff]
      %v2377 = vld [vmem:[%s165 + $0x112] sm:$0xff]
      %v2378 = vld [vmem:[%s165 + $0x11a] sm:$0xff]
      %v2379 = vld [vmem:[%s165 + $0x122] sm:$0xff]
      %v2380 = vld [vmem:[%s165 + $0x12a] sm:$0xff]
      %s2381 = scalar_lea.vmem %s1, 12
      %v2382 = vld [vmem:[%s2381] sm:$0x7]
      %2384 = vset.pattern.permute.xlu0 0
      %2385 = vperm.xlu0 %2384, %v2345
      %v2386 = vpop.permute.xlu0 %2385
      %2389 = vset.pattern.permute.xlu0 0
      %2390 = vperm.xlu0 %2389, %v2346
      %v2391 = vpop.permute.xlu0 %2390
      %2394 = vset.pattern.permute.xlu0 0
      %2395 = vperm.xlu0 %2394, %v2347
      %v2396 = vpop.permute.xlu0 %2395
      %2399 = vset.pattern.permute.xlu0 0
      %2400 = vperm.xlu0 %2399, %v2348
      %v2401 = vpop.permute.xlu0 %2400
      %2404 = vset.pattern.permute.xlu0 0
      %2405 = vperm.xlu0 %2404, %v2349
      %v2406 = vpop.permute.xlu0 %2405
      %2409 = vset.pattern.permute.xlu0 0
      %2410 = vperm.xlu0 %2409, %v2350
      %v2411 = vpop.permute.xlu0 %2410
      %2414 = vset.pattern.permute.xlu0 0
      %2415 = vperm.xlu0 %2414, %v2351
      %v2416 = vpop.permute.xlu0 %2415
      %2419 = vset.pattern.permute.xlu0 0
      %2420 = vperm.xlu0 %2419, %v2352
      %v2421 = vpop.permute.xlu0 %2420
      %2424 = vset.pattern.permute.xlu0 0
      %2425 = vperm.xlu0 %2424, %v2353
      %v2426 = vpop.permute.xlu0 %2425
      %2429 = vset.pattern.permute.xlu0 0
      %2430 = vperm.xlu0 %2429, %v2354
      %v2431 = vpop.permute.xlu0 %2430
      %2434 = vset.pattern.permute.xlu0 0
      %2435 = vperm.xlu0 %2434, %v2355
      %v2436 = vpop.permute.xlu0 %2435
      %2439 = vset.pattern.permute.xlu0 0
      %2440 = vperm.xlu0 %2439, %v2356
      %v2441 = vpop.permute.xlu0 %2440
      %2444 = vset.pattern.permute.xlu0 0
      %2445 = vperm.xlu0 %2444, %v2357
      %v2446 = vpop.permute.xlu0 %2445
      %2449 = vset.pattern.permute.xlu0 0
      %2450 = vperm.xlu0 %2449, %v2358
      %v2451 = vpop.permute.xlu0 %2450
      %2454 = vset.pattern.permute.xlu0 0
      %2455 = vperm.xlu0 %2454, %v2359
      %v2456 = vpop.permute.xlu0 %2455
      %2459 = vset.pattern.permute.xlu0 0
      %2460 = vperm.xlu0 %2459, %v2360
      %v2461 = vpop.permute.xlu0 %2460
      %2464 = vset.pattern.permute.xlu0 0
      %2465 = vperm.xlu0 %2464, %v2361
      %v2466 = vpop.permute.xlu0 %2465
      %2469 = vset.pattern.permute.xlu0 0
      %2470 = vperm.xlu0 %2469, %v2362
      %v2471 = vpop.permute.xlu0 %2470
      %2474 = vset.pattern.permute.xlu0 0
      %2475 = vperm.xlu0 %2474, %v2363
      %v2476 = vpop.permute.xlu0 %2475
      %2479 = vset.pattern.permute.xlu0 0
      %2480 = vperm.xlu0 %2479, %v2364
      %v2481 = vpop.permute.xlu0 %2480
      %2484 = vset.pattern.permute.xlu0 0
      %2485 = vperm.xlu0 %2484, %v2365
      %v2486 = vpop.permute.xlu0 %2485
      %2489 = vset.pattern.permute.xlu0 0
      %2490 = vperm.xlu0 %2489, %v2366
      %v2491 = vpop.permute.xlu0 %2490
      %2494 = vset.pattern.permute.xlu0 0
      %2495 = vperm.xlu0 %2494, %v2367
      %v2496 = vpop.permute.xlu0 %2495
      %2499 = vset.pattern.permute.xlu0 0
      %2500 = vperm.xlu0 %2499, %v2368
      %v2501 = vpop.permute.xlu0 %2500
      %2504 = vset.pattern.permute.xlu0 0
      %2505 = vperm.xlu0 %2504, %v2369
      %v2506 = vpop.permute.xlu0 %2505
      %2509 = vset.pattern.permute.xlu0 0
      %2510 = vperm.xlu0 %2509, %v2370
      %v2511 = vpop.permute.xlu0 %2510
      %2514 = vset.pattern.permute.xlu0 0
      %2515 = vperm.xlu0 %2514, %v2371
      %v2516 = vpop.permute.xlu0 %2515
      %2519 = vset.pattern.permute.xlu0 0
      %2520 = vperm.xlu0 %2519, %v2372
      %v2521 = vpop.permute.xlu0 %2520
      %2524 = vset.pattern.permute.xlu0 0
      %2525 = vperm.xlu0 %2524, %v2373
      %v2526 = vpop.permute.xlu0 %2525
      %2529 = vset.pattern.permute.xlu0 0
      %2530 = vperm.xlu0 %2529, %v2374
      %v2531 = vpop.permute.xlu0 %2530
      %2534 = vset.pattern.permute.xlu0 0
      %2535 = vperm.xlu0 %2534, %v2375
      %v2536 = vpop.permute.xlu0 %2535
      %2539 = vset.pattern.permute.xlu0 0
      %2540 = vperm.xlu0 %2539, %v2376
      %v2541 = vpop.permute.xlu0 %2540
      %2544 = vset.pattern.permute.xlu0 0
      %2545 = vperm.xlu0 %2544, %v2377
      %v2546 = vpop.permute.xlu0 %2545
      %2549 = vset.pattern.permute.xlu0 0
      %2550 = vperm.xlu0 %2549, %v2378
      %v2551 = vpop.permute.xlu0 %2550
      %2554 = vset.pattern.permute.xlu0 0
      %2555 = vperm.xlu0 %2554, %v2379
      %v2556 = vpop.permute.xlu0 %2555
      %2559 = vset.pattern.permute.xlu0 0
      %2560 = vperm.xlu0 %2559, %v2380
      %v2561 = vpop.permute.xlu0 %2560
      %v2563 = vperm.slane %v2382, 0
      %v2564 = vmul.f32 %v2386, %v2563
      %v2565 = vmul.f32 %v2391, %v2563
      %v2566 = vmul.f32 %v2396, %v2563
      %v2567 = vmul.f32 %v2401, %v2563
      %v2568 = vmul.f32 %v2406, %v2563
      %v2569 = vmul.f32 %v2411, %v2563
      %v2570 = vmul.f32 %v2416, %v2563
      %v2571 = vmul.f32 %v2421, %v2563
      %v2572 = vmul.f32 %v2426, %v2563
      %v2573 = vmul.f32 %v2431, %v2563
      %v2574 = vmul.f32 %v2436, %v2563
      %v2575 = vmul.f32 %v2441, %v2563
      %v2576 = vmul.f32 %v2446, %v2563
      %v2577 = vmul.f32 %v2451, %v2563
      %v2578 = vmul.f32 %v2456, %v2563
      %v2579 = vmul.f32 %v2461, %v2563
      %v2580 = vmul.f32 %v2466, %v2563
      %v2581 = vmul.f32 %v2471, %v2563
      %v2582 = vmul.f32 %v2476, %v2563
      %v2583 = vmul.f32 %v2481, %v2563
      %v2584 = vmul.f32 %v2486, %v2563
      %v2585 = vmul.f32 %v2491, %v2563
      %v2586 = vmul.f32 %v2496, %v2563
      %v2587 = vmul.f32 %v2501, %v2563
      %v2588 = vmul.f32 %v2506, %v2563
      %v2589 = vmul.f32 %v2511, %v2563
      %v2590 = vmul.f32 %v2516, %v2563
      %v2591 = vmul.f32 %v2521, %v2563
      %v2592 = vmul.f32 %v2526, %v2563
      %v2593 = vmul.f32 %v2531, %v2563
      %v2594 = vmul.f32 %v2536, %v2563
      %v2595 = vmul.f32 %v2541, %v2563
      %v2596 = vmul.f32 %v2546, %v2563
      %v2597 = vmul.f32 %v2551, %v2563
      %v2598 = vmul.f32 %v2556, %v2563
      %v2599 = vmul.f32 %v2561, %v2563
      %v2600 = vadd.f32 %v2309, %v2564
      %v2601 = vadd.f32 %v2310, %v2565
      %v2602 = vadd.f32 %v2311, %v2566
      %v2603 = vadd.f32 %v2312, %v2567
      %v2604 = vadd.f32 %v2313, %v2568
      %v2605 = vadd.f32 %v2314, %v2569
      %v2606 = vadd.f32 %v2315, %v2570
      %v2607 = vadd.f32 %v2316, %v2571
      %v2608 = vadd.f32 %v2317, %v2572
      %v2609 = vadd.f32 %v2318, %v2573
      %v2610 = vadd.f32 %v2319, %v2574
      %v2611 = vadd.f32 %v2320, %v2575
      %v2612 = vadd.f32 %v2321, %v2576
      %v2613 = vadd.f32 %v2322, %v2577
      %v2614 = vadd.f32 %v2323, %v2578
      %v2615 = vadd.f32 %v2324, %v2579
      %v2616 = vadd.f32 %v2325, %v2580
      %v2617 = vadd.f32 %v2326, %v2581
      %v2618 = vadd.f32 %v2327, %v2582
      %v2619 = vadd.f32 %v2328, %v2583
      %v2620 = vadd.f32 %v2329, %v2584
      %v2621 = vadd.f32 %v2330, %v2585
      %v2622 = vadd.f32 %v2331, %v2586
      %v2623 = vadd.f32 %v2332, %v2587
      %v2624 = vadd.f32 %v2333, %v2588
      %v2625 = vadd.f32 %v2334, %v2589
      %v2626 = vadd.f32 %v2335, %v2590
      %v2627 = vadd.f32 %v2336, %v2591
      %v2628 = vadd.f32 %v2337, %v2592
      %v2629 = vadd.f32 %v2338, %v2593
      %v2630 = vadd.f32 %v2339, %v2594
      %v2631 = vadd.f32 %v2340, %v2595
      %v2632 = vadd.f32 %v2341, %v2596
      %v2633 = vadd.f32 %v2342, %v2597
      %v2634 = vadd.f32 %v2343, %v2598
      %v2635 = vadd.f32 %v2344, %v2599
      %2636 = vset.pattern.permute.xlu0 1
      %2637 = vperm.xlu0 %2636, %v2345
      %v2638 = vpop.permute.xlu0 %2637
      %2640 = vset.pattern.permute.xlu0 1
      %2641 = vperm.xlu0 %2640, %v2346
      %v2642 = vpop.permute.xlu0 %2641
      %2644 = vset.pattern.permute.xlu0 1
      %2645 = vperm.xlu0 %2644, %v2347
      %v2646 = vpop.permute.xlu0 %2645
      %2648 = vset.pattern.permute.xlu0 1
      %2649 = vperm.xlu0 %2648, %v2348
      %v2650 = vpop.permute.xlu0 %2649
      %2652 = vset.pattern.permute.xlu0 1
      %2653 = vperm.xlu0 %2652, %v2349
      %v2654 = vpop.permute.xlu0 %2653
      %2656 = vset.pattern.permute.xlu0 1
      %2657 = vperm.xlu0 %2656, %v2350
      %v2658 = vpop.permute.xlu0 %2657
      %2660 = vset.pattern.permute.xlu0 1
      %2661 = vperm.xlu0 %2660, %v2351
      %v2662 = vpop.permute.xlu0 %2661
      %2664 = vset.pattern.permute.xlu0 1
      %2665 = vperm.xlu0 %2664, %v2352
      %v2666 = vpop.permute.xlu0 %2665
      %2668 = vset.pattern.permute.xlu0 1
      %2669 = vperm.xlu0 %2668, %v2353
      %v2670 = vpop.permute.xlu0 %2669
      %2672 = vset.pattern.permute.xlu0 1
      %2673 = vperm.xlu0 %2672, %v2354
      %v2674 = vpop.permute.xlu0 %2673
      %2676 = vset.pattern.permute.xlu0 1
      %2677 = vperm.xlu0 %2676, %v2355
      %v2678 = vpop.permute.xlu0 %2677
      %2680 = vset.pattern.permute.xlu0 1
      %2681 = vperm.xlu0 %2680, %v2356
      %v2682 = vpop.permute.xlu0 %2681
      %2684 = vset.pattern.permute.xlu0 1
      %2685 = vperm.xlu0 %2684, %v2357
      %v2686 = vpop.permute.xlu0 %2685
      %2688 = vset.pattern.permute.xlu0 1
      %2689 = vperm.xlu0 %2688, %v2358
      %v2690 = vpop.permute.xlu0 %2689
      %2692 = vset.pattern.permute.xlu0 1
      %2693 = vperm.xlu0 %2692, %v2359
      %v2694 = vpop.permute.xlu0 %2693
      %2696 = vset.pattern.permute.xlu0 1
      %2697 = vperm.xlu0 %2696, %v2360
      %v2698 = vpop.permute.xlu0 %2697
      %2700 = vset.pattern.permute.xlu0 1
      %2701 = vperm.xlu0 %2700, %v2361
      %v2702 = vpop.permute.xlu0 %2701
      %2704 = vset.pattern.permute.xlu0 1
      %2705 = vperm.xlu0 %2704, %v2362
      %v2706 = vpop.permute.xlu0 %2705
      %2708 = vset.pattern.permute.xlu0 1
      %2709 = vperm.xlu0 %2708, %v2363
      %v2710 = vpop.permute.xlu0 %2709
      %2712 = vset.pattern.permute.xlu0 1
      %2713 = vperm.xlu0 %2712, %v2364
      %v2714 = vpop.permute.xlu0 %2713
      %2716 = vset.pattern.permute.xlu0 1
      %2717 = vperm.xlu0 %2716, %v2365
      %v2718 = vpop.permute.xlu0 %2717
      %2720 = vset.pattern.permute.xlu0 1
      %2721 = vperm.xlu0 %2720, %v2366
      %v2722 = vpop.permute.xlu0 %2721
      %2724 = vset.pattern.permute.xlu0 1
      %2725 = vperm.xlu0 %2724, %v2367
      %v2726 = vpop.permute.xlu0 %2725
      %2728 = vset.pattern.permute.xlu0 1
      %2729 = vperm.xlu0 %2728, %v2368
      %v2730 = vpop.permute.xlu0 %2729
      %2732 = vset.pattern.permute.xlu0 1
      %2733 = vperm.xlu0 %2732, %v2369
      %v2734 = vpop.permute.xlu0 %2733
      %2736 = vset.pattern.permute.xlu0 1
      %2737 = vperm.xlu0 %2736, %v2370
      %v2738 = vpop.permute.xlu0 %2737
      %2740 = vset.pattern.permute.xlu0 1
      %2741 = vperm.xlu0 %2740, %v2371
      %v2742 = vpop.permute.xlu0 %2741
      %2744 = vset.pattern.permute.xlu0 1
      %2745 = vperm.xlu0 %2744, %v2372
      %v2746 = vpop.permute.xlu0 %2745
      %2748 = vset.pattern.permute.xlu0 1
      %2749 = vperm.xlu0 %2748, %v2373
      %v2750 = vpop.permute.xlu0 %2749
      %2752 = vset.pattern.permute.xlu0 1
      %2753 = vperm.xlu0 %2752, %v2374
      %v2754 = vpop.permute.xlu0 %2753
      %2756 = vset.pattern.permute.xlu0 1
      %2757 = vperm.xlu0 %2756, %v2375
      %v2758 = vpop.permute.xlu0 %2757
      %2760 = vset.pattern.permute.xlu0 1
      %2761 = vperm.xlu0 %2760, %v2376
      %v2762 = vpop.permute.xlu0 %2761
      %2764 = vset.pattern.permute.xlu0 1
      %2765 = vperm.xlu0 %2764, %v2377
      %v2766 = vpop.permute.xlu0 %2765
      %2768 = vset.pattern.permute.xlu0 1
      %2769 = vperm.xlu0 %2768, %v2378
      %v2770 = vpop.permute.xlu0 %2769
      %2772 = vset.pattern.permute.xlu0 1
      %2773 = vperm.xlu0 %2772, %v2379
      %v2774 = vpop.permute.xlu0 %2773
      %2776 = vset.pattern.permute.xlu0 1
      %2777 = vperm.xlu0 %2776, %v2380
      %v2778 = vpop.permute.xlu0 %2777
      %v2780 = vperm.slane %v2382, 1
      %v2781 = vmul.f32 %v2638, %v2780
      %v2782 = vmul.f32 %v2642, %v2780
      %v2783 = vmul.f32 %v2646, %v2780
      %v2784 = vmul.f32 %v2650, %v2780
      %v2785 = vmul.f32 %v2654, %v2780
      %v2786 = vmul.f32 %v2658, %v2780
      %v2787 = vmul.f32 %v2662, %v2780
      %v2788 = vmul.f32 %v2666, %v2780
      %v2789 = vmul.f32 %v2670, %v2780
      %v2790 = vmul.f32 %v2674, %v2780
      %v2791 = vmul.f32 %v2678, %v2780
      %v2792 = vmul.f32 %v2682, %v2780
      %v2793 = vmul.f32 %v2686, %v2780
      %v2794 = vmul.f32 %v2690, %v2780
      %v2795 = vmul.f32 %v2694, %v2780
      %v2796 = vmul.f32 %v2698, %v2780
      %v2797 = vmul.f32 %v2702, %v2780
      %v2798 = vmul.f32 %v2706, %v2780
      %v2799 = vmul.f32 %v2710, %v2780
      %v2800 = vmul.f32 %v2714, %v2780
      %v2801 = vmul.f32 %v2718, %v2780
      %v2802 = vmul.f32 %v2722, %v2780
      %v2803 = vmul.f32 %v2726, %v2780
      %v2804 = vmul.f32 %v2730, %v2780
      %v2805 = vmul.f32 %v2734, %v2780
      %v2806 = vmul.f32 %v2738, %v2780
      %v2807 = vmul.f32 %v2742, %v2780
      %v2808 = vmul.f32 %v2746, %v2780
      %v2809 = vmul.f32 %v2750, %v2780
      %v2810 = vmul.f32 %v2754, %v2780
      %v2811 = vmul.f32 %v2758, %v2780
      %v2812 = vmul.f32 %v2762, %v2780
      %v2813 = vmul.f32 %v2766, %v2780
      %v2814 = vmul.f32 %v2770, %v2780
      %v2815 = vmul.f32 %v2774, %v2780
      %v2816 = vmul.f32 %v2778, %v2780
      %v2817 = vadd.f32 %v2600, %v2781
      %v2818 = vadd.f32 %v2601, %v2782
      %v2819 = vadd.f32 %v2602, %v2783
      %v2820 = vadd.f32 %v2603, %v2784
      %v2821 = vadd.f32 %v2604, %v2785
      %v2822 = vadd.f32 %v2605, %v2786
      %v2823 = vadd.f32 %v2606, %v2787
      %v2824 = vadd.f32 %v2607, %v2788
      %v2825 = vadd.f32 %v2608, %v2789
      %v2826 = vadd.f32 %v2609, %v2790
      %v2827 = vadd.f32 %v2610, %v2791
      %v2828 = vadd.f32 %v2611, %v2792
      %v2829 = vadd.f32 %v2612, %v2793
      %v2830 = vadd.f32 %v2613, %v2794
      %v2831 = vadd.f32 %v2614, %v2795
      %v2832 = vadd.f32 %v2615, %v2796
      %v2833 = vadd.f32 %v2616, %v2797
      %v2834 = vadd.f32 %v2617, %v2798
      %v2835 = vadd.f32 %v2618, %v2799
      %v2836 = vadd.f32 %v2619, %v2800
      %v2837 = vadd.f32 %v2620, %v2801
      %v2838 = vadd.f32 %v2621, %v2802
      %v2839 = vadd.f32 %v2622, %v2803
      %v2840 = vadd.f32 %v2623, %v2804
      %v2841 = vadd.f32 %v2624, %v2805
      %v2842 = vadd.f32 %v2625, %v2806
      %v2843 = vadd.f32 %v2626, %v2807
      %v2844 = vadd.f32 %v2627, %v2808
      %v2845 = vadd.f32 %v2628, %v2809
      %v2846 = vadd.f32 %v2629, %v2810
      %v2847 = vadd.f32 %v2630, %v2811
      %v2848 = vadd.f32 %v2631, %v2812
      %v2849 = vadd.f32 %v2632, %v2813
      %v2850 = vadd.f32 %v2633, %v2814
      %v2851 = vadd.f32 %v2634, %v2815
      %v2852 = vadd.f32 %v2635, %v2816
      %2853 = vset.pattern.permute.xlu0 2
      %2854 = vperm.xlu0 %2853, %v2345
      %v2855 = vpop.permute.xlu0 %2854
      %2857 = vset.pattern.permute.xlu0 2
      %2858 = vperm.xlu0 %2857, %v2346
      %v2859 = vpop.permute.xlu0 %2858
      %2861 = vset.pattern.permute.xlu0 2
      %2862 = vperm.xlu0 %2861, %v2347
      %v2863 = vpop.permute.xlu0 %2862
      %2865 = vset.pattern.permute.xlu0 2
      %2866 = vperm.xlu0 %2865, %v2348
      %v2867 = vpop.permute.xlu0 %2866
      %2869 = vset.pattern.permute.xlu0 2
      %2870 = vperm.xlu0 %2869, %v2349
      %v2871 = vpop.permute.xlu0 %2870
      %2873 = vset.pattern.permute.xlu0 2
      %2874 = vperm.xlu0 %2873, %v2350
      %v2875 = vpop.permute.xlu0 %2874
      %2877 = vset.pattern.permute.xlu0 2
      %2878 = vperm.xlu0 %2877, %v2351
      %v2879 = vpop.permute.xlu0 %2878
      %2881 = vset.pattern.permute.xlu0 2
      %2882 = vperm.xlu0 %2881, %v2352
      %v2883 = vpop.permute.xlu0 %2882
      %2885 = vset.pattern.permute.xlu0 2
      %2886 = vperm.xlu0 %2885, %v2353
      %v2887 = vpop.permute.xlu0 %2886
      %2889 = vset.pattern.permute.xlu0 2
      %2890 = vperm.xlu0 %2889, %v2354
      %v2891 = vpop.permute.xlu0 %2890
      %2893 = vset.pattern.permute.xlu0 2
      %2894 = vperm.xlu0 %2893, %v2355
      %v2895 = vpop.permute.xlu0 %2894
      %2897 = vset.pattern.permute.xlu0 2
      %2898 = vperm.xlu0 %2897, %v2356
      %v2899 = vpop.permute.xlu0 %2898
      %2901 = vset.pattern.permute.xlu0 2
      %2902 = vperm.xlu0 %2901, %v2357
      %v2903 = vpop.permute.xlu0 %2902
      %2905 = vset.pattern.permute.xlu0 2
      %2906 = vperm.xlu0 %2905, %v2358
      %v2907 = vpop.permute.xlu0 %2906
      %2909 = vset.pattern.permute.xlu0 2
      %2910 = vperm.xlu0 %2909, %v2359
      %v2911 = vpop.permute.xlu0 %2910
      %2913 = vset.pattern.permute.xlu0 2
      %2914 = vperm.xlu0 %2913, %v2360
      %v2915 = vpop.permute.xlu0 %2914
      %2917 = vset.pattern.permute.xlu0 2
      %2918 = vperm.xlu0 %2917, %v2361
      %v2919 = vpop.permute.xlu0 %2918
      %2921 = vset.pattern.permute.xlu0 2
      %2922 = vperm.xlu0 %2921, %v2362
      %v2923 = vpop.permute.xlu0 %2922
      %2925 = vset.pattern.permute.xlu0 2
      %2926 = vperm.xlu0 %2925, %v2363
      %v2927 = vpop.permute.xlu0 %2926
      %2929 = vset.pattern.permute.xlu0 2
      %2930 = vperm.xlu0 %2929, %v2364
      %v2931 = vpop.permute.xlu0 %2930
      %2933 = vset.pattern.permute.xlu0 2
      %2934 = vperm.xlu0 %2933, %v2365
      %v2935 = vpop.permute.xlu0 %2934
      %2937 = vset.pattern.permute.xlu0 2
      %2938 = vperm.xlu0 %2937, %v2366
      %v2939 = vpop.permute.xlu0 %2938
      %2941 = vset.pattern.permute.xlu0 2
      %2942 = vperm.xlu0 %2941, %v2367
      %v2943 = vpop.permute.xlu0 %2942
      %2945 = vset.pattern.permute.xlu0 2
      %2946 = vperm.xlu0 %2945, %v2368
      %v2947 = vpop.permute.xlu0 %2946
      %2949 = vset.pattern.permute.xlu0 2
      %2950 = vperm.xlu0 %2949, %v2369
      %v2951 = vpop.permute.xlu0 %2950
      %2953 = vset.pattern.permute.xlu0 2
      %2954 = vperm.xlu0 %2953, %v2370
      %v2955 = vpop.permute.xlu0 %2954
      %2957 = vset.pattern.permute.xlu0 2
      %2958 = vperm.xlu0 %2957, %v2371
      %v2959 = vpop.permute.xlu0 %2958
      %2961 = vset.pattern.permute.xlu0 2
      %2962 = vperm.xlu0 %2961, %v2372
      %v2963 = vpop.permute.xlu0 %2962
      %2965 = vset.pattern.permute.xlu0 2
      %2966 = vperm.xlu0 %2965, %v2373
      %v2967 = vpop.permute.xlu0 %2966
      %2969 = vset.pattern.permute.xlu0 2
      %2970 = vperm.xlu0 %2969, %v2374
      %v2971 = vpop.permute.xlu0 %2970
      %2973 = vset.pattern.permute.xlu0 2
      %2974 = vperm.xlu0 %2973, %v2375
      %v2975 = vpop.permute.xlu0 %2974
      %2977 = vset.pattern.permute.xlu0 2
      %2978 = vperm.xlu0 %2977, %v2376
      %v2979 = vpop.permute.xlu0 %2978
      %2981 = vset.pattern.permute.xlu0 2
      %2982 = vperm.xlu0 %2981, %v2377
      %v2983 = vpop.permute.xlu0 %2982
      %2985 = vset.pattern.permute.xlu0 2
      %2986 = vperm.xlu0 %2985, %v2378
      %v2987 = vpop.permute.xlu0 %2986
      %2989 = vset.pattern.permute.xlu0 2
      %2990 = vperm.xlu0 %2989, %v2379
      %v2991 = vpop.permute.xlu0 %2990
      %2993 = vset.pattern.permute.xlu0 2
      %2994 = vperm.xlu0 %2993, %v2380
      %v2995 = vpop.permute.xlu0 %2994
      %v2997 = vperm.slane %v2382, 2
      %v2998 = vmul.f32 %v2855, %v2997
      %v2999 = vmul.f32 %v2859, %v2997
      %v3000 = vmul.f32 %v2863, %v2997
      %v3001 = vmul.f32 %v2867, %v2997
      %v3002 = vmul.f32 %v2871, %v2997
      %v3003 = vmul.f32 %v2875, %v2997
      %v3004 = vmul.f32 %v2879, %v2997
      %v3005 = vmul.f32 %v2883, %v2997
      %v3006 = vmul.f32 %v2887, %v2997
      %v3007 = vmul.f32 %v2891, %v2997
      %v3008 = vmul.f32 %v2895, %v2997
      %v3009 = vmul.f32 %v2899, %v2997
      %v3010 = vmul.f32 %v2903, %v2997
      %v3011 = vmul.f32 %v2907, %v2997
      %v3012 = vmul.f32 %v2911, %v2997
      %v3013 = vmul.f32 %v2915, %v2997
      %v3014 = vmul.f32 %v2919, %v2997
      %v3015 = vmul.f32 %v2923, %v2997
      %v3016 = vmul.f32 %v2927, %v2997
      %v3017 = vmul.f32 %v2931, %v2997
      %v3018 = vmul.f32 %v2935, %v2997
      %v3019 = vmul.f32 %v2939, %v2997
      %v3020 = vmul.f32 %v2943, %v2997
      %v3021 = vmul.f32 %v2947, %v2997
      %v3022 = vmul.f32 %v2951, %v2997
      %v3023 = vmul.f32 %v2955, %v2997
      %v3024 = vmul.f32 %v2959, %v2997
      %v3025 = vmul.f32 %v2963, %v2997
      %v3026 = vmul.f32 %v2967, %v2997
      %v3027 = vmul.f32 %v2971, %v2997
      %v3028 = vmul.f32 %v2975, %v2997
      %v3029 = vmul.f32 %v2979, %v2997
      %v3030 = vmul.f32 %v2983, %v2997
      %v3031 = vmul.f32 %v2987, %v2997
      %v3032 = vmul.f32 %v2991, %v2997
      %v3033 = vmul.f32 %v2995, %v2997
      %v3034 = vadd.f32 %v2817, %v2998
      %v3035 = vadd.f32 %v2818, %v2999
      %v3036 = vadd.f32 %v2819, %v3000
      %v3037 = vadd.f32 %v2820, %v3001
      %v3038 = vadd.f32 %v2821, %v3002
      %v3039 = vadd.f32 %v2822, %v3003
      %v3040 = vadd.f32 %v2823, %v3004
      %v3041 = vadd.f32 %v2824, %v3005
      %v3042 = vadd.f32 %v2825, %v3006
      %v3043 = vadd.f32 %v2826, %v3007
      %v3044 = vadd.f32 %v2827, %v3008
      %v3045 = vadd.f32 %v2828, %v3009
      %v3046 = vadd.f32 %v2829, %v3010
      %v3047 = vadd.f32 %v2830, %v3011
      %v3048 = vadd.f32 %v2831, %v3012
      %v3049 = vadd.f32 %v2832, %v3013
      %v3050 = vadd.f32 %v2833, %v3014
      %v3051 = vadd.f32 %v2834, %v3015
      %v3052 = vadd.f32 %v2835, %v3016
      %v3053 = vadd.f32 %v2836, %v3017
      %v3054 = vadd.f32 %v2837, %v3018
      %v3055 = vadd.f32 %v2838, %v3019
      %v3056 = vadd.f32 %v2839, %v3020
      %v3057 = vadd.f32 %v2840, %v3021
      %v3058 = vadd.f32 %v2841, %v3022
      %v3059 = vadd.f32 %v2842, %v3023
      %v3060 = vadd.f32 %v2843, %v3024
      %v3061 = vadd.f32 %v2844, %v3025
      %v3062 = vadd.f32 %v2845, %v3026
      %v3063 = vadd.f32 %v2846, %v3027
      %v3064 = vadd.f32 %v2847, %v3028
      %v3065 = vadd.f32 %v2848, %v3029
      %v3066 = vadd.f32 %v2849, %v3030
      %v3067 = vadd.f32 %v2850, %v3031
      %v3068 = vadd.f32 %v2851, %v3032
      %v3069 = vadd.f32 %v2852, %v3033
      %v3070 = vld [vmem:[%s165 + $0x13] sm:$0xff]
      %v3071 = vld [vmem:[%s165 + $0x1b] sm:$0xff]
      %v3072 = vld [vmem:[%s165 + $0x23] sm:$0xff]
      %v3073 = vld [vmem:[%s165 + $0x2b] sm:$0xff]
      %v3074 = vld [vmem:[%s165 + $0x33] sm:$0xff]
      %v3075 = vld [vmem:[%s165 + $0x3b] sm:$0xff]
      %v3076 = vld [vmem:[%s165 + $0x43] sm:$0xff]
      %v3077 = vld [vmem:[%s165 + $0x4b] sm:$0xff]
      %v3078 = vld [vmem:[%s165 + $0x53] sm:$0xff]
      %v3079 = vld [vmem:[%s165 + $0x5b] sm:$0xff]
      %v3080 = vld [vmem:[%s165 + $0x63] sm:$0xff]
      %v3081 = vld [vmem:[%s165 + $0x6b] sm:$0xff]
      %v3082 = vld [vmem:[%s165 + $0x73] sm:$0xff]
      %v3083 = vld [vmem:[%s165 + $0x7b] sm:$0xff]
      %v3084 = vld [vmem:[%s165 + $0x83] sm:$0xff]
      %v3085 = vld [vmem:[%s165 + $0x8b] sm:$0xff]
      %v3086 = vld [vmem:[%s165 + $0x93] sm:$0xff]
      %v3087 = vld [vmem:[%s165 + $0x9b] sm:$0xff]
      %v3088 = vld [vmem:[%s165 + $0xa3] sm:$0xff]
      %v3089 = vld [vmem:[%s165 + $0xab] sm:$0xff]
      %v3090 = vld [vmem:[%s165 + $0xb3] sm:$0xff]
      %v3091 = vld [vmem:[%s165 + $0xbb] sm:$0xff]
      %v3092 = vld [vmem:[%s165 + $0xc3] sm:$0xff]
      %v3093 = vld [vmem:[%s165 + $0xcb] sm:$0xff]
      %v3094 = vld [vmem:[%s165 + $0xd3] sm:$0xff]
      %v3095 = vld [vmem:[%s165 + $0xdb] sm:$0xff]
      %v3096 = vld [vmem:[%s165 + $0xe3] sm:$0xff]
      %v3097 = vld [vmem:[%s165 + $0xeb] sm:$0xff]
      %v3098 = vld [vmem:[%s165 + $0xf3] sm:$0xff]
      %v3099 = vld [vmem:[%s165 + $0xfb] sm:$0xff]
      %v3100 = vld [vmem:[%s165 + $0x103] sm:$0xff]
      %v3101 = vld [vmem:[%s165 + $0x10b] sm:$0xff]
      %v3102 = vld [vmem:[%s165 + $0x113] sm:$0xff]
      %v3103 = vld [vmem:[%s165 + $0x11b] sm:$0xff]
      %v3104 = vld [vmem:[%s165 + $0x123] sm:$0xff]
      %v3105 = vld [vmem:[%s165 + $0x12b] sm:$0xff]
      %s3106 = scalar_lea.vmem %s1, 16
      %v3107 = vld [vmem:[%s3106] sm:$0x7]
      %3109 = vset.pattern.permute.xlu0 0
      %3110 = vperm.xlu0 %3109, %v3070
      %v3111 = vpop.permute.xlu0 %3110
      %3114 = vset.pattern.permute.xlu0 0
      %3115 = vperm.xlu0 %3114, %v3071
      %v3116 = vpop.permute.xlu0 %3115
      %3119 = vset.pattern.permute.xlu0 0
      %3120 = vperm.xlu0 %3119, %v3072
      %v3121 = vpop.permute.xlu0 %3120
      %3124 = vset.pattern.permute.xlu0 0
      %3125 = vperm.xlu0 %3124, %v3073
      %v3126 = vpop.permute.xlu0 %3125
      %3129 = vset.pattern.permute.xlu0 0
      %3130 = vperm.xlu0 %3129, %v3074
      %v3131 = vpop.permute.xlu0 %3130
      %3134 = vset.pattern.permute.xlu0 0
      %3135 = vperm.xlu0 %3134, %v3075
      %v3136 = vpop.permute.xlu0 %3135
      %3139 = vset.pattern.permute.xlu0 0
      %3140 = vperm.xlu0 %3139, %v3076
      %v3141 = vpop.permute.xlu0 %3140
      %3144 = vset.pattern.permute.xlu0 0
      %3145 = vperm.xlu0 %3144, %v3077
      %v3146 = vpop.permute.xlu0 %3145
      %3149 = vset.pattern.permute.xlu0 0
      %3150 = vperm.xlu0 %3149, %v3078
      %v3151 = vpop.permute.xlu0 %3150
      %3154 = vset.pattern.permute.xlu0 0
      %3155 = vperm.xlu0 %3154, %v3079
      %v3156 = vpop.permute.xlu0 %3155
      %3159 = vset.pattern.permute.xlu0 0
      %3160 = vperm.xlu0 %3159, %v3080
      %v3161 = vpop.permute.xlu0 %3160
      %3164 = vset.pattern.permute.xlu0 0
      %3165 = vperm.xlu0 %3164, %v3081
      %v3166 = vpop.permute.xlu0 %3165
      %3169 = vset.pattern.permute.xlu0 0
      %3170 = vperm.xlu0 %3169, %v3082
      %v3171 = vpop.permute.xlu0 %3170
      %3174 = vset.pattern.permute.xlu0 0
      %3175 = vperm.xlu0 %3174, %v3083
      %v3176 = vpop.permute.xlu0 %3175
      %3179 = vset.pattern.permute.xlu0 0
      %3180 = vperm.xlu0 %3179, %v3084
      %v3181 = vpop.permute.xlu0 %3180
      %3184 = vset.pattern.permute.xlu0 0
      %3185 = vperm.xlu0 %3184, %v3085
      %v3186 = vpop.permute.xlu0 %3185
      %3189 = vset.pattern.permute.xlu0 0
      %3190 = vperm.xlu0 %3189, %v3086
      %v3191 = vpop.permute.xlu0 %3190
      %3194 = vset.pattern.permute.xlu0 0
      %3195 = vperm.xlu0 %3194, %v3087
      %v3196 = vpop.permute.xlu0 %3195
      %3199 = vset.pattern.permute.xlu0 0
      %3200 = vperm.xlu0 %3199, %v3088
      %v3201 = vpop.permute.xlu0 %3200
      %3204 = vset.pattern.permute.xlu0 0
      %3205 = vperm.xlu0 %3204, %v3089
      %v3206 = vpop.permute.xlu0 %3205
      %3209 = vset.pattern.permute.xlu0 0
      %3210 = vperm.xlu0 %3209, %v3090
      %v3211 = vpop.permute.xlu0 %3210
      %3214 = vset.pattern.permute.xlu0 0
      %3215 = vperm.xlu0 %3214, %v3091
      %v3216 = vpop.permute.xlu0 %3215
      %3219 = vset.pattern.permute.xlu0 0
      %3220 = vperm.xlu0 %3219, %v3092
      %v3221 = vpop.permute.xlu0 %3220
      %3224 = vset.pattern.permute.xlu0 0
      %3225 = vperm.xlu0 %3224, %v3093
      %v3226 = vpop.permute.xlu0 %3225
      %3229 = vset.pattern.permute.xlu0 0
      %3230 = vperm.xlu0 %3229, %v3094
      %v3231 = vpop.permute.xlu0 %3230
      %3234 = vset.pattern.permute.xlu0 0
      %3235 = vperm.xlu0 %3234, %v3095
      %v3236 = vpop.permute.xlu0 %3235
      %3239 = vset.pattern.permute.xlu0 0
      %3240 = vperm.xlu0 %3239, %v3096
      %v3241 = vpop.permute.xlu0 %3240
      %3244 = vset.pattern.permute.xlu0 0
      %3245 = vperm.xlu0 %3244, %v3097
      %v3246 = vpop.permute.xlu0 %3245
      %3249 = vset.pattern.permute.xlu0 0
      %3250 = vperm.xlu0 %3249, %v3098
      %v3251 = vpop.permute.xlu0 %3250
      %3254 = vset.pattern.permute.xlu0 0
      %3255 = vperm.xlu0 %3254, %v3099
      %v3256 = vpop.permute.xlu0 %3255
      %3259 = vset.pattern.permute.xlu0 0
      %3260 = vperm.xlu0 %3259, %v3100
      %v3261 = vpop.permute.xlu0 %3260
      %3264 = vset.pattern.permute.xlu0 0
      %3265 = vperm.xlu0 %3264, %v3101
      %v3266 = vpop.permute.xlu0 %3265
      %3269 = vset.pattern.permute.xlu0 0
      %3270 = vperm.xlu0 %3269, %v3102
      %v3271 = vpop.permute.xlu0 %3270
      %3274 = vset.pattern.permute.xlu0 0
      %3275 = vperm.xlu0 %3274, %v3103
      %v3276 = vpop.permute.xlu0 %3275
      %3279 = vset.pattern.permute.xlu0 0
      %3280 = vperm.xlu0 %3279, %v3104
      %v3281 = vpop.permute.xlu0 %3280
      %3284 = vset.pattern.permute.xlu0 0
      %3285 = vperm.xlu0 %3284, %v3105
      %v3286 = vpop.permute.xlu0 %3285
      %v3288 = vperm.slane %v3107, 0
      %v3289 = vmul.f32 %v3111, %v3288
      %v3290 = vmul.f32 %v3116, %v3288
      %v3291 = vmul.f32 %v3121, %v3288
      %v3292 = vmul.f32 %v3126, %v3288
      %v3293 = vmul.f32 %v3131, %v3288
      %v3294 = vmul.f32 %v3136, %v3288
      %v3295 = vmul.f32 %v3141, %v3288
      %v3296 = vmul.f32 %v3146, %v3288
      %v3297 = vmul.f32 %v3151, %v3288
      %v3298 = vmul.f32 %v3156, %v3288
      %v3299 = vmul.f32 %v3161, %v3288
      %v3300 = vmul.f32 %v3166, %v3288
      %v3301 = vmul.f32 %v3171, %v3288
      %v3302 = vmul.f32 %v3176, %v3288
      %v3303 = vmul.f32 %v3181, %v3288
      %v3304 = vmul.f32 %v3186, %v3288
      %v3305 = vmul.f32 %v3191, %v3288
      %v3306 = vmul.f32 %v3196, %v3288
      %v3307 = vmul.f32 %v3201, %v3288
      %v3308 = vmul.f32 %v3206, %v3288
      %v3309 = vmul.f32 %v3211, %v3288
      %v3310 = vmul.f32 %v3216, %v3288
      %v3311 = vmul.f32 %v3221, %v3288
      %v3312 = vmul.f32 %v3226, %v3288
      %v3313 = vmul.f32 %v3231, %v3288
      %v3314 = vmul.f32 %v3236, %v3288
      %v3315 = vmul.f32 %v3241, %v3288
      %v3316 = vmul.f32 %v3246, %v3288
      %v3317 = vmul.f32 %v3251, %v3288
      %v3318 = vmul.f32 %v3256, %v3288
      %v3319 = vmul.f32 %v3261, %v3288
      %v3320 = vmul.f32 %v3266, %v3288
      %v3321 = vmul.f32 %v3271, %v3288
      %v3322 = vmul.f32 %v3276, %v3288
      %v3323 = vmul.f32 %v3281, %v3288
      %v3324 = vmul.f32 %v3286, %v3288
      %v3325 = vadd.f32 %v3034, %v3289
      %v3326 = vadd.f32 %v3035, %v3290
      %v3327 = vadd.f32 %v3036, %v3291
      %v3328 = vadd.f32 %v3037, %v3292
      %v3329 = vadd.f32 %v3038, %v3293
      %v3330 = vadd.f32 %v3039, %v3294
      %v3331 = vadd.f32 %v3040, %v3295
      %v3332 = vadd.f32 %v3041, %v3296
      %v3333 = vadd.f32 %v3042, %v3297
      %v3334 = vadd.f32 %v3043, %v3298
      %v3335 = vadd.f32 %v3044, %v3299
      %v3336 = vadd.f32 %v3045, %v3300
      %v3337 = vadd.f32 %v3046, %v3301
      %v3338 = vadd.f32 %v3047, %v3302
      %v3339 = vadd.f32 %v3048, %v3303
      %v3340 = vadd.f32 %v3049, %v3304
      %v3341 = vadd.f32 %v3050, %v3305
      %v3342 = vadd.f32 %v3051, %v3306
      %v3343 = vadd.f32 %v3052, %v3307
      %v3344 = vadd.f32 %v3053, %v3308
      %v3345 = vadd.f32 %v3054, %v3309
      %v3346 = vadd.f32 %v3055, %v3310
      %v3347 = vadd.f32 %v3056, %v3311
      %v3348 = vadd.f32 %v3057, %v3312
      %v3349 = vadd.f32 %v3058, %v3313
      %v3350 = vadd.f32 %v3059, %v3314
      %v3351 = vadd.f32 %v3060, %v3315
      %v3352 = vadd.f32 %v3061, %v3316
      %v3353 = vadd.f32 %v3062, %v3317
      %v3354 = vadd.f32 %v3063, %v3318
      %v3355 = vadd.f32 %v3064, %v3319
      %v3356 = vadd.f32 %v3065, %v3320
      %v3357 = vadd.f32 %v3066, %v3321
      %v3358 = vadd.f32 %v3067, %v3322
      %v3359 = vadd.f32 %v3068, %v3323
      %v3360 = vadd.f32 %v3069, %v3324
      %3361 = vset.pattern.permute.xlu0 1
      %3362 = vperm.xlu0 %3361, %v3070
      %v3363 = vpop.permute.xlu0 %3362
      %3365 = vset.pattern.permute.xlu0 1
      %3366 = vperm.xlu0 %3365, %v3071
      %v3367 = vpop.permute.xlu0 %3366
      %3369 = vset.pattern.permute.xlu0 1
      %3370 = vperm.xlu0 %3369, %v3072
      %v3371 = vpop.permute.xlu0 %3370
      %3373 = vset.pattern.permute.xlu0 1
      %3374 = vperm.xlu0 %3373, %v3073
      %v3375 = vpop.permute.xlu0 %3374
      %3377 = vset.pattern.permute.xlu0 1
      %3378 = vperm.xlu0 %3377, %v3074
      %v3379 = vpop.permute.xlu0 %3378
      %3381 = vset.pattern.permute.xlu0 1
      %3382 = vperm.xlu0 %3381, %v3075
      %v3383 = vpop.permute.xlu0 %3382
      %3385 = vset.pattern.permute.xlu0 1
      %3386 = vperm.xlu0 %3385, %v3076
      %v3387 = vpop.permute.xlu0 %3386
      %3389 = vset.pattern.permute.xlu0 1
      %3390 = vperm.xlu0 %3389, %v3077
      %v3391 = vpop.permute.xlu0 %3390
      %3393 = vset.pattern.permute.xlu0 1
      %3394 = vperm.xlu0 %3393, %v3078
      %v3395 = vpop.permute.xlu0 %3394
      %3397 = vset.pattern.permute.xlu0 1
      %3398 = vperm.xlu0 %3397, %v3079
      %v3399 = vpop.permute.xlu0 %3398
      %3401 = vset.pattern.permute.xlu0 1
      %3402 = vperm.xlu0 %3401, %v3080
      %v3403 = vpop.permute.xlu0 %3402
      %3405 = vset.pattern.permute.xlu0 1
      %3406 = vperm.xlu0 %3405, %v3081
      %v3407 = vpop.permute.xlu0 %3406
      %3409 = vset.pattern.permute.xlu0 1
      %3410 = vperm.xlu0 %3409, %v3082
      %v3411 = vpop.permute.xlu0 %3410
      %3413 = vset.pattern.permute.xlu0 1
      %3414 = vperm.xlu0 %3413, %v3083
      %v3415 = vpop.permute.xlu0 %3414
      %3417 = vset.pattern.permute.xlu0 1
      %3418 = vperm.xlu0 %3417, %v3084
      %v3419 = vpop.permute.xlu0 %3418
      %3421 = vset.pattern.permute.xlu0 1
      %3422 = vperm.xlu0 %3421, %v3085
      %v3423 = vpop.permute.xlu0 %3422
      %3425 = vset.pattern.permute.xlu0 1
      %3426 = vperm.xlu0 %3425, %v3086
      %v3427 = vpop.permute.xlu0 %3426
      %3429 = vset.pattern.permute.xlu0 1
      %3430 = vperm.xlu0 %3429, %v3087
      %v3431 = vpop.permute.xlu0 %3430
      %3433 = vset.pattern.permute.xlu0 1
      %3434 = vperm.xlu0 %3433, %v3088
      %v3435 = vpop.permute.xlu0 %3434
      %3437 = vset.pattern.permute.xlu0 1
      %3438 = vperm.xlu0 %3437, %v3089
      %v3439 = vpop.permute.xlu0 %3438
      %3441 = vset.pattern.permute.xlu0 1
      %3442 = vperm.xlu0 %3441, %v3090
      %v3443 = vpop.permute.xlu0 %3442
      %3445 = vset.pattern.permute.xlu0 1
      %3446 = vperm.xlu0 %3445, %v3091
      %v3447 = vpop.permute.xlu0 %3446
      %3449 = vset.pattern.permute.xlu0 1
      %3450 = vperm.xlu0 %3449, %v3092
      %v3451 = vpop.permute.xlu0 %3450
      %3453 = vset.pattern.permute.xlu0 1
      %3454 = vperm.xlu0 %3453, %v3093
      %v3455 = vpop.permute.xlu0 %3454
      %3457 = vset.pattern.permute.xlu0 1
      %3458 = vperm.xlu0 %3457, %v3094
      %v3459 = vpop.permute.xlu0 %3458
      %3461 = vset.pattern.permute.xlu0 1
      %3462 = vperm.xlu0 %3461, %v3095
      %v3463 = vpop.permute.xlu0 %3462
      %3465 = vset.pattern.permute.xlu0 1
      %3466 = vperm.xlu0 %3465, %v3096
      %v3467 = vpop.permute.xlu0 %3466
      %3469 = vset.pattern.permute.xlu0 1
      %3470 = vperm.xlu0 %3469, %v3097
      %v3471 = vpop.permute.xlu0 %3470
      %3473 = vset.pattern.permute.xlu0 1
      %3474 = vperm.xlu0 %3473, %v3098
      %v3475 = vpop.permute.xlu0 %3474
      %3477 = vset.pattern.permute.xlu0 1
      %3478 = vperm.xlu0 %3477, %v3099
      %v3479 = vpop.permute.xlu0 %3478
      %3481 = vset.pattern.permute.xlu0 1
      %3482 = vperm.xlu0 %3481, %v3100
      %v3483 = vpop.permute.xlu0 %3482
      %3485 = vset.pattern.permute.xlu0 1
      %3486 = vperm.xlu0 %3485, %v3101
      %v3487 = vpop.permute.xlu0 %3486
      %3489 = vset.pattern.permute.xlu0 1
      %3490 = vperm.xlu0 %3489, %v3102
      %v3491 = vpop.permute.xlu0 %3490
      %3493 = vset.pattern.permute.xlu0 1
      %3494 = vperm.xlu0 %3493, %v3103
      %v3495 = vpop.permute.xlu0 %3494
      %3497 = vset.pattern.permute.xlu0 1
      %3498 = vperm.xlu0 %3497, %v3104
      %v3499 = vpop.permute.xlu0 %3498
      %3501 = vset.pattern.permute.xlu0 1
      %3502 = vperm.xlu0 %3501, %v3105
      %v3503 = vpop.permute.xlu0 %3502
      %v3505 = vperm.slane %v3107, 1
      %v3506 = vmul.f32 %v3363, %v3505
      %v3507 = vmul.f32 %v3367, %v3505
      %v3508 = vmul.f32 %v3371, %v3505
      %v3509 = vmul.f32 %v3375, %v3505
      %v3510 = vmul.f32 %v3379, %v3505
      %v3511 = vmul.f32 %v3383, %v3505
      %v3512 = vmul.f32 %v3387, %v3505
      %v3513 = vmul.f32 %v3391, %v3505
      %v3514 = vmul.f32 %v3395, %v3505
      %v3515 = vmul.f32 %v3399, %v3505
      %v3516 = vmul.f32 %v3403, %v3505
      %v3517 = vmul.f32 %v3407, %v3505
      %v3518 = vmul.f32 %v3411, %v3505
      %v3519 = vmul.f32 %v3415, %v3505
      %v3520 = vmul.f32 %v3419, %v3505
      %v3521 = vmul.f32 %v3423, %v3505
      %v3522 = vmul.f32 %v3427, %v3505
      %v3523 = vmul.f32 %v3431, %v3505
      %v3524 = vmul.f32 %v3435, %v3505
      %v3525 = vmul.f32 %v3439, %v3505
      %v3526 = vmul.f32 %v3443, %v3505
      %v3527 = vmul.f32 %v3447, %v3505
      %v3528 = vmul.f32 %v3451, %v3505
      %v3529 = vmul.f32 %v3455, %v3505
      %v3530 = vmul.f32 %v3459, %v3505
      %v3531 = vmul.f32 %v3463, %v3505
      %v3532 = vmul.f32 %v3467, %v3505
      %v3533 = vmul.f32 %v3471, %v3505
      %v3534 = vmul.f32 %v3475, %v3505
      %v3535 = vmul.f32 %v3479, %v3505
      %v3536 = vmul.f32 %v3483, %v3505
      %v3537 = vmul.f32 %v3487, %v3505
      %v3538 = vmul.f32 %v3491, %v3505
      %v3539 = vmul.f32 %v3495, %v3505
      %v3540 = vmul.f32 %v3499, %v3505
      %v3541 = vmul.f32 %v3503, %v3505
      %v3542 = vadd.f32 %v3325, %v3506
      %v3543 = vadd.f32 %v3326, %v3507
      %v3544 = vadd.f32 %v3327, %v3508
      %v3545 = vadd.f32 %v3328, %v3509
      %v3546 = vadd.f32 %v3329, %v3510
      %v3547 = vadd.f32 %v3330, %v3511
      %v3548 = vadd.f32 %v3331, %v3512
      %v3549 = vadd.f32 %v3332, %v3513
      %v3550 = vadd.f32 %v3333, %v3514
      %v3551 = vadd.f32 %v3334, %v3515
      %v3552 = vadd.f32 %v3335, %v3516
      %v3553 = vadd.f32 %v3336, %v3517
      %v3554 = vadd.f32 %v3337, %v3518
      %v3555 = vadd.f32 %v3338, %v3519
      %v3556 = vadd.f32 %v3339, %v3520
      %v3557 = vadd.f32 %v3340, %v3521
      %v3558 = vadd.f32 %v3341, %v3522
      %v3559 = vadd.f32 %v3342, %v3523
      %v3560 = vadd.f32 %v3343, %v3524
      %v3561 = vadd.f32 %v3344, %v3525
      %v3562 = vadd.f32 %v3345, %v3526
      %v3563 = vadd.f32 %v3346, %v3527
      %v3564 = vadd.f32 %v3347, %v3528
      %v3565 = vadd.f32 %v3348, %v3529
      %v3566 = vadd.f32 %v3349, %v3530
      %v3567 = vadd.f32 %v3350, %v3531
      %v3568 = vadd.f32 %v3351, %v3532
      %v3569 = vadd.f32 %v3352, %v3533
      %v3570 = vadd.f32 %v3353, %v3534
      %v3571 = vadd.f32 %v3354, %v3535
      %v3572 = vadd.f32 %v3355, %v3536
      %v3573 = vadd.f32 %v3356, %v3537
      %v3574 = vadd.f32 %v3357, %v3538
      %v3575 = vadd.f32 %v3358, %v3539
      %v3576 = vadd.f32 %v3359, %v3540
      %v3577 = vadd.f32 %v3360, %v3541
      %3578 = vset.pattern.permute.xlu0 2
      %3579 = vperm.xlu0 %3578, %v3070
      %v3580 = vpop.permute.xlu0 %3579
      %3582 = vset.pattern.permute.xlu0 2
      %3583 = vperm.xlu0 %3582, %v3071
      %v3584 = vpop.permute.xlu0 %3583
      %3586 = vset.pattern.permute.xlu0 2
      %3587 = vperm.xlu0 %3586, %v3072
      %v3588 = vpop.permute.xlu0 %3587
      %3590 = vset.pattern.permute.xlu0 2
      %3591 = vperm.xlu0 %3590, %v3073
      %v3592 = vpop.permute.xlu0 %3591
      %3594 = vset.pattern.permute.xlu0 2
      %3595 = vperm.xlu0 %3594, %v3074
      %v3596 = vpop.permute.xlu0 %3595
      %3598 = vset.pattern.permute.xlu0 2
      %3599 = vperm.xlu0 %3598, %v3075
      %v3600 = vpop.permute.xlu0 %3599
      %3602 = vset.pattern.permute.xlu0 2
      %3603 = vperm.xlu0 %3602, %v3076
      %v3604 = vpop.permute.xlu0 %3603
      %3606 = vset.pattern.permute.xlu0 2
      %3607 = vperm.xlu0 %3606, %v3077
      %v3608 = vpop.permute.xlu0 %3607
      %3610 = vset.pattern.permute.xlu0 2
      %3611 = vperm.xlu0 %3610, %v3078
      %v3612 = vpop.permute.xlu0 %3611
      %3614 = vset.pattern.permute.xlu0 2
      %3615 = vperm.xlu0 %3614, %v3079
      %v3616 = vpop.permute.xlu0 %3615
      %3618 = vset.pattern.permute.xlu0 2
      %3619 = vperm.xlu0 %3618, %v3080
      %v3620 = vpop.permute.xlu0 %3619
      %3622 = vset.pattern.permute.xlu0 2
      %3623 = vperm.xlu0 %3622, %v3081
      %v3624 = vpop.permute.xlu0 %3623
      %3626 = vset.pattern.permute.xlu0 2
      %3627 = vperm.xlu0 %3626, %v3082
      %v3628 = vpop.permute.xlu0 %3627
      %3630 = vset.pattern.permute.xlu0 2
      %3631 = vperm.xlu0 %3630, %v3083
      %v3632 = vpop.permute.xlu0 %3631
      %3634 = vset.pattern.permute.xlu0 2
      %3635 = vperm.xlu0 %3634, %v3084
      %v3636 = vpop.permute.xlu0 %3635
      %3638 = vset.pattern.permute.xlu0 2
      %3639 = vperm.xlu0 %3638, %v3085
      %v3640 = vpop.permute.xlu0 %3639
      %3642 = vset.pattern.permute.xlu0 2
      %3643 = vperm.xlu0 %3642, %v3086
      %v3644 = vpop.permute.xlu0 %3643
      %3646 = vset.pattern.permute.xlu0 2
      %3647 = vperm.xlu0 %3646, %v3087
      %v3648 = vpop.permute.xlu0 %3647
      %3650 = vset.pattern.permute.xlu0 2
      %3651 = vperm.xlu0 %3650, %v3088
      %v3652 = vpop.permute.xlu0 %3651
      %3654 = vset.pattern.permute.xlu0 2
      %3655 = vperm.xlu0 %3654, %v3089
      %v3656 = vpop.permute.xlu0 %3655
      %3658 = vset.pattern.permute.xlu0 2
      %3659 = vperm.xlu0 %3658, %v3090
      %v3660 = vpop.permute.xlu0 %3659
      %3662 = vset.pattern.permute.xlu0 2
      %3663 = vperm.xlu0 %3662, %v3091
      %v3664 = vpop.permute.xlu0 %3663
      %3666 = vset.pattern.permute.xlu0 2
      %3667 = vperm.xlu0 %3666, %v3092
      %v3668 = vpop.permute.xlu0 %3667
      %3670 = vset.pattern.permute.xlu0 2
      %3671 = vperm.xlu0 %3670, %v3093
      %v3672 = vpop.permute.xlu0 %3671
      %3674 = vset.pattern.permute.xlu0 2
      %3675 = vperm.xlu0 %3674, %v3094
      %v3676 = vpop.permute.xlu0 %3675
      %3678 = vset.pattern.permute.xlu0 2
      %3679 = vperm.xlu0 %3678, %v3095
      %v3680 = vpop.permute.xlu0 %3679
      %3682 = vset.pattern.permute.xlu0 2
      %3683 = vperm.xlu0 %3682, %v3096
      %v3684 = vpop.permute.xlu0 %3683
      %3686 = vset.pattern.permute.xlu0 2
      %3687 = vperm.xlu0 %3686, %v3097
      %v3688 = vpop.permute.xlu0 %3687
      %3690 = vset.pattern.permute.xlu0 2
      %3691 = vperm.xlu0 %3690, %v3098
      %v3692 = vpop.permute.xlu0 %3691
      %3694 = vset.pattern.permute.xlu0 2
      %3695 = vperm.xlu0 %3694, %v3099
      %v3696 = vpop.permute.xlu0 %3695
      %3698 = vset.pattern.permute.xlu0 2
      %3699 = vperm.xlu0 %3698, %v3100
      %v3700 = vpop.permute.xlu0 %3699
      %3702 = vset.pattern.permute.xlu0 2
      %3703 = vperm.xlu0 %3702, %v3101
      %v3704 = vpop.permute.xlu0 %3703
      %3706 = vset.pattern.permute.xlu0 2
      %3707 = vperm.xlu0 %3706, %v3102
      %v3708 = vpop.permute.xlu0 %3707
      %3710 = vset.pattern.permute.xlu0 2
      %3711 = vperm.xlu0 %3710, %v3103
      %v3712 = vpop.permute.xlu0 %3711
      %3714 = vset.pattern.permute.xlu0 2
      %3715 = vperm.xlu0 %3714, %v3104
      %v3716 = vpop.permute.xlu0 %3715
      %3718 = vset.pattern.permute.xlu0 2
      %3719 = vperm.xlu0 %3718, %v3105
      %v3720 = vpop.permute.xlu0 %3719
      %v3722 = vperm.slane %v3107, 2
      %v3723 = vmul.f32 %v3580, %v3722
      %v3724 = vmul.f32 %v3584, %v3722
      %v3725 = vmul.f32 %v3588, %v3722
      %v3726 = vmul.f32 %v3592, %v3722
      %v3727 = vmul.f32 %v3596, %v3722
      %v3728 = vmul.f32 %v3600, %v3722
      %v3729 = vmul.f32 %v3604, %v3722
      %v3730 = vmul.f32 %v3608, %v3722
      %v3731 = vmul.f32 %v3612, %v3722
      %v3732 = vmul.f32 %v3616, %v3722
      %v3733 = vmul.f32 %v3620, %v3722
      %v3734 = vmul.f32 %v3624, %v3722
      %v3735 = vmul.f32 %v3628, %v3722
      %v3736 = vmul.f32 %v3632, %v3722
      %v3737 = vmul.f32 %v3636, %v3722
      %v3738 = vmul.f32 %v3640, %v3722
      %v3739 = vmul.f32 %v3644, %v3722
      %v3740 = vmul.f32 %v3648, %v3722
      %v3741 = vmul.f32 %v3652, %v3722
      %v3742 = vmul.f32 %v3656, %v3722
      %v3743 = vmul.f32 %v3660, %v3722
      %v3744 = vmul.f32 %v3664, %v3722
      %v3745 = vmul.f32 %v3668, %v3722
      %v3746 = vmul.f32 %v3672, %v3722
      %v3747 = vmul.f32 %v3676, %v3722
      %v3748 = vmul.f32 %v3680, %v3722
      %v3749 = vmul.f32 %v3684, %v3722
      %v3750 = vmul.f32 %v3688, %v3722
      %v3751 = vmul.f32 %v3692, %v3722
      %v3752 = vmul.f32 %v3696, %v3722
      %v3753 = vmul.f32 %v3700, %v3722
      %v3754 = vmul.f32 %v3704, %v3722
      %v3755 = vmul.f32 %v3708, %v3722
      %v3756 = vmul.f32 %v3712, %v3722
      %v3757 = vmul.f32 %v3716, %v3722
      %v3758 = vmul.f32 %v3720, %v3722
      %v3759 = vadd.f32 %v3542, %v3723
      %v3760 = vadd.f32 %v3543, %v3724
      %v3761 = vadd.f32 %v3544, %v3725
      %v3762 = vadd.f32 %v3545, %v3726
      %v3763 = vadd.f32 %v3546, %v3727
      %v3764 = vadd.f32 %v3547, %v3728
      %v3765 = vadd.f32 %v3548, %v3729
      %v3766 = vadd.f32 %v3549, %v3730
      %v3767 = vadd.f32 %v3550, %v3731
      %v3768 = vadd.f32 %v3551, %v3732
      %v3769 = vadd.f32 %v3552, %v3733
      %v3770 = vadd.f32 %v3553, %v3734
      %v3771 = vadd.f32 %v3554, %v3735
      %v3772 = vadd.f32 %v3555, %v3736
      %v3773 = vadd.f32 %v3556, %v3737
      %v3774 = vadd.f32 %v3557, %v3738
      %v3775 = vadd.f32 %v3558, %v3739
      %v3776 = vadd.f32 %v3559, %v3740
      %v3777 = vadd.f32 %v3560, %v3741
      %v3778 = vadd.f32 %v3561, %v3742
      %v3779 = vadd.f32 %v3562, %v3743
      %v3780 = vadd.f32 %v3563, %v3744
      %v3781 = vadd.f32 %v3564, %v3745
      %v3782 = vadd.f32 %v3565, %v3746
      %v3783 = vadd.f32 %v3566, %v3747
      %v3784 = vadd.f32 %v3567, %v3748
      %v3785 = vadd.f32 %v3568, %v3749
      %v3786 = vadd.f32 %v3569, %v3750
      %v3787 = vadd.f32 %v3570, %v3751
      %v3788 = vadd.f32 %v3571, %v3752
      %v3789 = vadd.f32 %v3572, %v3753
      %v3790 = vadd.f32 %v3573, %v3754
      %v3791 = vadd.f32 %v3574, %v3755
      %v3792 = vadd.f32 %v3575, %v3756
      %v3793 = vadd.f32 %v3576, %v3757
      %v3794 = vadd.f32 %v3577, %v3758
      %v3795 = vld [vmem:[%s165 + $0x14] sm:$0xff]
      %v3796 = vld [vmem:[%s165 + $0x1c] sm:$0xff]
      %v3797 = vld [vmem:[%s165 + $0x24] sm:$0xff]
      %v3798 = vld [vmem:[%s165 + $0x2c] sm:$0xff]
      %v3799 = vld [vmem:[%s165 + $0x34] sm:$0xff]
      %v3800 = vld [vmem:[%s165 + $0x3c] sm:$0xff]
      %v3801 = vld [vmem:[%s165 + $0x44] sm:$0xff]
      %v3802 = vld [vmem:[%s165 + $0x4c] sm:$0xff]
      %v3803 = vld [vmem:[%s165 + $0x54] sm:$0xff]
      %v3804 = vld [vmem:[%s165 + $0x5c] sm:$0xff]
      %v3805 = vld [vmem:[%s165 + $0x64] sm:$0xff]
      %v3806 = vld [vmem:[%s165 + $0x6c] sm:$0xff]
      %v3807 = vld [vmem:[%s165 + $0x74] sm:$0xff]
      %v3808 = vld [vmem:[%s165 + $0x7c] sm:$0xff]
      %v3809 = vld [vmem:[%s165 + $0x84] sm:$0xff]
      %v3810 = vld [vmem:[%s165 + $0x8c] sm:$0xff]
      %v3811 = vld [vmem:[%s165 + $0x94] sm:$0xff]
      %v3812 = vld [vmem:[%s165 + $0x9c] sm:$0xff]
      %v3813 = vld [vmem:[%s165 + $0xa4] sm:$0xff]
      %v3814 = vld [vmem:[%s165 + $0xac] sm:$0xff]
      %v3815 = vld [vmem:[%s165 + $0xb4] sm:$0xff]
      %v3816 = vld [vmem:[%s165 + $0xbc] sm:$0xff]
      %v3817 = vld [vmem:[%s165 + $0xc4] sm:$0xff]
      %v3818 = vld [vmem:[%s165 + $0xcc] sm:$0xff]
      %v3819 = vld [vmem:[%s165 + $0xd4] sm:$0xff]
      %v3820 = vld [vmem:[%s165 + $0xdc] sm:$0xff]
      %v3821 = vld [vmem:[%s165 + $0xe4] sm:$0xff]
      %v3822 = vld [vmem:[%s165 + $0xec] sm:$0xff]
      %v3823 = vld [vmem:[%s165 + $0xf4] sm:$0xff]
      %v3824 = vld [vmem:[%s165 + $0xfc] sm:$0xff]
      %v3825 = vld [vmem:[%s165 + $0x104] sm:$0xff]
      %v3826 = vld [vmem:[%s165 + $0x10c] sm:$0xff]
      %v3827 = vld [vmem:[%s165 + $0x114] sm:$0xff]
      %v3828 = vld [vmem:[%s165 + $0x11c] sm:$0xff]
      %v3829 = vld [vmem:[%s165 + $0x124] sm:$0xff]
      %v3830 = vld [vmem:[%s165 + $0x12c] sm:$0xff]
      %s3831 = scalar_lea.vmem %s1, 20
      %v3832 = vld [vmem:[%s3831] sm:$0x7]
      %3834 = vset.pattern.permute.xlu0 0
      %3835 = vperm.xlu0 %3834, %v3795
      %v3836 = vpop.permute.xlu0 %3835
      %3839 = vset.pattern.permute.xlu0 0
      %3840 = vperm.xlu0 %3839, %v3796
      %v3841 = vpop.permute.xlu0 %3840
      %3844 = vset.pattern.permute.xlu0 0
      %3845 = vperm.xlu0 %3844, %v3797
      %v3846 = vpop.permute.xlu0 %3845
      %3849 = vset.pattern.permute.xlu0 0
      %3850 = vperm.xlu0 %3849, %v3798
      %v3851 = vpop.permute.xlu0 %3850
      %3854 = vset.pattern.permute.xlu0 0
      %3855 = vperm.xlu0 %3854, %v3799
      %v3856 = vpop.permute.xlu0 %3855
      %3859 = vset.pattern.permute.xlu0 0
      %3860 = vperm.xlu0 %3859, %v3800
      %v3861 = vpop.permute.xlu0 %3860
      %3864 = vset.pattern.permute.xlu0 0
      %3865 = vperm.xlu0 %3864, %v3801
      %v3866 = vpop.permute.xlu0 %3865
      %3869 = vset.pattern.permute.xlu0 0
      %3870 = vperm.xlu0 %3869, %v3802
      %v3871 = vpop.permute.xlu0 %3870
      %3874 = vset.pattern.permute.xlu0 0
      %3875 = vperm.xlu0 %3874, %v3803
      %v3876 = vpop.permute.xlu0 %3875
      %3879 = vset.pattern.permute.xlu0 0
      %3880 = vperm.xlu0 %3879, %v3804
      %v3881 = vpop.permute.xlu0 %3880
      %3884 = vset.pattern.permute.xlu0 0
      %3885 = vperm.xlu0 %3884, %v3805
      %v3886 = vpop.permute.xlu0 %3885
      %3889 = vset.pattern.permute.xlu0 0
      %3890 = vperm.xlu0 %3889, %v3806
      %v3891 = vpop.permute.xlu0 %3890
      %3894 = vset.pattern.permute.xlu0 0
      %3895 = vperm.xlu0 %3894, %v3807
      %v3896 = vpop.permute.xlu0 %3895
      %3899 = vset.pattern.permute.xlu0 0
      %3900 = vperm.xlu0 %3899, %v3808
      %v3901 = vpop.permute.xlu0 %3900
      %3904 = vset.pattern.permute.xlu0 0
      %3905 = vperm.xlu0 %3904, %v3809
      %v3906 = vpop.permute.xlu0 %3905
      %3909 = vset.pattern.permute.xlu0 0
      %3910 = vperm.xlu0 %3909, %v3810
      %v3911 = vpop.permute.xlu0 %3910
      %3914 = vset.pattern.permute.xlu0 0
      %3915 = vperm.xlu0 %3914, %v3811
      %v3916 = vpop.permute.xlu0 %3915
      %3919 = vset.pattern.permute.xlu0 0
      %3920 = vperm.xlu0 %3919, %v3812
      %v3921 = vpop.permute.xlu0 %3920
      %3924 = vset.pattern.permute.xlu0 0
      %3925 = vperm.xlu0 %3924, %v3813
      %v3926 = vpop.permute.xlu0 %3925
      %3929 = vset.pattern.permute.xlu0 0
      %3930 = vperm.xlu0 %3929, %v3814
      %v3931 = vpop.permute.xlu0 %3930
      %3934 = vset.pattern.permute.xlu0 0
      %3935 = vperm.xlu0 %3934, %v3815
      %v3936 = vpop.permute.xlu0 %3935
      %3939 = vset.pattern.permute.xlu0 0
      %3940 = vperm.xlu0 %3939, %v3816
      %v3941 = vpop.permute.xlu0 %3940
      %3944 = vset.pattern.permute.xlu0 0
      %3945 = vperm.xlu0 %3944, %v3817
      %v3946 = vpop.permute.xlu0 %3945
      %3949 = vset.pattern.permute.xlu0 0
      %3950 = vperm.xlu0 %3949, %v3818
      %v3951 = vpop.permute.xlu0 %3950
      %3954 = vset.pattern.permute.xlu0 0
      %3955 = vperm.xlu0 %3954, %v3819
      %v3956 = vpop.permute.xlu0 %3955
      %3959 = vset.pattern.permute.xlu0 0
      %3960 = vperm.xlu0 %3959, %v3820
      %v3961 = vpop.permute.xlu0 %3960
      %3964 = vset.pattern.permute.xlu0 0
      %3965 = vperm.xlu0 %3964, %v3821
      %v3966 = vpop.permute.xlu0 %3965
      %3969 = vset.pattern.permute.xlu0 0
      %3970 = vperm.xlu0 %3969, %v3822
      %v3971 = vpop.permute.xlu0 %3970
      %3974 = vset.pattern.permute.xlu0 0
      %3975 = vperm.xlu0 %3974, %v3823
      %v3976 = vpop.permute.xlu0 %3975
      %3979 = vset.pattern.permute.xlu0 0
      %3980 = vperm.xlu0 %3979, %v3824
      %v3981 = vpop.permute.xlu0 %3980
      %3984 = vset.pattern.permute.xlu0 0
      %3985 = vperm.xlu0 %3984, %v3825
      %v3986 = vpop.permute.xlu0 %3985
      %3989 = vset.pattern.permute.xlu0 0
      %3990 = vperm.xlu0 %3989, %v3826
      %v3991 = vpop.permute.xlu0 %3990
      %3994 = vset.pattern.permute.xlu0 0
      %3995 = vperm.xlu0 %3994, %v3827
      %v3996 = vpop.permute.xlu0 %3995
      %3999 = vset.pattern.permute.xlu0 0
      %4000 = vperm.xlu0 %3999, %v3828
      %v4001 = vpop.permute.xlu0 %4000
      %4004 = vset.pattern.permute.xlu0 0
      %4005 = vperm.xlu0 %4004, %v3829
      %v4006 = vpop.permute.xlu0 %4005
      %4009 = vset.pattern.permute.xlu0 0
      %4010 = vperm.xlu0 %4009, %v3830
      %v4011 = vpop.permute.xlu0 %4010
      %v4013 = vperm.slane %v3832, 0
      %v4014 = vmul.f32 %v3836, %v4013
      %v4015 = vmul.f32 %v3841, %v4013
      %v4016 = vmul.f32 %v3846, %v4013
      %v4017 = vmul.f32 %v3851, %v4013
      %v4018 = vmul.f32 %v3856, %v4013
      %v4019 = vmul.f32 %v3861, %v4013
      %v4020 = vmul.f32 %v3866, %v4013
      %v4021 = vmul.f32 %v3871, %v4013
      %v4022 = vmul.f32 %v3876, %v4013
      %v4023 = vmul.f32 %v3881, %v4013
      %v4024 = vmul.f32 %v3886, %v4013
      %v4025 = vmul.f32 %v3891, %v4013
      %v4026 = vmul.f32 %v3896, %v4013
      %v4027 = vmul.f32 %v3901, %v4013
      %v4028 = vmul.f32 %v3906, %v4013
      %v4029 = vmul.f32 %v3911, %v4013
      %v4030 = vmul.f32 %v3916, %v4013
      %v4031 = vmul.f32 %v3921, %v4013
      %v4032 = vmul.f32 %v3926, %v4013
      %v4033 = vmul.f32 %v3931, %v4013
      %v4034 = vmul.f32 %v3936, %v4013
      %v4035 = vmul.f32 %v3941, %v4013
      %v4036 = vmul.f32 %v3946, %v4013
      %v4037 = vmul.f32 %v3951, %v4013
      %v4038 = vmul.f32 %v3956, %v4013
      %v4039 = vmul.f32 %v3961, %v4013
      %v4040 = vmul.f32 %v3966, %v4013
      %v4041 = vmul.f32 %v3971, %v4013
      %v4042 = vmul.f32 %v3976, %v4013
      %v4043 = vmul.f32 %v3981, %v4013
      %v4044 = vmul.f32 %v3986, %v4013
      %v4045 = vmul.f32 %v3991, %v4013
      %v4046 = vmul.f32 %v3996, %v4013
      %v4047 = vmul.f32 %v4001, %v4013
      %v4048 = vmul.f32 %v4006, %v4013
      %v4049 = vmul.f32 %v4011, %v4013
      %v4050 = vadd.f32 %v3759, %v4014
      %v4051 = vadd.f32 %v3760, %v4015
      %v4052 = vadd.f32 %v3761, %v4016
      %v4053 = vadd.f32 %v3762, %v4017
      %v4054 = vadd.f32 %v3763, %v4018
      %v4055 = vadd.f32 %v3764, %v4019
      %v4056 = vadd.f32 %v3765, %v4020
      %v4057 = vadd.f32 %v3766, %v4021
      %v4058 = vadd.f32 %v3767, %v4022
      %v4059 = vadd.f32 %v3768, %v4023
      %v4060 = vadd.f32 %v3769, %v4024
      %v4061 = vadd.f32 %v3770, %v4025
      %v4062 = vadd.f32 %v3771, %v4026
      %v4063 = vadd.f32 %v3772, %v4027
      %v4064 = vadd.f32 %v3773, %v4028
      %v4065 = vadd.f32 %v3774, %v4029
      %v4066 = vadd.f32 %v3775, %v4030
      %v4067 = vadd.f32 %v3776, %v4031
      %v4068 = vadd.f32 %v3777, %v4032
      %v4069 = vadd.f32 %v3778, %v4033
      %v4070 = vadd.f32 %v3779, %v4034
      %v4071 = vadd.f32 %v3780, %v4035
      %v4072 = vadd.f32 %v3781, %v4036
      %v4073 = vadd.f32 %v3782, %v4037
      %v4074 = vadd.f32 %v3783, %v4038
      %v4075 = vadd.f32 %v3784, %v4039
      %v4076 = vadd.f32 %v3785, %v4040
      %v4077 = vadd.f32 %v3786, %v4041
      %v4078 = vadd.f32 %v3787, %v4042
      %v4079 = vadd.f32 %v3788, %v4043
      %v4080 = vadd.f32 %v3789, %v4044
      %v4081 = vadd.f32 %v3790, %v4045
      %v4082 = vadd.f32 %v3791, %v4046
      %v4083 = vadd.f32 %v3792, %v4047
      %v4084 = vadd.f32 %v3793, %v4048
      %v4085 = vadd.f32 %v3794, %v4049
      %4086 = vset.pattern.permute.xlu0 1
      %4087 = vperm.xlu0 %4086, %v3795
      %v4088 = vpop.permute.xlu0 %4087
      %4090 = vset.pattern.permute.xlu0 1
      %4091 = vperm.xlu0 %4090, %v3796
      %v4092 = vpop.permute.xlu0 %4091
      %4094 = vset.pattern.permute.xlu0 1
      %4095 = vperm.xlu0 %4094, %v3797
      %v4096 = vpop.permute.xlu0 %4095
      %4098 = vset.pattern.permute.xlu0 1
      %4099 = vperm.xlu0 %4098, %v3798
      %v4100 = vpop.permute.xlu0 %4099
      %4102 = vset.pattern.permute.xlu0 1
      %4103 = vperm.xlu0 %4102, %v3799
      %v4104 = vpop.permute.xlu0 %4103
      %4106 = vset.pattern.permute.xlu0 1
      %4107 = vperm.xlu0 %4106, %v3800
      %v4108 = vpop.permute.xlu0 %4107
      %4110 = vset.pattern.permute.xlu0 1
      %4111 = vperm.xlu0 %4110, %v3801
      %v4112 = vpop.permute.xlu0 %4111
      %4114 = vset.pattern.permute.xlu0 1
      %4115 = vperm.xlu0 %4114, %v3802
      %v4116 = vpop.permute.xlu0 %4115
      %4118 = vset.pattern.permute.xlu0 1
      %4119 = vperm.xlu0 %4118, %v3803
      %v4120 = vpop.permute.xlu0 %4119
      %4122 = vset.pattern.permute.xlu0 1
      %4123 = vperm.xlu0 %4122, %v3804
      %v4124 = vpop.permute.xlu0 %4123
      %4126 = vset.pattern.permute.xlu0 1
      %4127 = vperm.xlu0 %4126, %v3805
      %v4128 = vpop.permute.xlu0 %4127
      %4130 = vset.pattern.permute.xlu0 1
      %4131 = vperm.xlu0 %4130, %v3806
      %v4132 = vpop.permute.xlu0 %4131
      %4134 = vset.pattern.permute.xlu0 1
      %4135 = vperm.xlu0 %4134, %v3807
      %v4136 = vpop.permute.xlu0 %4135
      %4138 = vset.pattern.permute.xlu0 1
      %4139 = vperm.xlu0 %4138, %v3808
      %v4140 = vpop.permute.xlu0 %4139
      %4142 = vset.pattern.permute.xlu0 1
      %4143 = vperm.xlu0 %4142, %v3809
      %v4144 = vpop.permute.xlu0 %4143
      %4146 = vset.pattern.permute.xlu0 1
      %4147 = vperm.xlu0 %4146, %v3810
      %v4148 = vpop.permute.xlu0 %4147
      %4150 = vset.pattern.permute.xlu0 1
      %4151 = vperm.xlu0 %4150, %v3811
      %v4152 = vpop.permute.xlu0 %4151
      %4154 = vset.pattern.permute.xlu0 1
      %4155 = vperm.xlu0 %4154, %v3812
      %v4156 = vpop.permute.xlu0 %4155
      %4158 = vset.pattern.permute.xlu0 1
      %4159 = vperm.xlu0 %4158, %v3813
      %v4160 = vpop.permute.xlu0 %4159
      %4162 = vset.pattern.permute.xlu0 1
      %4163 = vperm.xlu0 %4162, %v3814
      %v4164 = vpop.permute.xlu0 %4163
      %4166 = vset.pattern.permute.xlu0 1
      %4167 = vperm.xlu0 %4166, %v3815
      %v4168 = vpop.permute.xlu0 %4167
      %4170 = vset.pattern.permute.xlu0 1
      %4171 = vperm.xlu0 %4170, %v3816
      %v4172 = vpop.permute.xlu0 %4171
      %4174 = vset.pattern.permute.xlu0 1
      %4175 = vperm.xlu0 %4174, %v3817
      %v4176 = vpop.permute.xlu0 %4175
      %4178 = vset.pattern.permute.xlu0 1
      %4179 = vperm.xlu0 %4178, %v3818
      %v4180 = vpop.permute.xlu0 %4179
      %4182 = vset.pattern.permute.xlu0 1
      %4183 = vperm.xlu0 %4182, %v3819
      %v4184 = vpop.permute.xlu0 %4183
      %4186 = vset.pattern.permute.xlu0 1
      %4187 = vperm.xlu0 %4186, %v3820
      %v4188 = vpop.permute.xlu0 %4187
      %4190 = vset.pattern.permute.xlu0 1
      %4191 = vperm.xlu0 %4190, %v3821
      %v4192 = vpop.permute.xlu0 %4191
      %4194 = vset.pattern.permute.xlu0 1
      %4195 = vperm.xlu0 %4194, %v3822
      %v4196 = vpop.permute.xlu0 %4195
      %4198 = vset.pattern.permute.xlu0 1
      %4199 = vperm.xlu0 %4198, %v3823
      %v4200 = vpop.permute.xlu0 %4199
      %4202 = vset.pattern.permute.xlu0 1
      %4203 = vperm.xlu0 %4202, %v3824
      %v4204 = vpop.permute.xlu0 %4203
      %4206 = vset.pattern.permute.xlu0 1
      %4207 = vperm.xlu0 %4206, %v3825
      %v4208 = vpop.permute.xlu0 %4207
      %4210 = vset.pattern.permute.xlu0 1
      %4211 = vperm.xlu0 %4210, %v3826
      %v4212 = vpop.permute.xlu0 %4211
      %4214 = vset.pattern.permute.xlu0 1
      %4215 = vperm.xlu0 %4214, %v3827
      %v4216 = vpop.permute.xlu0 %4215
      %4218 = vset.pattern.permute.xlu0 1
      %4219 = vperm.xlu0 %4218, %v3828
      %v4220 = vpop.permute.xlu0 %4219
      %4222 = vset.pattern.permute.xlu0 1
      %4223 = vperm.xlu0 %4222, %v3829
      %v4224 = vpop.permute.xlu0 %4223
      %4226 = vset.pattern.permute.xlu0 1
      %4227 = vperm.xlu0 %4226, %v3830
      %v4228 = vpop.permute.xlu0 %4227
      %v4230 = vperm.slane %v3832, 1
      %v4231 = vmul.f32 %v4088, %v4230
      %v4232 = vmul.f32 %v4092, %v4230
      %v4233 = vmul.f32 %v4096, %v4230
      %v4234 = vmul.f32 %v4100, %v4230
      %v4235 = vmul.f32 %v4104, %v4230
      %v4236 = vmul.f32 %v4108, %v4230
      %v4237 = vmul.f32 %v4112, %v4230
      %v4238 = vmul.f32 %v4116, %v4230
      %v4239 = vmul.f32 %v4120, %v4230
      %v4240 = vmul.f32 %v4124, %v4230
      %v4241 = vmul.f32 %v4128, %v4230
      %v4242 = vmul.f32 %v4132, %v4230
      %v4243 = vmul.f32 %v4136, %v4230
      %v4244 = vmul.f32 %v4140, %v4230
      %v4245 = vmul.f32 %v4144, %v4230
      %v4246 = vmul.f32 %v4148, %v4230
      %v4247 = vmul.f32 %v4152, %v4230
      %v4248 = vmul.f32 %v4156, %v4230
      %v4249 = vmul.f32 %v4160, %v4230
      %v4250 = vmul.f32 %v4164, %v4230
      %v4251 = vmul.f32 %v4168, %v4230
      %v4252 = vmul.f32 %v4172, %v4230
      %v4253 = vmul.f32 %v4176, %v4230
      %v4254 = vmul.f32 %v4180, %v4230
      %v4255 = vmul.f32 %v4184, %v4230
      %v4256 = vmul.f32 %v4188, %v4230
      %v4257 = vmul.f32 %v4192, %v4230
      %v4258 = vmul.f32 %v4196, %v4230
      %v4259 = vmul.f32 %v4200, %v4230
      %v4260 = vmul.f32 %v4204, %v4230
      %v4261 = vmul.f32 %v4208, %v4230
      %v4262 = vmul.f32 %v4212, %v4230
      %v4263 = vmul.f32 %v4216, %v4230
      %v4264 = vmul.f32 %v4220, %v4230
      %v4265 = vmul.f32 %v4224, %v4230
      %v4266 = vmul.f32 %v4228, %v4230
      %v4267 = vadd.f32 %v4050, %v4231
      %v4268 = vadd.f32 %v4051, %v4232
      %v4269 = vadd.f32 %v4052, %v4233
      %v4270 = vadd.f32 %v4053, %v4234
      %v4271 = vadd.f32 %v4054, %v4235
      %v4272 = vadd.f32 %v4055, %v4236
      %v4273 = vadd.f32 %v4056, %v4237
      %v4274 = vadd.f32 %v4057, %v4238
      %v4275 = vadd.f32 %v4058, %v4239
      %v4276 = vadd.f32 %v4059, %v4240
      %v4277 = vadd.f32 %v4060, %v4241
      %v4278 = vadd.f32 %v4061, %v4242
      %v4279 = vadd.f32 %v4062, %v4243
      %v4280 = vadd.f32 %v4063, %v4244
      %v4281 = vadd.f32 %v4064, %v4245
      %v4282 = vadd.f32 %v4065, %v4246
      %v4283 = vadd.f32 %v4066, %v4247
      %v4284 = vadd.f32 %v4067, %v4248
      %v4285 = vadd.f32 %v4068, %v4249
      %v4286 = vadd.f32 %v4069, %v4250
      %v4287 = vadd.f32 %v4070, %v4251
      %v4288 = vadd.f32 %v4071, %v4252
      %v4289 = vadd.f32 %v4072, %v4253
      %v4290 = vadd.f32 %v4073, %v4254
      %v4291 = vadd.f32 %v4074, %v4255
      %v4292 = vadd.f32 %v4075, %v4256
      %v4293 = vadd.f32 %v4076, %v4257
      %v4294 = vadd.f32 %v4077, %v4258
      %v4295 = vadd.f32 %v4078, %v4259
      %v4296 = vadd.f32 %v4079, %v4260
      %v4297 = vadd.f32 %v4080, %v4261
      %v4298 = vadd.f32 %v4081, %v4262
      %v4299 = vadd.f32 %v4082, %v4263
      %v4300 = vadd.f32 %v4083, %v4264
      %v4301 = vadd.f32 %v4084, %v4265
      %v4302 = vadd.f32 %v4085, %v4266
      %4303 = vset.pattern.permute.xlu0 2
      %4304 = vperm.xlu0 %4303, %v3795
      %v4305 = vpop.permute.xlu0 %4304
      %4307 = vset.pattern.permute.xlu0 2
      %4308 = vperm.xlu0 %4307, %v3796
      %v4309 = vpop.permute.xlu0 %4308
      %4311 = vset.pattern.permute.xlu0 2
      %4312 = vperm.xlu0 %4311, %v3797
      %v4313 = vpop.permute.xlu0 %4312
      %4315 = vset.pattern.permute.xlu0 2
      %4316 = vperm.xlu0 %4315, %v3798
      %v4317 = vpop.permute.xlu0 %4316
      %4319 = vset.pattern.permute.xlu0 2
      %4320 = vperm.xlu0 %4319, %v3799
      %v4321 = vpop.permute.xlu0 %4320
      %4323 = vset.pattern.permute.xlu0 2
      %4324 = vperm.xlu0 %4323, %v3800
      %v4325 = vpop.permute.xlu0 %4324
      %4327 = vset.pattern.permute.xlu0 2
      %4328 = vperm.xlu0 %4327, %v3801
      %v4329 = vpop.permute.xlu0 %4328
      %4331 = vset.pattern.permute.xlu0 2
      %4332 = vperm.xlu0 %4331, %v3802
      %v4333 = vpop.permute.xlu0 %4332
      %4335 = vset.pattern.permute.xlu0 2
      %4336 = vperm.xlu0 %4335, %v3803
      %v4337 = vpop.permute.xlu0 %4336
      %4339 = vset.pattern.permute.xlu0 2
      %4340 = vperm.xlu0 %4339, %v3804
      %v4341 = vpop.permute.xlu0 %4340
      %4343 = vset.pattern.permute.xlu0 2
      %4344 = vperm.xlu0 %4343, %v3805
      %v4345 = vpop.permute.xlu0 %4344
      %4347 = vset.pattern.permute.xlu0 2
      %4348 = vperm.xlu0 %4347, %v3806
      %v4349 = vpop.permute.xlu0 %4348
      %4351 = vset.pattern.permute.xlu0 2
      %4352 = vperm.xlu0 %4351, %v3807
      %v4353 = vpop.permute.xlu0 %4352
      %4355 = vset.pattern.permute.xlu0 2
      %4356 = vperm.xlu0 %4355, %v3808
      %v4357 = vpop.permute.xlu0 %4356
      %4359 = vset.pattern.permute.xlu0 2
      %4360 = vperm.xlu0 %4359, %v3809
      %v4361 = vpop.permute.xlu0 %4360
      %4363 = vset.pattern.permute.xlu0 2
      %4364 = vperm.xlu0 %4363, %v3810
      %v4365 = vpop.permute.xlu0 %4364
      %4367 = vset.pattern.permute.xlu0 2
      %4368 = vperm.xlu0 %4367, %v3811
      %v4369 = vpop.permute.xlu0 %4368
      %4371 = vset.pattern.permute.xlu0 2
      %4372 = vperm.xlu0 %4371, %v3812
      %v4373 = vpop.permute.xlu0 %4372
      %4375 = vset.pattern.permute.xlu0 2
      %4376 = vperm.xlu0 %4375, %v3813
      %v4377 = vpop.permute.xlu0 %4376
      %4379 = vset.pattern.permute.xlu0 2
      %4380 = vperm.xlu0 %4379, %v3814
      %v4381 = vpop.permute.xlu0 %4380
      %4383 = vset.pattern.permute.xlu0 2
      %4384 = vperm.xlu0 %4383, %v3815
      %v4385 = vpop.permute.xlu0 %4384
      %4387 = vset.pattern.permute.xlu0 2
      %4388 = vperm.xlu0 %4387, %v3816
      %v4389 = vpop.permute.xlu0 %4388
      %4391 = vset.pattern.permute.xlu0 2
      %4392 = vperm.xlu0 %4391, %v3817
      %v4393 = vpop.permute.xlu0 %4392
      %4395 = vset.pattern.permute.xlu0 2
      %4396 = vperm.xlu0 %4395, %v3818
      %v4397 = vpop.permute.xlu0 %4396
      %4399 = vset.pattern.permute.xlu0 2
      %4400 = vperm.xlu0 %4399, %v3819
      %v4401 = vpop.permute.xlu0 %4400
      %4403 = vset.pattern.permute.xlu0 2
      %4404 = vperm.xlu0 %4403, %v3820
      %v4405 = vpop.permute.xlu0 %4404
      %4407 = vset.pattern.permute.xlu0 2
      %4408 = vperm.xlu0 %4407, %v3821
      %v4409 = vpop.permute.xlu0 %4408
      %4411 = vset.pattern.permute.xlu0 2
      %4412 = vperm.xlu0 %4411, %v3822
      %v4413 = vpop.permute.xlu0 %4412
      %4415 = vset.pattern.permute.xlu0 2
      %4416 = vperm.xlu0 %4415, %v3823
      %v4417 = vpop.permute.xlu0 %4416
      %4419 = vset.pattern.permute.xlu0 2
      %4420 = vperm.xlu0 %4419, %v3824
      %v4421 = vpop.permute.xlu0 %4420
      %4423 = vset.pattern.permute.xlu0 2
      %4424 = vperm.xlu0 %4423, %v3825
      %v4425 = vpop.permute.xlu0 %4424
      %4427 = vset.pattern.permute.xlu0 2
      %4428 = vperm.xlu0 %4427, %v3826
      %v4429 = vpop.permute.xlu0 %4428
      %4431 = vset.pattern.permute.xlu0 2
      %4432 = vperm.xlu0 %4431, %v3827
      %v4433 = vpop.permute.xlu0 %4432
      %4435 = vset.pattern.permute.xlu0 2
      %4436 = vperm.xlu0 %4435, %v3828
      %v4437 = vpop.permute.xlu0 %4436
      %4439 = vset.pattern.permute.xlu0 2
      %4440 = vperm.xlu0 %4439, %v3829
      %v4441 = vpop.permute.xlu0 %4440
      %4443 = vset.pattern.permute.xlu0 2
      %4444 = vperm.xlu0 %4443, %v3830
      %v4445 = vpop.permute.xlu0 %4444
      %v4447 = vperm.slane %v3832, 2
      %v4448 = vmul.f32 %v4305, %v4447
      %v4449 = vmul.f32 %v4309, %v4447
      %v4450 = vmul.f32 %v4313, %v4447
      %v4451 = vmul.f32 %v4317, %v4447
      %v4452 = vmul.f32 %v4321, %v4447
      %v4453 = vmul.f32 %v4325, %v4447
      %v4454 = vmul.f32 %v4329, %v4447
      %v4455 = vmul.f32 %v4333, %v4447
      %v4456 = vmul.f32 %v4337, %v4447
      %v4457 = vmul.f32 %v4341, %v4447
      %v4458 = vmul.f32 %v4345, %v4447
      %v4459 = vmul.f32 %v4349, %v4447
      %v4460 = vmul.f32 %v4353, %v4447
      %v4461 = vmul.f32 %v4357, %v4447
      %v4462 = vmul.f32 %v4361, %v4447
      %v4463 = vmul.f32 %v4365, %v4447
      %v4464 = vmul.f32 %v4369, %v4447
      %v4465 = vmul.f32 %v4373, %v4447
      %v4466 = vmul.f32 %v4377, %v4447
      %v4467 = vmul.f32 %v4381, %v4447
      %v4468 = vmul.f32 %v4385, %v4447
      %v4469 = vmul.f32 %v4389, %v4447
      %v4470 = vmul.f32 %v4393, %v4447
      %v4471 = vmul.f32 %v4397, %v4447
      %v4472 = vmul.f32 %v4401, %v4447
      %v4473 = vmul.f32 %v4405, %v4447
      %v4474 = vmul.f32 %v4409, %v4447
      %v4475 = vmul.f32 %v4413, %v4447
      %v4476 = vmul.f32 %v4417, %v4447
      %v4477 = vmul.f32 %v4421, %v4447
      %v4478 = vmul.f32 %v4425, %v4447
      %v4479 = vmul.f32 %v4429, %v4447
      %v4480 = vmul.f32 %v4433, %v4447
      %v4481 = vmul.f32 %v4437, %v4447
      %v4482 = vmul.f32 %v4441, %v4447
      %v4483 = vmul.f32 %v4445, %v4447
      %v4484 = vadd.f32 %v4267, %v4448
      %v4485 = vadd.f32 %v4268, %v4449
      %v4486 = vadd.f32 %v4269, %v4450
      %v4487 = vadd.f32 %v4270, %v4451
      %v4488 = vadd.f32 %v4271, %v4452
      %v4489 = vadd.f32 %v4272, %v4453
      %v4490 = vadd.f32 %v4273, %v4454
      %v4491 = vadd.f32 %v4274, %v4455
      %v4492 = vadd.f32 %v4275, %v4456
      %v4493 = vadd.f32 %v4276, %v4457
      %v4494 = vadd.f32 %v4277, %v4458
      %v4495 = vadd.f32 %v4278, %v4459
      %v4496 = vadd.f32 %v4279, %v4460
      %v4497 = vadd.f32 %v4280, %v4461
      %v4498 = vadd.f32 %v4281, %v4462
      %v4499 = vadd.f32 %v4282, %v4463
      %v4500 = vadd.f32 %v4283, %v4464
      %v4501 = vadd.f32 %v4284, %v4465
      %v4502 = vadd.f32 %v4285, %v4466
      %v4503 = vadd.f32 %v4286, %v4467
      %v4504 = vadd.f32 %v4287, %v4468
      %v4505 = vadd.f32 %v4288, %v4469
      %v4506 = vadd.f32 %v4289, %v4470
      %v4507 = vadd.f32 %v4290, %v4471
      %v4508 = vadd.f32 %v4291, %v4472
      %v4509 = vadd.f32 %v4292, %v4473
      %v4510 = vadd.f32 %v4293, %v4474
      %v4511 = vadd.f32 %v4294, %v4475
      %v4512 = vadd.f32 %v4295, %v4476
      %v4513 = vadd.f32 %v4296, %v4477
      %v4514 = vadd.f32 %v4297, %v4478
      %v4515 = vadd.f32 %v4298, %v4479
      %v4516 = vadd.f32 %v4299, %v4480
      %v4517 = vadd.f32 %v4300, %v4481
      %v4518 = vadd.f32 %v4301, %v4482
      %v4519 = vadd.f32 %v4302, %v4483
      %v4520 = vld [vmem:[%s165 + $0x24] sm:$0xff]
      %v4521 = vld [vmem:[%s165 + $0x2c] sm:$0xff]
      %v4522 = vld [vmem:[%s165 + $0x34] sm:$0xff]
      %v4523 = vld [vmem:[%s165 + $0x3c] sm:$0xff]
      %v4524 = vld [vmem:[%s165 + $0x44] sm:$0xff]
      %v4525 = vld [vmem:[%s165 + $0x4c] sm:$0xff]
      %v4526 = vld [vmem:[%s165 + $0x54] sm:$0xff]
      %v4527 = vld [vmem:[%s165 + $0x5c] sm:$0xff]
      %v4528 = vld [vmem:[%s165 + $0x64] sm:$0xff]
      %v4529 = vld [vmem:[%s165 + $0x6c] sm:$0xff]
      %v4530 = vld [vmem:[%s165 + $0x74] sm:$0xff]
      %v4531 = vld [vmem:[%s165 + $0x7c] sm:$0xff]
      %v4532 = vld [vmem:[%s165 + $0x84] sm:$0xff]
      %v4533 = vld [vmem:[%s165 + $0x8c] sm:$0xff]
      %v4534 = vld [vmem:[%s165 + $0x94] sm:$0xff]
      %v4535 = vld [vmem:[%s165 + $0x9c] sm:$0xff]
      %v4536 = vld [vmem:[%s165 + $0xa4] sm:$0xff]
      %v4537 = vld [vmem:[%s165 + $0xac] sm:$0xff]
      %v4538 = vld [vmem:[%s165 + $0xb4] sm:$0xff]
      %v4539 = vld [vmem:[%s165 + $0xbc] sm:$0xff]
      %v4540 = vld [vmem:[%s165 + $0xc4] sm:$0xff]
      %v4541 = vld [vmem:[%s165 + $0xcc] sm:$0xff]
      %v4542 = vld [vmem:[%s165 + $0xd4] sm:$0xff]
      %v4543 = vld [vmem:[%s165 + $0xdc] sm:$0xff]
      %v4544 = vld [vmem:[%s165 + $0xe4] sm:$0xff]
      %v4545 = vld [vmem:[%s165 + $0xec] sm:$0xff]
      %v4546 = vld [vmem:[%s165 + $0xf4] sm:$0xff]
      %v4547 = vld [vmem:[%s165 + $0xfc] sm:$0xff]
      %v4548 = vld [vmem:[%s165 + $0x104] sm:$0xff]
      %v4549 = vld [vmem:[%s165 + $0x10c] sm:$0xff]
      %v4550 = vld [vmem:[%s165 + $0x114] sm:$0xff]
      %v4551 = vld [vmem:[%s165 + $0x11c] sm:$0xff]
      %v4552 = vld [vmem:[%s165 + $0x124] sm:$0xff]
      %v4553 = vld [vmem:[%s165 + $0x12c] sm:$0xff]
      %v4554 = vld [vmem:[%s165 + $0x134] sm:$0xff]
      %v4555 = vld [vmem:[%s165 + $0x13c] sm:$0xff]
      %s4556 = scalar_lea.vmem %s1, 24
      %v4557 = vld [vmem:[%s4556] sm:$0x7]
      %4559 = vset.pattern.permute.xlu0 0
      %4560 = vperm.xlu0 %4559, %v4520
      %v4561 = vpop.permute.xlu0 %4560
      %4564 = vset.pattern.permute.xlu0 0
      %4565 = vperm.xlu0 %4564, %v4521
      %v4566 = vpop.permute.xlu0 %4565
      %4569 = vset.pattern.permute.xlu0 0
      %4570 = vperm.xlu0 %4569, %v4522
      %v4571 = vpop.permute.xlu0 %4570
      %4574 = vset.pattern.permute.xlu0 0
      %4575 = vperm.xlu0 %4574, %v4523
      %v4576 = vpop.permute.xlu0 %4575
      %4579 = vset.pattern.permute.xlu0 0
      %4580 = vperm.xlu0 %4579, %v4524
      %v4581 = vpop.permute.xlu0 %4580
      %4584 = vset.pattern.permute.xlu0 0
      %4585 = vperm.xlu0 %4584, %v4525
      %v4586 = vpop.permute.xlu0 %4585
      %4589 = vset.pattern.permute.xlu0 0
      %4590 = vperm.xlu0 %4589, %v4526
      %v4591 = vpop.permute.xlu0 %4590
      %4594 = vset.pattern.permute.xlu0 0
      %4595 = vperm.xlu0 %4594, %v4527
      %v4596 = vpop.permute.xlu0 %4595
      %4599 = vset.pattern.permute.xlu0 0
      %4600 = vperm.xlu0 %4599, %v4528
      %v4601 = vpop.permute.xlu0 %4600
      %4604 = vset.pattern.permute.xlu0 0
      %4605 = vperm.xlu0 %4604, %v4529
      %v4606 = vpop.permute.xlu0 %4605
      %4609 = vset.pattern.permute.xlu0 0
      %4610 = vperm.xlu0 %4609, %v4530
      %v4611 = vpop.permute.xlu0 %4610
      %4614 = vset.pattern.permute.xlu0 0
      %4615 = vperm.xlu0 %4614, %v4531
      %v4616 = vpop.permute.xlu0 %4615
      %4619 = vset.pattern.permute.xlu0 0
      %4620 = vperm.xlu0 %4619, %v4532
      %v4621 = vpop.permute.xlu0 %4620
      %4624 = vset.pattern.permute.xlu0 0
      %4625 = vperm.xlu0 %4624, %v4533
      %v4626 = vpop.permute.xlu0 %4625
      %4629 = vset.pattern.permute.xlu0 0
      %4630 = vperm.xlu0 %4629, %v4534
      %v4631 = vpop.permute.xlu0 %4630
      %4634 = vset.pattern.permute.xlu0 0
      %4635 = vperm.xlu0 %4634, %v4535
      %v4636 = vpop.permute.xlu0 %4635
      %4639 = vset.pattern.permute.xlu0 0
      %4640 = vperm.xlu0 %4639, %v4536
      %v4641 = vpop.permute.xlu0 %4640
      %4644 = vset.pattern.permute.xlu0 0
      %4645 = vperm.xlu0 %4644, %v4537
      %v4646 = vpop.permute.xlu0 %4645
      %4649 = vset.pattern.permute.xlu0 0
      %4650 = vperm.xlu0 %4649, %v4538
      %v4651 = vpop.permute.xlu0 %4650
      %4654 = vset.pattern.permute.xlu0 0
      %4655 = vperm.xlu0 %4654, %v4539
      %v4656 = vpop.permute.xlu0 %4655
      %4659 = vset.pattern.permute.xlu0 0
      %4660 = vperm.xlu0 %4659, %v4540
      %v4661 = vpop.permute.xlu0 %4660
      %4664 = vset.pattern.permute.xlu0 0
      %4665 = vperm.xlu0 %4664, %v4541
      %v4666 = vpop.permute.xlu0 %4665
      %4669 = vset.pattern.permute.xlu0 0
      %4670 = vperm.xlu0 %4669, %v4542
      %v4671 = vpop.permute.xlu0 %4670
      %4674 = vset.pattern.permute.xlu0 0
      %4675 = vperm.xlu0 %4674, %v4543
      %v4676 = vpop.permute.xlu0 %4675
      %4679 = vset.pattern.permute.xlu0 0
      %4680 = vperm.xlu0 %4679, %v4544
      %v4681 = vpop.permute.xlu0 %4680
      %4684 = vset.pattern.permute.xlu0 0
      %4685 = vperm.xlu0 %4684, %v4545
      %v4686 = vpop.permute.xlu0 %4685
      %4689 = vset.pattern.permute.xlu0 0
      %4690 = vperm.xlu0 %4689, %v4546
      %v4691 = vpop.permute.xlu0 %4690
      %4694 = vset.pattern.permute.xlu0 0
      %4695 = vperm.xlu0 %4694, %v4547
      %v4696 = vpop.permute.xlu0 %4695
      %4699 = vset.pattern.permute.xlu0 0
      %4700 = vperm.xlu0 %4699, %v4548
      %v4701 = vpop.permute.xlu0 %4700
      %4704 = vset.pattern.permute.xlu0 0
      %4705 = vperm.xlu0 %4704, %v4549
      %v4706 = vpop.permute.xlu0 %4705
      %4709 = vset.pattern.permute.xlu0 0
      %4710 = vperm.xlu0 %4709, %v4550
      %v4711 = vpop.permute.xlu0 %4710
      %4714 = vset.pattern.permute.xlu0 0
      %4715 = vperm.xlu0 %4714, %v4551
      %v4716 = vpop.permute.xlu0 %4715
      %4719 = vset.pattern.permute.xlu0 0
      %4720 = vperm.xlu0 %4719, %v4552
      %v4721 = vpop.permute.xlu0 %4720
      %4724 = vset.pattern.permute.xlu0 0
      %4725 = vperm.xlu0 %4724, %v4553
      %v4726 = vpop.permute.xlu0 %4725
      %4729 = vset.pattern.permute.xlu0 0
      %4730 = vperm.xlu0 %4729, %v4554
      %v4731 = vpop.permute.xlu0 %4730
      %4734 = vset.pattern.permute.xlu0 0
      %4735 = vperm.xlu0 %4734, %v4555
      %v4736 = vpop.permute.xlu0 %4735
      %v4738 = vperm.slane %v4557, 0
      %v4739 = vmul.f32 %v4561, %v4738
      %v4740 = vmul.f32 %v4566, %v4738
      %v4741 = vmul.f32 %v4571, %v4738
      %v4742 = vmul.f32 %v4576, %v4738
      %v4743 = vmul.f32 %v4581, %v4738
      %v4744 = vmul.f32 %v4586, %v4738
      %v4745 = vmul.f32 %v4591, %v4738
      %v4746 = vmul.f32 %v4596, %v4738
      %v4747 = vmul.f32 %v4601, %v4738
      %v4748 = vmul.f32 %v4606, %v4738
      %v4749 = vmul.f32 %v4611, %v4738
      %v4750 = vmul.f32 %v4616, %v4738
      %v4751 = vmul.f32 %v4621, %v4738
      %v4752 = vmul.f32 %v4626, %v4738
      %v4753 = vmul.f32 %v4631, %v4738
      %v4754 = vmul.f32 %v4636, %v4738
      %v4755 = vmul.f32 %v4641, %v4738
      %v4756 = vmul.f32 %v4646, %v4738
      %v4757 = vmul.f32 %v4651, %v4738
      %v4758 = vmul.f32 %v4656, %v4738
      %v4759 = vmul.f32 %v4661, %v4738
      %v4760 = vmul.f32 %v4666, %v4738
      %v4761 = vmul.f32 %v4671, %v4738
      %v4762 = vmul.f32 %v4676, %v4738
      %v4763 = vmul.f32 %v4681, %v4738
      %v4764 = vmul.f32 %v4686, %v4738
      %v4765 = vmul.f32 %v4691, %v4738
      %v4766 = vmul.f32 %v4696, %v4738
      %v4767 = vmul.f32 %v4701, %v4738
      %v4768 = vmul.f32 %v4706, %v4738
      %v4769 = vmul.f32 %v4711, %v4738
      %v4770 = vmul.f32 %v4716, %v4738
      %v4771 = vmul.f32 %v4721, %v4738
      %v4772 = vmul.f32 %v4726, %v4738
      %v4773 = vmul.f32 %v4731, %v4738
      %v4774 = vmul.f32 %v4736, %v4738
      %v4775 = vadd.f32 %v4484, %v4739
      %v4776 = vadd.f32 %v4485, %v4740
      %v4777 = vadd.f32 %v4486, %v4741
      %v4778 = vadd.f32 %v4487, %v4742
      %v4779 = vadd.f32 %v4488, %v4743
      %v4780 = vadd.f32 %v4489, %v4744
      %v4781 = vadd.f32 %v4490, %v4745
      %v4782 = vadd.f32 %v4491, %v4746
      %v4783 = vadd.f32 %v4492, %v4747
      %v4784 = vadd.f32 %v4493, %v4748
      %v4785 = vadd.f32 %v4494, %v4749
      %v4786 = vadd.f32 %v4495, %v4750
      %v4787 = vadd.f32 %v4496, %v4751
      %v4788 = vadd.f32 %v4497, %v4752
      %v4789 = vadd.f32 %v4498, %v4753
      %v4790 = vadd.f32 %v4499, %v4754
      %v4791 = vadd.f32 %v4500, %v4755
      %v4792 = vadd.f32 %v4501, %v4756
      %v4793 = vadd.f32 %v4502, %v4757
      %v4794 = vadd.f32 %v4503, %v4758
      %v4795 = vadd.f32 %v4504, %v4759
      %v4796 = vadd.f32 %v4505, %v4760
      %v4797 = vadd.f32 %v4506, %v4761
      %v4798 = vadd.f32 %v4507, %v4762
      %v4799 = vadd.f32 %v4508, %v4763
      %v4800 = vadd.f32 %v4509, %v4764
      %v4801 = vadd.f32 %v4510, %v4765
      %v4802 = vadd.f32 %v4511, %v4766
      %v4803 = vadd.f32 %v4512, %v4767
      %v4804 = vadd.f32 %v4513, %v4768
      %v4805 = vadd.f32 %v4514, %v4769
      %v4806 = vadd.f32 %v4515, %v4770
      %v4807 = vadd.f32 %v4516, %v4771
      %v4808 = vadd.f32 %v4517, %v4772
      %v4809 = vadd.f32 %v4518, %v4773
      %v4810 = vadd.f32 %v4519, %v4774
      %4811 = vset.pattern.permute.xlu0 1
      %4812 = vperm.xlu0 %4811, %v4520
      %v4813 = vpop.permute.xlu0 %4812
      %4815 = vset.pattern.permute.xlu0 1
      %4816 = vperm.xlu0 %4815, %v4521
      %v4817 = vpop.permute.xlu0 %4816
      %4819 = vset.pattern.permute.xlu0 1
      %4820 = vperm.xlu0 %4819, %v4522
      %v4821 = vpop.permute.xlu0 %4820
      %4823 = vset.pattern.permute.xlu0 1
      %4824 = vperm.xlu0 %4823, %v4523
      %v4825 = vpop.permute.xlu0 %4824
      %4827 = vset.pattern.permute.xlu0 1
      %4828 = vperm.xlu0 %4827, %v4524
      %v4829 = vpop.permute.xlu0 %4828
      %4831 = vset.pattern.permute.xlu0 1
      %4832 = vperm.xlu0 %4831, %v4525
      %v4833 = vpop.permute.xlu0 %4832
      %4835 = vset.pattern.permute.xlu0 1
      %4836 = vperm.xlu0 %4835, %v4526
      %v4837 = vpop.permute.xlu0 %4836
      %4839 = vset.pattern.permute.xlu0 1
      %4840 = vperm.xlu0 %4839, %v4527
      %v4841 = vpop.permute.xlu0 %4840
      %4843 = vset.pattern.permute.xlu0 1
      %4844 = vperm.xlu0 %4843, %v4528
      %v4845 = vpop.permute.xlu0 %4844
      %4847 = vset.pattern.permute.xlu0 1
      %4848 = vperm.xlu0 %4847, %v4529
      %v4849 = vpop.permute.xlu0 %4848
      %4851 = vset.pattern.permute.xlu0 1
      %4852 = vperm.xlu0 %4851, %v4530
      %v4853 = vpop.permute.xlu0 %4852
      %4855 = vset.pattern.permute.xlu0 1
      %4856 = vperm.xlu0 %4855, %v4531
      %v4857 = vpop.permute.xlu0 %4856
      %4859 = vset.pattern.permute.xlu0 1
      %4860 = vperm.xlu0 %4859, %v4532
      %v4861 = vpop.permute.xlu0 %4860
      %4863 = vset.pattern.permute.xlu0 1
      %4864 = vperm.xlu0 %4863, %v4533
      %v4865 = vpop.permute.xlu0 %4864
      %4867 = vset.pattern.permute.xlu0 1
      %4868 = vperm.xlu0 %4867, %v4534
      %v4869 = vpop.permute.xlu0 %4868
      %4871 = vset.pattern.permute.xlu0 1
      %4872 = vperm.xlu0 %4871, %v4535
      %v4873 = vpop.permute.xlu0 %4872
      %4875 = vset.pattern.permute.xlu0 1
      %4876 = vperm.xlu0 %4875, %v4536
      %v4877 = vpop.permute.xlu0 %4876
      %4879 = vset.pattern.permute.xlu0 1
      %4880 = vperm.xlu0 %4879, %v4537
      %v4881 = vpop.permute.xlu0 %4880
      %4883 = vset.pattern.permute.xlu0 1
      %4884 = vperm.xlu0 %4883, %v4538
      %v4885 = vpop.permute.xlu0 %4884
      %4887 = vset.pattern.permute.xlu0 1
      %4888 = vperm.xlu0 %4887, %v4539
      %v4889 = vpop.permute.xlu0 %4888
      %4891 = vset.pattern.permute.xlu0 1
      %4892 = vperm.xlu0 %4891, %v4540
      %v4893 = vpop.permute.xlu0 %4892
      %4895 = vset.pattern.permute.xlu0 1
      %4896 = vperm.xlu0 %4895, %v4541
      %v4897 = vpop.permute.xlu0 %4896
      %4899 = vset.pattern.permute.xlu0 1
      %4900 = vperm.xlu0 %4899, %v4542
      %v4901 = vpop.permute.xlu0 %4900
      %4903 = vset.pattern.permute.xlu0 1
      %4904 = vperm.xlu0 %4903, %v4543
      %v4905 = vpop.permute.xlu0 %4904
      %4907 = vset.pattern.permute.xlu0 1
      %4908 = vperm.xlu0 %4907, %v4544
      %v4909 = vpop.permute.xlu0 %4908
      %4911 = vset.pattern.permute.xlu0 1
      %4912 = vperm.xlu0 %4911, %v4545
      %v4913 = vpop.permute.xlu0 %4912
      %4915 = vset.pattern.permute.xlu0 1
      %4916 = vperm.xlu0 %4915, %v4546
      %v4917 = vpop.permute.xlu0 %4916
      %4919 = vset.pattern.permute.xlu0 1
      %4920 = vperm.xlu0 %4919, %v4547
      %v4921 = vpop.permute.xlu0 %4920
      %4923 = vset.pattern.permute.xlu0 1
      %4924 = vperm.xlu0 %4923, %v4548
      %v4925 = vpop.permute.xlu0 %4924
      %4927 = vset.pattern.permute.xlu0 1
      %4928 = vperm.xlu0 %4927, %v4549
      %v4929 = vpop.permute.xlu0 %4928
      %4931 = vset.pattern.permute.xlu0 1
      %4932 = vperm.xlu0 %4931, %v4550
      %v4933 = vpop.permute.xlu0 %4932
      %4935 = vset.pattern.permute.xlu0 1
      %4936 = vperm.xlu0 %4935, %v4551
      %v4937 = vpop.permute.xlu0 %4936
      %4939 = vset.pattern.permute.xlu0 1
      %4940 = vperm.xlu0 %4939, %v4552
      %v4941 = vpop.permute.xlu0 %4940
      %4943 = vset.pattern.permute.xlu0 1
      %4944 = vperm.xlu0 %4943, %v4553
      %v4945 = vpop.permute.xlu0 %4944
      %4947 = vset.pattern.permute.xlu0 1
      %4948 = vperm.xlu0 %4947, %v4554
      %v4949 = vpop.permute.xlu0 %4948
      %4951 = vset.pattern.permute.xlu0 1
      %4952 = vperm.xlu0 %4951, %v4555
      %v4953 = vpop.permute.xlu0 %4952
      %v4955 = vperm.slane %v4557, 1
      %v4956 = vmul.f32 %v4813, %v4955
      %v4957 = vmul.f32 %v4817, %v4955
      %v4958 = vmul.f32 %v4821, %v4955
      %v4959 = vmul.f32 %v4825, %v4955
      %v4960 = vmul.f32 %v4829, %v4955
      %v4961 = vmul.f32 %v4833, %v4955
      %v4962 = vmul.f32 %v4837, %v4955
      %v4963 = vmul.f32 %v4841, %v4955
      %v4964 = vmul.f32 %v4845, %v4955
      %v4965 = vmul.f32 %v4849, %v4955
      %v4966 = vmul.f32 %v4853, %v4955
      %v4967 = vmul.f32 %v4857, %v4955
      %v4968 = vmul.f32 %v4861, %v4955
      %v4969 = vmul.f32 %v4865, %v4955
      %v4970 = vmul.f32 %v4869, %v4955
      %v4971 = vmul.f32 %v4873, %v4955
      %v4972 = vmul.f32 %v4877, %v4955
      %v4973 = vmul.f32 %v4881, %v4955
      %v4974 = vmul.f32 %v4885, %v4955
      %v4975 = vmul.f32 %v4889, %v4955
      %v4976 = vmul.f32 %v4893, %v4955
      %v4977 = vmul.f32 %v4897, %v4955
      %v4978 = vmul.f32 %v4901, %v4955
      %v4979 = vmul.f32 %v4905, %v4955
      %v4980 = vmul.f32 %v4909, %v4955
      %v4981 = vmul.f32 %v4913, %v4955
      %v4982 = vmul.f32 %v4917, %v4955
      %v4983 = vmul.f32 %v4921, %v4955
      %v4984 = vmul.f32 %v4925, %v4955
      %v4985 = vmul.f32 %v4929, %v4955
      %v4986 = vmul.f32 %v4933, %v4955
      %v4987 = vmul.f32 %v4937, %v4955
      %v4988 = vmul.f32 %v4941, %v4955
      %v4989 = vmul.f32 %v4945, %v4955
      %v4990 = vmul.f32 %v4949, %v4955
      %v4991 = vmul.f32 %v4953, %v4955
      %v4992 = vadd.f32 %v4775, %v4956
      %v4993 = vadd.f32 %v4776, %v4957
      %v4994 = vadd.f32 %v4777, %v4958
      %v4995 = vadd.f32 %v4778, %v4959
      %v4996 = vadd.f32 %v4779, %v4960
      %v4997 = vadd.f32 %v4780, %v4961
      %v4998 = vadd.f32 %v4781, %v4962
      %v4999 = vadd.f32 %v4782, %v4963
      %v5000 = vadd.f32 %v4783, %v4964
      %v5001 = vadd.f32 %v4784, %v4965
      %v5002 = vadd.f32 %v4785, %v4966
      %v5003 = vadd.f32 %v4786, %v4967
      %v5004 = vadd.f32 %v4787, %v4968
      %v5005 = vadd.f32 %v4788, %v4969
      %v5006 = vadd.f32 %v4789, %v4970
      %v5007 = vadd.f32 %v4790, %v4971
      %v5008 = vadd.f32 %v4791, %v4972
      %v5009 = vadd.f32 %v4792, %v4973
      %v5010 = vadd.f32 %v4793, %v4974
      %v5011 = vadd.f32 %v4794, %v4975
      %v5012 = vadd.f32 %v4795, %v4976
      %v5013 = vadd.f32 %v4796, %v4977
      %v5014 = vadd.f32 %v4797, %v4978
      %v5015 = vadd.f32 %v4798, %v4979
      %v5016 = vadd.f32 %v4799, %v4980
      %v5017 = vadd.f32 %v4800, %v4981
      %v5018 = vadd.f32 %v4801, %v4982
      %v5019 = vadd.f32 %v4802, %v4983
      %v5020 = vadd.f32 %v4803, %v4984
      %v5021 = vadd.f32 %v4804, %v4985
      %v5022 = vadd.f32 %v4805, %v4986
      %v5023 = vadd.f32 %v4806, %v4987
      %v5024 = vadd.f32 %v4807, %v4988
      %v5025 = vadd.f32 %v4808, %v4989
      %v5026 = vadd.f32 %v4809, %v4990
      %v5027 = vadd.f32 %v4810, %v4991
      %5028 = vset.pattern.permute.xlu0 2
      %5029 = vperm.xlu0 %5028, %v4520
      %v5030 = vpop.permute.xlu0 %5029
      %5032 = vset.pattern.permute.xlu0 2
      %5033 = vperm.xlu0 %5032, %v4521
      %v5034 = vpop.permute.xlu0 %5033
      %5036 = vset.pattern.permute.xlu0 2
      %5037 = vperm.xlu0 %5036, %v4522
      %v5038 = vpop.permute.xlu0 %5037
      %5040 = vset.pattern.permute.xlu0 2
      %5041 = vperm.xlu0 %5040, %v4523
      %v5042 = vpop.permute.xlu0 %5041
      %5044 = vset.pattern.permute.xlu0 2
      %5045 = vperm.xlu0 %5044, %v4524
      %v5046 = vpop.permute.xlu0 %5045
      %5048 = vset.pattern.permute.xlu0 2
      %5049 = vperm.xlu0 %5048, %v4525
      %v5050 = vpop.permute.xlu0 %5049
      %5052 = vset.pattern.permute.xlu0 2
      %5053 = vperm.xlu0 %5052, %v4526
      %v5054 = vpop.permute.xlu0 %5053
      %5056 = vset.pattern.permute.xlu0 2
      %5057 = vperm.xlu0 %5056, %v4527
      %v5058 = vpop.permute.xlu0 %5057
      %5060 = vset.pattern.permute.xlu0 2
      %5061 = vperm.xlu0 %5060, %v4528
      %v5062 = vpop.permute.xlu0 %5061
      %5064 = vset.pattern.permute.xlu0 2
      %5065 = vperm.xlu0 %5064, %v4529
      %v5066 = vpop.permute.xlu0 %5065
      %5068 = vset.pattern.permute.xlu0 2
      %5069 = vperm.xlu0 %5068, %v4530
      %v5070 = vpop.permute.xlu0 %5069
      %5072 = vset.pattern.permute.xlu0 2
      %5073 = vperm.xlu0 %5072, %v4531
      %v5074 = vpop.permute.xlu0 %5073
      %5076 = vset.pattern.permute.xlu0 2
      %5077 = vperm.xlu0 %5076, %v4532
      %v5078 = vpop.permute.xlu0 %5077
      %5080 = vset.pattern.permute.xlu0 2
      %5081 = vperm.xlu0 %5080, %v4533
      %v5082 = vpop.permute.xlu0 %5081
      %5084 = vset.pattern.permute.xlu0 2
      %5085 = vperm.xlu0 %5084, %v4534
      %v5086 = vpop.permute.xlu0 %5085
      %5088 = vset.pattern.permute.xlu0 2
      %5089 = vperm.xlu0 %5088, %v4535
      %v5090 = vpop.permute.xlu0 %5089
      %5092 = vset.pattern.permute.xlu0 2
      %5093 = vperm.xlu0 %5092, %v4536
      %v5094 = vpop.permute.xlu0 %5093
      %5096 = vset.pattern.permute.xlu0 2
      %5097 = vperm.xlu0 %5096, %v4537
      %v5098 = vpop.permute.xlu0 %5097
      %5100 = vset.pattern.permute.xlu0 2
      %5101 = vperm.xlu0 %5100, %v4538
      %v5102 = vpop.permute.xlu0 %5101
      %5104 = vset.pattern.permute.xlu0 2
      %5105 = vperm.xlu0 %5104, %v4539
      %v5106 = vpop.permute.xlu0 %5105
      %5108 = vset.pattern.permute.xlu0 2
      %5109 = vperm.xlu0 %5108, %v4540
      %v5110 = vpop.permute.xlu0 %5109
      %5112 = vset.pattern.permute.xlu0 2
      %5113 = vperm.xlu0 %5112, %v4541
      %v5114 = vpop.permute.xlu0 %5113
      %5116 = vset.pattern.permute.xlu0 2
      %5117 = vperm.xlu0 %5116, %v4542
      %v5118 = vpop.permute.xlu0 %5117
      %5120 = vset.pattern.permute.xlu0 2
      %5121 = vperm.xlu0 %5120, %v4543
      %v5122 = vpop.permute.xlu0 %5121
      %5124 = vset.pattern.permute.xlu0 2
      %5125 = vperm.xlu0 %5124, %v4544
      %v5126 = vpop.permute.xlu0 %5125
      %5128 = vset.pattern.permute.xlu0 2
      %5129 = vperm.xlu0 %5128, %v4545
      %v5130 = vpop.permute.xlu0 %5129
      %5132 = vset.pattern.permute.xlu0 2
      %5133 = vperm.xlu0 %5132, %v4546
      %v5134 = vpop.permute.xlu0 %5133
      %5136 = vset.pattern.permute.xlu0 2
      %5137 = vperm.xlu0 %5136, %v4547
      %v5138 = vpop.permute.xlu0 %5137
      %5140 = vset.pattern.permute.xlu0 2
      %5141 = vperm.xlu0 %5140, %v4548
      %v5142 = vpop.permute.xlu0 %5141
      %5144 = vset.pattern.permute.xlu0 2
      %5145 = vperm.xlu0 %5144, %v4549
      %v5146 = vpop.permute.xlu0 %5145
      %5148 = vset.pattern.permute.xlu0 2
      %5149 = vperm.xlu0 %5148, %v4550
      %v5150 = vpop.permute.xlu0 %5149
      %5152 = vset.pattern.permute.xlu0 2
      %5153 = vperm.xlu0 %5152, %v4551
      %v5154 = vpop.permute.xlu0 %5153
      %5156 = vset.pattern.permute.xlu0 2
      %5157 = vperm.xlu0 %5156, %v4552
      %v5158 = vpop.permute.xlu0 %5157
      %5160 = vset.pattern.permute.xlu0 2
      %5161 = vperm.xlu0 %5160, %v4553
      %v5162 = vpop.permute.xlu0 %5161
      %5164 = vset.pattern.permute.xlu0 2
      %5165 = vperm.xlu0 %5164, %v4554
      %v5166 = vpop.permute.xlu0 %5165
      %5168 = vset.pattern.permute.xlu0 2
      %5169 = vperm.xlu0 %5168, %v4555
      %v5170 = vpop.permute.xlu0 %5169
      %v5172 = vperm.slane %v4557, 2
      %v5173 = vmul.f32 %v5030, %v5172
      %v5174 = vmul.f32 %v5034, %v5172
      %v5175 = vmul.f32 %v5038, %v5172
      %v5176 = vmul.f32 %v5042, %v5172
      %v5177 = vmul.f32 %v5046, %v5172
      %v5178 = vmul.f32 %v5050, %v5172
      %v5179 = vmul.f32 %v5054, %v5172
      %v5180 = vmul.f32 %v5058, %v5172
      %v5181 = vmul.f32 %v5062, %v5172
      %v5182 = vmul.f32 %v5066, %v5172
      %v5183 = vmul.f32 %v5070, %v5172
      %v5184 = vmul.f32 %v5074, %v5172
      %v5185 = vmul.f32 %v5078, %v5172
      %v5186 = vmul.f32 %v5082, %v5172
      %v5187 = vmul.f32 %v5086, %v5172
      %v5188 = vmul.f32 %v5090, %v5172
      %v5189 = vmul.f32 %v5094, %v5172
      %v5190 = vmul.f32 %v5098, %v5172
      %v5191 = vmul.f32 %v5102, %v5172
      %v5192 = vmul.f32 %v5106, %v5172
      %v5193 = vmul.f32 %v5110, %v5172
      %v5194 = vmul.f32 %v5114, %v5172
      %v5195 = vmul.f32 %v5118, %v5172
      %v5196 = vmul.f32 %v5122, %v5172
      %v5197 = vmul.f32 %v5126, %v5172
      %v5198 = vmul.f32 %v5130, %v5172
      %v5199 = vmul.f32 %v5134, %v5172
      %v5200 = vmul.f32 %v5138, %v5172
      %v5201 = vmul.f32 %v5142, %v5172
      %v5202 = vmul.f32 %v5146, %v5172
      %v5203 = vmul.f32 %v5150, %v5172
      %v5204 = vmul.f32 %v5154, %v5172
      %v5205 = vmul.f32 %v5158, %v5172
      %v5206 = vmul.f32 %v5162, %v5172
      %v5207 = vmul.f32 %v5166, %v5172
      %v5208 = vmul.f32 %v5170, %v5172
      %v5209 = vadd.f32 %v4992, %v5173
      %v5210 = vadd.f32 %v4993, %v5174
      %v5211 = vadd.f32 %v4994, %v5175
      %v5212 = vadd.f32 %v4995, %v5176
      %v5213 = vadd.f32 %v4996, %v5177
      %v5214 = vadd.f32 %v4997, %v5178
      %v5215 = vadd.f32 %v4998, %v5179
      %v5216 = vadd.f32 %v4999, %v5180
      %v5217 = vadd.f32 %v5000, %v5181
      %v5218 = vadd.f32 %v5001, %v5182
      %v5219 = vadd.f32 %v5002, %v5183
      %v5220 = vadd.f32 %v5003, %v5184
      %v5221 = vadd.f32 %v5004, %v5185
      %v5222 = vadd.f32 %v5005, %v5186
      %v5223 = vadd.f32 %v5006, %v5187
      %v5224 = vadd.f32 %v5007, %v5188
      %v5225 = vadd.f32 %v5008, %v5189
      %v5226 = vadd.f32 %v5009, %v5190
      %v5227 = vadd.f32 %v5010, %v5191
      %v5228 = vadd.f32 %v5011, %v5192
      %v5229 = vadd.f32 %v5012, %v5193
      %v5230 = vadd.f32 %v5013, %v5194
      %v5231 = vadd.f32 %v5014, %v5195
      %v5232 = vadd.f32 %v5015, %v5196
      %v5233 = vadd.f32 %v5016, %v5197
      %v5234 = vadd.f32 %v5017, %v5198
      %v5235 = vadd.f32 %v5018, %v5199
      %v5236 = vadd.f32 %v5019, %v5200
      %v5237 = vadd.f32 %v5020, %v5201
      %v5238 = vadd.f32 %v5021, %v5202
      %v5239 = vadd.f32 %v5022, %v5203
      %v5240 = vadd.f32 %v5023, %v5204
      %v5241 = vadd.f32 %v5024, %v5205
      %v5242 = vadd.f32 %v5025, %v5206
      %v5243 = vadd.f32 %v5026, %v5207
      %v5244 = vadd.f32 %v5027, %v5208
      %v5245 = vld [vmem:[%s165 + $0x25] sm:$0xff]
      %v5246 = vld [vmem:[%s165 + $0x2d] sm:$0xff]
      %v5247 = vld [vmem:[%s165 + $0x35] sm:$0xff]
      %v5248 = vld [vmem:[%s165 + $0x3d] sm:$0xff]
      %v5249 = vld [vmem:[%s165 + $0x45] sm:$0xff]
      %v5250 = vld [vmem:[%s165 + $0x4d] sm:$0xff]
      %v5251 = vld [vmem:[%s165 + $0x55] sm:$0xff]
      %v5252 = vld [vmem:[%s165 + $0x5d] sm:$0xff]
      %v5253 = vld [vmem:[%s165 + $0x65] sm:$0xff]
      %v5254 = vld [vmem:[%s165 + $0x6d] sm:$0xff]
      %v5255 = vld [vmem:[%s165 + $0x75] sm:$0xff]
      %v5256 = vld [vmem:[%s165 + $0x7d] sm:$0xff]
      %v5257 = vld [vmem:[%s165 + $0x85] sm:$0xff]
      %v5258 = vld [vmem:[%s165 + $0x8d] sm:$0xff]
      %v5259 = vld [vmem:[%s165 + $0x95] sm:$0xff]
      %v5260 = vld [vmem:[%s165 + $0x9d] sm:$0xff]
      %v5261 = vld [vmem:[%s165 + $0xa5] sm:$0xff]
      %v5262 = vld [vmem:[%s165 + $0xad] sm:$0xff]
      %v5263 = vld [vmem:[%s165 + $0xb5] sm:$0xff]
      %v5264 = vld [vmem:[%s165 + $0xbd] sm:$0xff]
      %v5265 = vld [vmem:[%s165 + $0xc5] sm:$0xff]
      %v5266 = vld [vmem:[%s165 + $0xcd] sm:$0xff]
      %v5267 = vld [vmem:[%s165 + $0xd5] sm:$0xff]
      %v5268 = vld [vmem:[%s165 + $0xdd] sm:$0xff]
      %v5269 = vld [vmem:[%s165 + $0xe5] sm:$0xff]
      %v5270 = vld [vmem:[%s165 + $0xed] sm:$0xff]
      %v5271 = vld [vmem:[%s165 + $0xf5] sm:$0xff]
      %v5272 = vld [vmem:[%s165 + $0xfd] sm:$0xff]
      %v5273 = vld [vmem:[%s165 + $0x105] sm:$0xff]
      %v5274 = vld [vmem:[%s165 + $0x10d] sm:$0xff]
      %v5275 = vld [vmem:[%s165 + $0x115] sm:$0xff]
      %v5276 = vld [vmem:[%s165 + $0x11d] sm:$0xff]
      %v5277 = vld [vmem:[%s165 + $0x125] sm:$0xff]
      %v5278 = vld [vmem:[%s165 + $0x12d] sm:$0xff]
      %v5279 = vld [vmem:[%s165 + $0x135] sm:$0xff]
      %v5280 = vld [vmem:[%s165 + $0x13d] sm:$0xff]
      %s5281 = scalar_lea.vmem %s1, 28
      %v5282 = vld [vmem:[%s5281] sm:$0x7]
      %5284 = vset.pattern.permute.xlu0 0
      %5285 = vperm.xlu0 %5284, %v5245
      %v5286 = vpop.permute.xlu0 %5285
      %5289 = vset.pattern.permute.xlu0 0
      %5290 = vperm.xlu0 %5289, %v5246
      %v5291 = vpop.permute.xlu0 %5290
      %5294 = vset.pattern.permute.xlu0 0
      %5295 = vperm.xlu0 %5294, %v5247
      %v5296 = vpop.permute.xlu0 %5295
      %5299 = vset.pattern.permute.xlu0 0
      %5300 = vperm.xlu0 %5299, %v5248
      %v5301 = vpop.permute.xlu0 %5300
      %5304 = vset.pattern.permute.xlu0 0
      %5305 = vperm.xlu0 %5304, %v5249
      %v5306 = vpop.permute.xlu0 %5305
      %5309 = vset.pattern.permute.xlu0 0
      %5310 = vperm.xlu0 %5309, %v5250
      %v5311 = vpop.permute.xlu0 %5310
      %5314 = vset.pattern.permute.xlu0 0
      %5315 = vperm.xlu0 %5314, %v5251
      %v5316 = vpop.permute.xlu0 %5315
      %5319 = vset.pattern.permute.xlu0 0
      %5320 = vperm.xlu0 %5319, %v5252
      %v5321 = vpop.permute.xlu0 %5320
      %5324 = vset.pattern.permute.xlu0 0
      %5325 = vperm.xlu0 %5324, %v5253
      %v5326 = vpop.permute.xlu0 %5325
      %5329 = vset.pattern.permute.xlu0 0
      %5330 = vperm.xlu0 %5329, %v5254
      %v5331 = vpop.permute.xlu0 %5330
      %5334 = vset.pattern.permute.xlu0 0
      %5335 = vperm.xlu0 %5334, %v5255
      %v5336 = vpop.permute.xlu0 %5335
      %5339 = vset.pattern.permute.xlu0 0
      %5340 = vperm.xlu0 %5339, %v5256
      %v5341 = vpop.permute.xlu0 %5340
      %5344 = vset.pattern.permute.xlu0 0
      %5345 = vperm.xlu0 %5344, %v5257
      %v5346 = vpop.permute.xlu0 %5345
      %5349 = vset.pattern.permute.xlu0 0
      %5350 = vperm.xlu0 %5349, %v5258
      %v5351 = vpop.permute.xlu0 %5350
      %5354 = vset.pattern.permute.xlu0 0
      %5355 = vperm.xlu0 %5354, %v5259
      %v5356 = vpop.permute.xlu0 %5355
      %5359 = vset.pattern.permute.xlu0 0
      %5360 = vperm.xlu0 %5359, %v5260
      %v5361 = vpop.permute.xlu0 %5360
      %5364 = vset.pattern.permute.xlu0 0
      %5365 = vperm.xlu0 %5364, %v5261
      %v5366 = vpop.permute.xlu0 %5365
      %5369 = vset.pattern.permute.xlu0 0
      %5370 = vperm.xlu0 %5369, %v5262
      %v5371 = vpop.permute.xlu0 %5370
      %5374 = vset.pattern.permute.xlu0 0
      %5375 = vperm.xlu0 %5374, %v5263
      %v5376 = vpop.permute.xlu0 %5375
      %5379 = vset.pattern.permute.xlu0 0
      %5380 = vperm.xlu0 %5379, %v5264
      %v5381 = vpop.permute.xlu0 %5380
      %5384 = vset.pattern.permute.xlu0 0
      %5385 = vperm.xlu0 %5384, %v5265
      %v5386 = vpop.permute.xlu0 %5385
      %5389 = vset.pattern.permute.xlu0 0
      %5390 = vperm.xlu0 %5389, %v5266
      %v5391 = vpop.permute.xlu0 %5390
      %5394 = vset.pattern.permute.xlu0 0
      %5395 = vperm.xlu0 %5394, %v5267
      %v5396 = vpop.permute.xlu0 %5395
      %5399 = vset.pattern.permute.xlu0 0
      %5400 = vperm.xlu0 %5399, %v5268
      %v5401 = vpop.permute.xlu0 %5400
      %5404 = vset.pattern.permute.xlu0 0
      %5405 = vperm.xlu0 %5404, %v5269
      %v5406 = vpop.permute.xlu0 %5405
      %5409 = vset.pattern.permute.xlu0 0
      %5410 = vperm.xlu0 %5409, %v5270
      %v5411 = vpop.permute.xlu0 %5410
      %5414 = vset.pattern.permute.xlu0 0
      %5415 = vperm.xlu0 %5414, %v5271
      %v5416 = vpop.permute.xlu0 %5415
      %5419 = vset.pattern.permute.xlu0 0
      %5420 = vperm.xlu0 %5419, %v5272
      %v5421 = vpop.permute.xlu0 %5420
      %5424 = vset.pattern.permute.xlu0 0
      %5425 = vperm.xlu0 %5424, %v5273
      %v5426 = vpop.permute.xlu0 %5425
      %5429 = vset.pattern.permute.xlu0 0
      %5430 = vperm.xlu0 %5429, %v5274
      %v5431 = vpop.permute.xlu0 %5430
      %5434 = vset.pattern.permute.xlu0 0
      %5435 = vperm.xlu0 %5434, %v5275
      %v5436 = vpop.permute.xlu0 %5435
      %5439 = vset.pattern.permute.xlu0 0
      %5440 = vperm.xlu0 %5439, %v5276
      %v5441 = vpop.permute.xlu0 %5440
      %5444 = vset.pattern.permute.xlu0 0
      %5445 = vperm.xlu0 %5444, %v5277
      %v5446 = vpop.permute.xlu0 %5445
      %5449 = vset.pattern.permute.xlu0 0
      %5450 = vperm.xlu0 %5449, %v5278
      %v5451 = vpop.permute.xlu0 %5450
      %5454 = vset.pattern.permute.xlu0 0
      %5455 = vperm.xlu0 %5454, %v5279
      %v5456 = vpop.permute.xlu0 %5455
      %5459 = vset.pattern.permute.xlu0 0
      %5460 = vperm.xlu0 %5459, %v5280
      %v5461 = vpop.permute.xlu0 %5460
      %v5463 = vperm.slane %v5282, 0
      %v5464 = vmul.f32 %v5286, %v5463
      %v5465 = vmul.f32 %v5291, %v5463
      %v5466 = vmul.f32 %v5296, %v5463
      %v5467 = vmul.f32 %v5301, %v5463
      %v5468 = vmul.f32 %v5306, %v5463
      %v5469 = vmul.f32 %v5311, %v5463
      %v5470 = vmul.f32 %v5316, %v5463
      %v5471 = vmul.f32 %v5321, %v5463
      %v5472 = vmul.f32 %v5326, %v5463
      %v5473 = vmul.f32 %v5331, %v5463
      %v5474 = vmul.f32 %v5336, %v5463
      %v5475 = vmul.f32 %v5341, %v5463
      %v5476 = vmul.f32 %v5346, %v5463
      %v5477 = vmul.f32 %v5351, %v5463
      %v5478 = vmul.f32 %v5356, %v5463
      %v5479 = vmul.f32 %v5361, %v5463
      %v5480 = vmul.f32 %v5366, %v5463
      %v5481 = vmul.f32 %v5371, %v5463
      %v5482 = vmul.f32 %v5376, %v5463
      %v5483 = vmul.f32 %v5381, %v5463
      %v5484 = vmul.f32 %v5386, %v5463
      %v5485 = vmul.f32 %v5391, %v5463
      %v5486 = vmul.f32 %v5396, %v5463
      %v5487 = vmul.f32 %v5401, %v5463
      %v5488 = vmul.f32 %v5406, %v5463
      %v5489 = vmul.f32 %v5411, %v5463
      %v5490 = vmul.f32 %v5416, %v5463
      %v5491 = vmul.f32 %v5421, %v5463
      %v5492 = vmul.f32 %v5426, %v5463
      %v5493 = vmul.f32 %v5431, %v5463
      %v5494 = vmul.f32 %v5436, %v5463
      %v5495 = vmul.f32 %v5441, %v5463
      %v5496 = vmul.f32 %v5446, %v5463
      %v5497 = vmul.f32 %v5451, %v5463
      %v5498 = vmul.f32 %v5456, %v5463
      %v5499 = vmul.f32 %v5461, %v5463
      %v5500 = vadd.f32 %v5209, %v5464
      %v5501 = vadd.f32 %v5210, %v5465
      %v5502 = vadd.f32 %v5211, %v5466
      %v5503 = vadd.f32 %v5212, %v5467
      %v5504 = vadd.f32 %v5213, %v5468
      %v5505 = vadd.f32 %v5214, %v5469
      %v5506 = vadd.f32 %v5215, %v5470
      %v5507 = vadd.f32 %v5216, %v5471
      %v5508 = vadd.f32 %v5217, %v5472
      %v5509 = vadd.f32 %v5218, %v5473
      %v5510 = vadd.f32 %v5219, %v5474
      %v5511 = vadd.f32 %v5220, %v5475
      %v5512 = vadd.f32 %v5221, %v5476
      %v5513 = vadd.f32 %v5222, %v5477
      %v5514 = vadd.f32 %v5223, %v5478
      %v5515 = vadd.f32 %v5224, %v5479
      %v5516 = vadd.f32 %v5225, %v5480
      %v5517 = vadd.f32 %v5226, %v5481
      %v5518 = vadd.f32 %v5227, %v5482
      %v5519 = vadd.f32 %v5228, %v5483
      %v5520 = vadd.f32 %v5229, %v5484
      %v5521 = vadd.f32 %v5230, %v5485
      %v5522 = vadd.f32 %v5231, %v5486
      %v5523 = vadd.f32 %v5232, %v5487
      %v5524 = vadd.f32 %v5233, %v5488
      %v5525 = vadd.f32 %v5234, %v5489
      %v5526 = vadd.f32 %v5235, %v5490
      %v5527 = vadd.f32 %v5236, %v5491
      %v5528 = vadd.f32 %v5237, %v5492
      %v5529 = vadd.f32 %v5238, %v5493
      %v5530 = vadd.f32 %v5239, %v5494
      %v5531 = vadd.f32 %v5240, %v5495
      %v5532 = vadd.f32 %v5241, %v5496
      %v5533 = vadd.f32 %v5242, %v5497
      %v5534 = vadd.f32 %v5243, %v5498
      %v5535 = vadd.f32 %v5244, %v5499
      %5536 = vset.pattern.permute.xlu0 1
      %5537 = vperm.xlu0 %5536, %v5245
      %v5538 = vpop.permute.xlu0 %5537
      %5540 = vset.pattern.permute.xlu0 1
      %5541 = vperm.xlu0 %5540, %v5246
      %v5542 = vpop.permute.xlu0 %5541
      %5544 = vset.pattern.permute.xlu0 1
      %5545 = vperm.xlu0 %5544, %v5247
      %v5546 = vpop.permute.xlu0 %5545
      %5548 = vset.pattern.permute.xlu0 1
      %5549 = vperm.xlu0 %5548, %v5248
      %v5550 = vpop.permute.xlu0 %5549
      %5552 = vset.pattern.permute.xlu0 1
      %5553 = vperm.xlu0 %5552, %v5249
      %v5554 = vpop.permute.xlu0 %5553
      %5556 = vset.pattern.permute.xlu0 1
      %5557 = vperm.xlu0 %5556, %v5250
      %v5558 = vpop.permute.xlu0 %5557
      %5560 = vset.pattern.permute.xlu0 1
      %5561 = vperm.xlu0 %5560, %v5251
      %v5562 = vpop.permute.xlu0 %5561
      %5564 = vset.pattern.permute.xlu0 1
      %5565 = vperm.xlu0 %5564, %v5252
      %v5566 = vpop.permute.xlu0 %5565
      %5568 = vset.pattern.permute.xlu0 1
      %5569 = vperm.xlu0 %5568, %v5253
      %v5570 = vpop.permute.xlu0 %5569
      %5572 = vset.pattern.permute.xlu0 1
      %5573 = vperm.xlu0 %5572, %v5254
      %v5574 = vpop.permute.xlu0 %5573
      %5576 = vset.pattern.permute.xlu0 1
      %5577 = vperm.xlu0 %5576, %v5255
      %v5578 = vpop.permute.xlu0 %5577
      %5580 = vset.pattern.permute.xlu0 1
      %5581 = vperm.xlu0 %5580, %v5256
      %v5582 = vpop.permute.xlu0 %5581
      %5584 = vset.pattern.permute.xlu0 1
      %5585 = vperm.xlu0 %5584, %v5257
      %v5586 = vpop.permute.xlu0 %5585
      %5588 = vset.pattern.permute.xlu0 1
      %5589 = vperm.xlu0 %5588, %v5258
      %v5590 = vpop.permute.xlu0 %5589
      %5592 = vset.pattern.permute.xlu0 1
      %5593 = vperm.xlu0 %5592, %v5259
      %v5594 = vpop.permute.xlu0 %5593
      %5596 = vset.pattern.permute.xlu0 1
      %5597 = vperm.xlu0 %5596, %v5260
      %v5598 = vpop.permute.xlu0 %5597
      %5600 = vset.pattern.permute.xlu0 1
      %5601 = vperm.xlu0 %5600, %v5261
      %v5602 = vpop.permute.xlu0 %5601
      %5604 = vset.pattern.permute.xlu0 1
      %5605 = vperm.xlu0 %5604, %v5262
      %v5606 = vpop.permute.xlu0 %5605
      %5608 = vset.pattern.permute.xlu0 1
      %5609 = vperm.xlu0 %5608, %v5263
      %v5610 = vpop.permute.xlu0 %5609
      %5612 = vset.pattern.permute.xlu0 1
      %5613 = vperm.xlu0 %5612, %v5264
      %v5614 = vpop.permute.xlu0 %5613
      %5616 = vset.pattern.permute.xlu0 1
      %5617 = vperm.xlu0 %5616, %v5265
      %v5618 = vpop.permute.xlu0 %5617
      %5620 = vset.pattern.permute.xlu0 1
      %5621 = vperm.xlu0 %5620, %v5266
      %v5622 = vpop.permute.xlu0 %5621
      %5624 = vset.pattern.permute.xlu0 1
      %5625 = vperm.xlu0 %5624, %v5267
      %v5626 = vpop.permute.xlu0 %5625
      %5628 = vset.pattern.permute.xlu0 1
      %5629 = vperm.xlu0 %5628, %v5268
      %v5630 = vpop.permute.xlu0 %5629
      %5632 = vset.pattern.permute.xlu0 1
      %5633 = vperm.xlu0 %5632, %v5269
      %v5634 = vpop.permute.xlu0 %5633
      %5636 = vset.pattern.permute.xlu0 1
      %5637 = vperm.xlu0 %5636, %v5270
      %v5638 = vpop.permute.xlu0 %5637
      %5640 = vset.pattern.permute.xlu0 1
      %5641 = vperm.xlu0 %5640, %v5271
      %v5642 = vpop.permute.xlu0 %5641
      %5644 = vset.pattern.permute.xlu0 1
      %5645 = vperm.xlu0 %5644, %v5272
      %v5646 = vpop.permute.xlu0 %5645
      %5648 = vset.pattern.permute.xlu0 1
      %5649 = vperm.xlu0 %5648, %v5273
      %v5650 = vpop.permute.xlu0 %5649
      %5652 = vset.pattern.permute.xlu0 1
      %5653 = vperm.xlu0 %5652, %v5274
      %v5654 = vpop.permute.xlu0 %5653
      %5656 = vset.pattern.permute.xlu0 1
      %5657 = vperm.xlu0 %5656, %v5275
      %v5658 = vpop.permute.xlu0 %5657
      %5660 = vset.pattern.permute.xlu0 1
      %5661 = vperm.xlu0 %5660, %v5276
      %v5662 = vpop.permute.xlu0 %5661
      %5664 = vset.pattern.permute.xlu0 1
      %5665 = vperm.xlu0 %5664, %v5277
      %v5666 = vpop.permute.xlu0 %5665
      %5668 = vset.pattern.permute.xlu0 1
      %5669 = vperm.xlu0 %5668, %v5278
      %v5670 = vpop.permute.xlu0 %5669
      %5672 = vset.pattern.permute.xlu0 1
      %5673 = vperm.xlu0 %5672, %v5279
      %v5674 = vpop.permute.xlu0 %5673
      %5676 = vset.pattern.permute.xlu0 1
      %5677 = vperm.xlu0 %5676, %v5280
      %v5678 = vpop.permute.xlu0 %5677
      %v5680 = vperm.slane %v5282, 1
      %v5681 = vmul.f32 %v5538, %v5680
      %v5682 = vmul.f32 %v5542, %v5680
      %v5683 = vmul.f32 %v5546, %v5680
      %v5684 = vmul.f32 %v5550, %v5680
      %v5685 = vmul.f32 %v5554, %v5680
      %v5686 = vmul.f32 %v5558, %v5680
      %v5687 = vmul.f32 %v5562, %v5680
      %v5688 = vmul.f32 %v5566, %v5680
      %v5689 = vmul.f32 %v5570, %v5680
      %v5690 = vmul.f32 %v5574, %v5680
      %v5691 = vmul.f32 %v5578, %v5680
      %v5692 = vmul.f32 %v5582, %v5680
      %v5693 = vmul.f32 %v5586, %v5680
      %v5694 = vmul.f32 %v5590, %v5680
      %v5695 = vmul.f32 %v5594, %v5680
      %v5696 = vmul.f32 %v5598, %v5680
      %v5697 = vmul.f32 %v5602, %v5680
      %v5698 = vmul.f32 %v5606, %v5680
      %v5699 = vmul.f32 %v5610, %v5680
      %v5700 = vmul.f32 %v5614, %v5680
      %v5701 = vmul.f32 %v5618, %v5680
      %v5702 = vmul.f32 %v5622, %v5680
      %v5703 = vmul.f32 %v5626, %v5680
      %v5704 = vmul.f32 %v5630, %v5680
      %v5705 = vmul.f32 %v5634, %v5680
      %v5706 = vmul.f32 %v5638, %v5680
      %v5707 = vmul.f32 %v5642, %v5680
      %v5708 = vmul.f32 %v5646, %v5680
      %v5709 = vmul.f32 %v5650, %v5680
      %v5710 = vmul.f32 %v5654, %v5680
      %v5711 = vmul.f32 %v5658, %v5680
      %v5712 = vmul.f32 %v5662, %v5680
      %v5713 = vmul.f32 %v5666, %v5680
      %v5714 = vmul.f32 %v5670, %v5680
      %v5715 = vmul.f32 %v5674, %v5680
      %v5716 = vmul.f32 %v5678, %v5680
      %v5717 = vadd.f32 %v5500, %v5681
      %v5718 = vadd.f32 %v5501, %v5682
      %v5719 = vadd.f32 %v5502, %v5683
      %v5720 = vadd.f32 %v5503, %v5684
      %v5721 = vadd.f32 %v5504, %v5685
      %v5722 = vadd.f32 %v5505, %v5686
      %v5723 = vadd.f32 %v5506, %v5687
      %v5724 = vadd.f32 %v5507, %v5688
      %v5725 = vadd.f32 %v5508, %v5689
      %v5726 = vadd.f32 %v5509, %v5690
      %v5727 = vadd.f32 %v5510, %v5691
      %v5728 = vadd.f32 %v5511, %v5692
      %v5729 = vadd.f32 %v5512, %v5693
      %v5730 = vadd.f32 %v5513, %v5694
      %v5731 = vadd.f32 %v5514, %v5695
      %v5732 = vadd.f32 %v5515, %v5696
      %v5733 = vadd.f32 %v5516, %v5697
      %v5734 = vadd.f32 %v5517, %v5698
      %v5735 = vadd.f32 %v5518, %v5699
      %v5736 = vadd.f32 %v5519, %v5700
      %v5737 = vadd.f32 %v5520, %v5701
      %v5738 = vadd.f32 %v5521, %v5702
      %v5739 = vadd.f32 %v5522, %v5703
      %v5740 = vadd.f32 %v5523, %v5704
      %v5741 = vadd.f32 %v5524, %v5705
      %v5742 = vadd.f32 %v5525, %v5706
      %v5743 = vadd.f32 %v5526, %v5707
      %v5744 = vadd.f32 %v5527, %v5708
      %v5745 = vadd.f32 %v5528, %v5709
      %v5746 = vadd.f32 %v5529, %v5710
      %v5747 = vadd.f32 %v5530, %v5711
      %v5748 = vadd.f32 %v5531, %v5712
      %v5749 = vadd.f32 %v5532, %v5713
      %v5750 = vadd.f32 %v5533, %v5714
      %v5751 = vadd.f32 %v5534, %v5715
      %v5752 = vadd.f32 %v5535, %v5716
      %5753 = vset.pattern.permute.xlu0 2
      %5754 = vperm.xlu0 %5753, %v5245
      %v5755 = vpop.permute.xlu0 %5754
      %5757 = vset.pattern.permute.xlu0 2
      %5758 = vperm.xlu0 %5757, %v5246
      %v5759 = vpop.permute.xlu0 %5758
      %5761 = vset.pattern.permute.xlu0 2
      %5762 = vperm.xlu0 %5761, %v5247
      %v5763 = vpop.permute.xlu0 %5762
      %5765 = vset.pattern.permute.xlu0 2
      %5766 = vperm.xlu0 %5765, %v5248
      %v5767 = vpop.permute.xlu0 %5766
      %5769 = vset.pattern.permute.xlu0 2
      %5770 = vperm.xlu0 %5769, %v5249
      %v5771 = vpop.permute.xlu0 %5770
      %5773 = vset.pattern.permute.xlu0 2
      %5774 = vperm.xlu0 %5773, %v5250
      %v5775 = vpop.permute.xlu0 %5774
      %5777 = vset.pattern.permute.xlu0 2
      %5778 = vperm.xlu0 %5777, %v5251
      %v5779 = vpop.permute.xlu0 %5778
      %5781 = vset.pattern.permute.xlu0 2
      %5782 = vperm.xlu0 %5781, %v5252
      %v5783 = vpop.permute.xlu0 %5782
      %5785 = vset.pattern.permute.xlu0 2
      %5786 = vperm.xlu0 %5785, %v5253
      %v5787 = vpop.permute.xlu0 %5786
      %5789 = vset.pattern.permute.xlu0 2
      %5790 = vperm.xlu0 %5789, %v5254
      %v5791 = vpop.permute.xlu0 %5790
      %5793 = vset.pattern.permute.xlu0 2
      %5794 = vperm.xlu0 %5793, %v5255
      %v5795 = vpop.permute.xlu0 %5794
      %5797 = vset.pattern.permute.xlu0 2
      %5798 = vperm.xlu0 %5797, %v5256
      %v5799 = vpop.permute.xlu0 %5798
      %5801 = vset.pattern.permute.xlu0 2
      %5802 = vperm.xlu0 %5801, %v5257
      %v5803 = vpop.permute.xlu0 %5802
      %5805 = vset.pattern.permute.xlu0 2
      %5806 = vperm.xlu0 %5805, %v5258
      %v5807 = vpop.permute.xlu0 %5806
      %5809 = vset.pattern.permute.xlu0 2
      %5810 = vperm.xlu0 %5809, %v5259
      %v5811 = vpop.permute.xlu0 %5810
      %5813 = vset.pattern.permute.xlu0 2
      %5814 = vperm.xlu0 %5813, %v5260
      %v5815 = vpop.permute.xlu0 %5814
      %5817 = vset.pattern.permute.xlu0 2
      %5818 = vperm.xlu0 %5817, %v5261
      %v5819 = vpop.permute.xlu0 %5818
      %5821 = vset.pattern.permute.xlu0 2
      %5822 = vperm.xlu0 %5821, %v5262
      %v5823 = vpop.permute.xlu0 %5822
      %5825 = vset.pattern.permute.xlu0 2
      %5826 = vperm.xlu0 %5825, %v5263
      %v5827 = vpop.permute.xlu0 %5826
      %5829 = vset.pattern.permute.xlu0 2
      %5830 = vperm.xlu0 %5829, %v5264
      %v5831 = vpop.permute.xlu0 %5830
      %5833 = vset.pattern.permute.xlu0 2
      %5834 = vperm.xlu0 %5833, %v5265
      %v5835 = vpop.permute.xlu0 %5834
      %5837 = vset.pattern.permute.xlu0 2
      %5838 = vperm.xlu0 %5837, %v5266
      %v5839 = vpop.permute.xlu0 %5838
      %5841 = vset.pattern.permute.xlu0 2
      %5842 = vperm.xlu0 %5841, %v5267
      %v5843 = vpop.permute.xlu0 %5842
      %5845 = vset.pattern.permute.xlu0 2
      %5846 = vperm.xlu0 %5845, %v5268
      %v5847 = vpop.permute.xlu0 %5846
      %5849 = vset.pattern.permute.xlu0 2
      %5850 = vperm.xlu0 %5849, %v5269
      %v5851 = vpop.permute.xlu0 %5850
      %5853 = vset.pattern.permute.xlu0 2
      %5854 = vperm.xlu0 %5853, %v5270
      %v5855 = vpop.permute.xlu0 %5854
      %5857 = vset.pattern.permute.xlu0 2
      %5858 = vperm.xlu0 %5857, %v5271
      %v5859 = vpop.permute.xlu0 %5858
      %5861 = vset.pattern.permute.xlu0 2
      %5862 = vperm.xlu0 %5861, %v5272
      %v5863 = vpop.permute.xlu0 %5862
      %5865 = vset.pattern.permute.xlu0 2
      %5866 = vperm.xlu0 %5865, %v5273
      %v5867 = vpop.permute.xlu0 %5866
      %5869 = vset.pattern.permute.xlu0 2
      %5870 = vperm.xlu0 %5869, %v5274
      %v5871 = vpop.permute.xlu0 %5870
      %5873 = vset.pattern.permute.xlu0 2
      %5874 = vperm.xlu0 %5873, %v5275
      %v5875 = vpop.permute.xlu0 %5874
      %5877 = vset.pattern.permute.xlu0 2
      %5878 = vperm.xlu0 %5877, %v5276
      %v5879 = vpop.permute.xlu0 %5878
      %5881 = vset.pattern.permute.xlu0 2
      %5882 = vperm.xlu0 %5881, %v5277
      %v5883 = vpop.permute.xlu0 %5882
      %5885 = vset.pattern.permute.xlu0 2
      %5886 = vperm.xlu0 %5885, %v5278
      %v5887 = vpop.permute.xlu0 %5886
      %5889 = vset.pattern.permute.xlu0 2
      %5890 = vperm.xlu0 %5889, %v5279
      %v5891 = vpop.permute.xlu0 %5890
      %5893 = vset.pattern.permute.xlu0 2
      %5894 = vperm.xlu0 %5893, %v5280
      %v5895 = vpop.permute.xlu0 %5894
      %v5897 = vperm.slane %v5282, 2
      %v5898 = vmul.f32 %v5755, %v5897
      %v5899 = vmul.f32 %v5759, %v5897
      %v5900 = vmul.f32 %v5763, %v5897
      %v5901 = vmul.f32 %v5767, %v5897
      %v5902 = vmul.f32 %v5771, %v5897
      %v5903 = vmul.f32 %v5775, %v5897
      %v5904 = vmul.f32 %v5779, %v5897
      %v5905 = vmul.f32 %v5783, %v5897
      %v5906 = vmul.f32 %v5787, %v5897
      %v5907 = vmul.f32 %v5791, %v5897
      %v5908 = vmul.f32 %v5795, %v5897
      %v5909 = vmul.f32 %v5799, %v5897
      %v5910 = vmul.f32 %v5803, %v5897
      %v5911 = vmul.f32 %v5807, %v5897
      %v5912 = vmul.f32 %v5811, %v5897
      %v5913 = vmul.f32 %v5815, %v5897
      %v5914 = vmul.f32 %v5819, %v5897
      %v5915 = vmul.f32 %v5823, %v5897
      %v5916 = vmul.f32 %v5827, %v5897
      %v5917 = vmul.f32 %v5831, %v5897
      %v5918 = vmul.f32 %v5835, %v5897
      %v5919 = vmul.f32 %v5839, %v5897
      %v5920 = vmul.f32 %v5843, %v5897
      %v5921 = vmul.f32 %v5847, %v5897
      %v5922 = vmul.f32 %v5851, %v5897
      %v5923 = vmul.f32 %v5855, %v5897
      %v5924 = vmul.f32 %v5859, %v5897
      %v5925 = vmul.f32 %v5863, %v5897
      %v5926 = vmul.f32 %v5867, %v5897
      %v5927 = vmul.f32 %v5871, %v5897
      %v5928 = vmul.f32 %v5875, %v5897
      %v5929 = vmul.f32 %v5879, %v5897
      %v5930 = vmul.f32 %v5883, %v5897
      %v5931 = vmul.f32 %v5887, %v5897
      %v5932 = vmul.f32 %v5891, %v5897
      %v5933 = vmul.f32 %v5895, %v5897
      %v5934 = vadd.f32 %v5717, %v5898
      %v5935 = vadd.f32 %v5718, %v5899
      %v5936 = vadd.f32 %v5719, %v5900
      %v5937 = vadd.f32 %v5720, %v5901
      %v5938 = vadd.f32 %v5721, %v5902
      %v5939 = vadd.f32 %v5722, %v5903
      %v5940 = vadd.f32 %v5723, %v5904
      %v5941 = vadd.f32 %v5724, %v5905
      %v5942 = vadd.f32 %v5725, %v5906
      %v5943 = vadd.f32 %v5726, %v5907
      %v5944 = vadd.f32 %v5727, %v5908
      %v5945 = vadd.f32 %v5728, %v5909
      %v5946 = vadd.f32 %v5729, %v5910
      %v5947 = vadd.f32 %v5730, %v5911
      %v5948 = vadd.f32 %v5731, %v5912
      %v5949 = vadd.f32 %v5732, %v5913
      %v5950 = vadd.f32 %v5733, %v5914
      %v5951 = vadd.f32 %v5734, %v5915
      %v5952 = vadd.f32 %v5735, %v5916
      %v5953 = vadd.f32 %v5736, %v5917
      %v5954 = vadd.f32 %v5737, %v5918
      %v5955 = vadd.f32 %v5738, %v5919
      %v5956 = vadd.f32 %v5739, %v5920
      %v5957 = vadd.f32 %v5740, %v5921
      %v5958 = vadd.f32 %v5741, %v5922
      %v5959 = vadd.f32 %v5742, %v5923
      %v5960 = vadd.f32 %v5743, %v5924
      %v5961 = vadd.f32 %v5744, %v5925
      %v5962 = vadd.f32 %v5745, %v5926
      %v5963 = vadd.f32 %v5746, %v5927
      %v5964 = vadd.f32 %v5747, %v5928
      %v5965 = vadd.f32 %v5748, %v5929
      %v5966 = vadd.f32 %v5749, %v5930
      %v5967 = vadd.f32 %v5750, %v5931
      %v5968 = vadd.f32 %v5751, %v5932
      %v5969 = vadd.f32 %v5752, %v5933
      %v5970 = vld [vmem:[%s165 + $0x26] sm:$0xff]
      %v5971 = vld [vmem:[%s165 + $0x2e] sm:$0xff]
      %v5972 = vld [vmem:[%s165 + $0x36] sm:$0xff]
      %v5973 = vld [vmem:[%s165 + $0x3e] sm:$0xff]
      %v5974 = vld [vmem:[%s165 + $0x46] sm:$0xff]
      %v5975 = vld [vmem:[%s165 + $0x4e] sm:$0xff]
      %v5976 = vld [vmem:[%s165 + $0x56] sm:$0xff]
      %v5977 = vld [vmem:[%s165 + $0x5e] sm:$0xff]
      %v5978 = vld [vmem:[%s165 + $0x66] sm:$0xff]
      %v5979 = vld [vmem:[%s165 + $0x6e] sm:$0xff]
      %v5980 = vld [vmem:[%s165 + $0x76] sm:$0xff]
      %v5981 = vld [vmem:[%s165 + $0x7e] sm:$0xff]
      %v5982 = vld [vmem:[%s165 + $0x86] sm:$0xff]
      %v5983 = vld [vmem:[%s165 + $0x8e] sm:$0xff]
      %v5984 = vld [vmem:[%s165 + $0x96] sm:$0xff]
      %v5985 = vld [vmem:[%s165 + $0x9e] sm:$0xff]
      %v5986 = vld [vmem:[%s165 + $0xa6] sm:$0xff]
      %v5987 = vld [vmem:[%s165 + $0xae] sm:$0xff]
      %v5988 = vld [vmem:[%s165 + $0xb6] sm:$0xff]
      %v5989 = vld [vmem:[%s165 + $0xbe] sm:$0xff]
      %v5990 = vld [vmem:[%s165 + $0xc6] sm:$0xff]
      %v5991 = vld [vmem:[%s165 + $0xce] sm:$0xff]
      %v5992 = vld [vmem:[%s165 + $0xd6] sm:$0xff]
      %v5993 = vld [vmem:[%s165 + $0xde] sm:$0xff]
      %v5994 = vld [vmem:[%s165 + $0xe6] sm:$0xff]
      %v5995 = vld [vmem:[%s165 + $0xee] sm:$0xff]
      %v5996 = vld [vmem:[%s165 + $0xf6] sm:$0xff]
      %v5997 = vld [vmem:[%s165 + $0xfe] sm:$0xff]
      %v5998 = vld [vmem:[%s165 + $0x106] sm:$0xff]
      %v5999 = vld [vmem:[%s165 + $0x10e] sm:$0xff]
      %v6000 = vld [vmem:[%s165 + $0x116] sm:$0xff]
      %v6001 = vld [vmem:[%s165 + $0x11e] sm:$0xff]
      %v6002 = vld [vmem:[%s165 + $0x126] sm:$0xff]
      %v6003 = vld [vmem:[%s165 + $0x12e] sm:$0xff]
      %v6004 = vld [vmem:[%s165 + $0x136] sm:$0xff]
      %v6005 = vld [vmem:[%s165 + $0x13e] sm:$0xff]
      %s6006 = scalar_lea.vmem %s1, 32
      %v6007 = vld [vmem:[%s6006] sm:$0x7]
      %6009 = vset.pattern.permute.xlu0 0
      %6010 = vperm.xlu0 %6009, %v5970
      %v6011 = vpop.permute.xlu0 %6010
      %6014 = vset.pattern.permute.xlu0 0
      %6015 = vperm.xlu0 %6014, %v5971
      %v6016 = vpop.permute.xlu0 %6015
      %6019 = vset.pattern.permute.xlu0 0
      %6020 = vperm.xlu0 %6019, %v5972
      %v6021 = vpop.permute.xlu0 %6020
      %6024 = vset.pattern.permute.xlu0 0
      %6025 = vperm.xlu0 %6024, %v5973
      %v6026 = vpop.permute.xlu0 %6025
      %6029 = vset.pattern.permute.xlu0 0
      %6030 = vperm.xlu0 %6029, %v5974
      %v6031 = vpop.permute.xlu0 %6030
      %6034 = vset.pattern.permute.xlu0 0
      %6035 = vperm.xlu0 %6034, %v5975
      %v6036 = vpop.permute.xlu0 %6035
      %6039 = vset.pattern.permute.xlu0 0
      %6040 = vperm.xlu0 %6039, %v5976
      %v6041 = vpop.permute.xlu0 %6040
      %6044 = vset.pattern.permute.xlu0 0
      %6045 = vperm.xlu0 %6044, %v5977
      %v6046 = vpop.permute.xlu0 %6045
      %6049 = vset.pattern.permute.xlu0 0
      %6050 = vperm.xlu0 %6049, %v5978
      %v6051 = vpop.permute.xlu0 %6050
      %6054 = vset.pattern.permute.xlu0 0
      %6055 = vperm.xlu0 %6054, %v5979
      %v6056 = vpop.permute.xlu0 %6055
      %6059 = vset.pattern.permute.xlu0 0
      %6060 = vperm.xlu0 %6059, %v5980
      %v6061 = vpop.permute.xlu0 %6060
      %6064 = vset.pattern.permute.xlu0 0
      %6065 = vperm.xlu0 %6064, %v5981
      %v6066 = vpop.permute.xlu0 %6065
      %6069 = vset.pattern.permute.xlu0 0
      %6070 = vperm.xlu0 %6069, %v5982
      %v6071 = vpop.permute.xlu0 %6070
      %6074 = vset.pattern.permute.xlu0 0
      %6075 = vperm.xlu0 %6074, %v5983
      %v6076 = vpop.permute.xlu0 %6075
      %6079 = vset.pattern.permute.xlu0 0
      %6080 = vperm.xlu0 %6079, %v5984
      %v6081 = vpop.permute.xlu0 %6080
      %6084 = vset.pattern.permute.xlu0 0
      %6085 = vperm.xlu0 %6084, %v5985
      %v6086 = vpop.permute.xlu0 %6085
      %6089 = vset.pattern.permute.xlu0 0
      %6090 = vperm.xlu0 %6089, %v5986
      %v6091 = vpop.permute.xlu0 %6090
      %6094 = vset.pattern.permute.xlu0 0
      %6095 = vperm.xlu0 %6094, %v5987
      %v6096 = vpop.permute.xlu0 %6095
      %6099 = vset.pattern.permute.xlu0 0
      %6100 = vperm.xlu0 %6099, %v5988
      %v6101 = vpop.permute.xlu0 %6100
      %6104 = vset.pattern.permute.xlu0 0
      %6105 = vperm.xlu0 %6104, %v5989
      %v6106 = vpop.permute.xlu0 %6105
      %6109 = vset.pattern.permute.xlu0 0
      %6110 = vperm.xlu0 %6109, %v5990
      %v6111 = vpop.permute.xlu0 %6110
      %6114 = vset.pattern.permute.xlu0 0
      %6115 = vperm.xlu0 %6114, %v5991
      %v6116 = vpop.permute.xlu0 %6115
      %6119 = vset.pattern.permute.xlu0 0
      %6120 = vperm.xlu0 %6119, %v5992
      %v6121 = vpop.permute.xlu0 %6120
      %6124 = vset.pattern.permute.xlu0 0
      %6125 = vperm.xlu0 %6124, %v5993
      %v6126 = vpop.permute.xlu0 %6125
      %6129 = vset.pattern.permute.xlu0 0
      %6130 = vperm.xlu0 %6129, %v5994
      %v6131 = vpop.permute.xlu0 %6130
      %6134 = vset.pattern.permute.xlu0 0
      %6135 = vperm.xlu0 %6134, %v5995
      %v6136 = vpop.permute.xlu0 %6135
      %6139 = vset.pattern.permute.xlu0 0
      %6140 = vperm.xlu0 %6139, %v5996
      %v6141 = vpop.permute.xlu0 %6140
      %6144 = vset.pattern.permute.xlu0 0
      %6145 = vperm.xlu0 %6144, %v5997
      %v6146 = vpop.permute.xlu0 %6145
      %6149 = vset.pattern.permute.xlu0 0
      %6150 = vperm.xlu0 %6149, %v5998
      %v6151 = vpop.permute.xlu0 %6150
      %6154 = vset.pattern.permute.xlu0 0
      %6155 = vperm.xlu0 %6154, %v5999
      %v6156 = vpop.permute.xlu0 %6155
      %6159 = vset.pattern.permute.xlu0 0
      %6160 = vperm.xlu0 %6159, %v6000
      %v6161 = vpop.permute.xlu0 %6160
      %6164 = vset.pattern.permute.xlu0 0
      %6165 = vperm.xlu0 %6164, %v6001
      %v6166 = vpop.permute.xlu0 %6165
      %6169 = vset.pattern.permute.xlu0 0
      %6170 = vperm.xlu0 %6169, %v6002
      %v6171 = vpop.permute.xlu0 %6170
      %6174 = vset.pattern.permute.xlu0 0
      %6175 = vperm.xlu0 %6174, %v6003
      %v6176 = vpop.permute.xlu0 %6175
      %6179 = vset.pattern.permute.xlu0 0
      %6180 = vperm.xlu0 %6179, %v6004
      %v6181 = vpop.permute.xlu0 %6180
      %6184 = vset.pattern.permute.xlu0 0
      %6185 = vperm.xlu0 %6184, %v6005
      %v6186 = vpop.permute.xlu0 %6185
      %v6188 = vperm.slane %v6007, 0
      %v6189 = vmul.f32 %v6011, %v6188
      %v6190 = vmul.f32 %v6016, %v6188
      %v6191 = vmul.f32 %v6021, %v6188
      %v6192 = vmul.f32 %v6026, %v6188
      %v6193 = vmul.f32 %v6031, %v6188
      %v6194 = vmul.f32 %v6036, %v6188
      %v6195 = vmul.f32 %v6041, %v6188
      %v6196 = vmul.f32 %v6046, %v6188
      %v6197 = vmul.f32 %v6051, %v6188
      %v6198 = vmul.f32 %v6056, %v6188
      %v6199 = vmul.f32 %v6061, %v6188
      %v6200 = vmul.f32 %v6066, %v6188
      %v6201 = vmul.f32 %v6071, %v6188
      %v6202 = vmul.f32 %v6076, %v6188
      %v6203 = vmul.f32 %v6081, %v6188
      %v6204 = vmul.f32 %v6086, %v6188
      %v6205 = vmul.f32 %v6091, %v6188
      %v6206 = vmul.f32 %v6096, %v6188
      %v6207 = vmul.f32 %v6101, %v6188
      %v6208 = vmul.f32 %v6106, %v6188
      %v6209 = vmul.f32 %v6111, %v6188
      %v6210 = vmul.f32 %v6116, %v6188
      %v6211 = vmul.f32 %v6121, %v6188
      %v6212 = vmul.f32 %v6126, %v6188
      %v6213 = vmul.f32 %v6131, %v6188
      %v6214 = vmul.f32 %v6136, %v6188
      %v6215 = vmul.f32 %v6141, %v6188
      %v6216 = vmul.f32 %v6146, %v6188
      %v6217 = vmul.f32 %v6151, %v6188
      %v6218 = vmul.f32 %v6156, %v6188
      %v6219 = vmul.f32 %v6161, %v6188
      %v6220 = vmul.f32 %v6166, %v6188
      %v6221 = vmul.f32 %v6171, %v6188
      %v6222 = vmul.f32 %v6176, %v6188
      %v6223 = vmul.f32 %v6181, %v6188
      %v6224 = vmul.f32 %v6186, %v6188
      %v6225 = vadd.f32 %v5934, %v6189
      %v6226 = vadd.f32 %v5935, %v6190
      %v6227 = vadd.f32 %v5936, %v6191
      %v6228 = vadd.f32 %v5937, %v6192
      %v6229 = vadd.f32 %v5938, %v6193
      %v6230 = vadd.f32 %v5939, %v6194
      %v6231 = vadd.f32 %v5940, %v6195
      %v6232 = vadd.f32 %v5941, %v6196
      %v6233 = vadd.f32 %v5942, %v6197
      %v6234 = vadd.f32 %v5943, %v6198
      %v6235 = vadd.f32 %v5944, %v6199
      %v6236 = vadd.f32 %v5945, %v6200
      %v6237 = vadd.f32 %v5946, %v6201
      %v6238 = vadd.f32 %v5947, %v6202
      %v6239 = vadd.f32 %v5948, %v6203
      %v6240 = vadd.f32 %v5949, %v6204
      %v6241 = vadd.f32 %v5950, %v6205
      %v6242 = vadd.f32 %v5951, %v6206
      %v6243 = vadd.f32 %v5952, %v6207
      %v6244 = vadd.f32 %v5953, %v6208
      %v6245 = vadd.f32 %v5954, %v6209
      %v6246 = vadd.f32 %v5955, %v6210
      %v6247 = vadd.f32 %v5956, %v6211
      %v6248 = vadd.f32 %v5957, %v6212
      %v6249 = vadd.f32 %v5958, %v6213
      %v6250 = vadd.f32 %v5959, %v6214
      %v6251 = vadd.f32 %v5960, %v6215
      %v6252 = vadd.f32 %v5961, %v6216
      %v6253 = vadd.f32 %v5962, %v6217
      %v6254 = vadd.f32 %v5963, %v6218
      %v6255 = vadd.f32 %v5964, %v6219
      %v6256 = vadd.f32 %v5965, %v6220
      %v6257 = vadd.f32 %v5966, %v6221
      %v6258 = vadd.f32 %v5967, %v6222
      %v6259 = vadd.f32 %v5968, %v6223
      %v6260 = vadd.f32 %v5969, %v6224
      %6261 = vset.pattern.permute.xlu0 1
      %6262 = vperm.xlu0 %6261, %v5970
      %v6263 = vpop.permute.xlu0 %6262
      %6265 = vset.pattern.permute.xlu0 1
      %6266 = vperm.xlu0 %6265, %v5971
      %v6267 = vpop.permute.xlu0 %6266
      %6269 = vset.pattern.permute.xlu0 1
      %6270 = vperm.xlu0 %6269, %v5972
      %v6271 = vpop.permute.xlu0 %6270
      %6273 = vset.pattern.permute.xlu0 1
      %6274 = vperm.xlu0 %6273, %v5973
      %v6275 = vpop.permute.xlu0 %6274
      %6277 = vset.pattern.permute.xlu0 1
      %6278 = vperm.xlu0 %6277, %v5974
      %v6279 = vpop.permute.xlu0 %6278
      %6281 = vset.pattern.permute.xlu0 1
      %6282 = vperm.xlu0 %6281, %v5975
      %v6283 = vpop.permute.xlu0 %6282
      %6285 = vset.pattern.permute.xlu0 1
      %6286 = vperm.xlu0 %6285, %v5976
      %v6287 = vpop.permute.xlu0 %6286
      %6289 = vset.pattern.permute.xlu0 1
      %6290 = vperm.xlu0 %6289, %v5977
      %v6291 = vpop.permute.xlu0 %6290
      %6293 = vset.pattern.permute.xlu0 1
      %6294 = vperm.xlu0 %6293, %v5978
      %v6295 = vpop.permute.xlu0 %6294
      %6297 = vset.pattern.permute.xlu0 1
      %6298 = vperm.xlu0 %6297, %v5979
      %v6299 = vpop.permute.xlu0 %6298
      %6301 = vset.pattern.permute.xlu0 1
      %6302 = vperm.xlu0 %6301, %v5980
      %v6303 = vpop.permute.xlu0 %6302
      %6305 = vset.pattern.permute.xlu0 1
      %6306 = vperm.xlu0 %6305, %v5981
      %v6307 = vpop.permute.xlu0 %6306
      %6309 = vset.pattern.permute.xlu0 1
      %6310 = vperm.xlu0 %6309, %v5982
      %v6311 = vpop.permute.xlu0 %6310
      %6313 = vset.pattern.permute.xlu0 1
      %6314 = vperm.xlu0 %6313, %v5983
      %v6315 = vpop.permute.xlu0 %6314
      %6317 = vset.pattern.permute.xlu0 1
      %6318 = vperm.xlu0 %6317, %v5984
      %v6319 = vpop.permute.xlu0 %6318
      %6321 = vset.pattern.permute.xlu0 1
      %6322 = vperm.xlu0 %6321, %v5985
      %v6323 = vpop.permute.xlu0 %6322
      %6325 = vset.pattern.permute.xlu0 1
      %6326 = vperm.xlu0 %6325, %v5986
      %v6327 = vpop.permute.xlu0 %6326
      %6329 = vset.pattern.permute.xlu0 1
      %6330 = vperm.xlu0 %6329, %v5987
      %v6331 = vpop.permute.xlu0 %6330
      %6333 = vset.pattern.permute.xlu0 1
      %6334 = vperm.xlu0 %6333, %v5988
      %v6335 = vpop.permute.xlu0 %6334
      %6337 = vset.pattern.permute.xlu0 1
      %6338 = vperm.xlu0 %6337, %v5989
      %v6339 = vpop.permute.xlu0 %6338
      %6341 = vset.pattern.permute.xlu0 1
      %6342 = vperm.xlu0 %6341, %v5990
      %v6343 = vpop.permute.xlu0 %6342
      %6345 = vset.pattern.permute.xlu0 1
      %6346 = vperm.xlu0 %6345, %v5991
      %v6347 = vpop.permute.xlu0 %6346
      %6349 = vset.pattern.permute.xlu0 1
      %6350 = vperm.xlu0 %6349, %v5992
      %v6351 = vpop.permute.xlu0 %6350
      %6353 = vset.pattern.permute.xlu0 1
      %6354 = vperm.xlu0 %6353, %v5993
      %v6355 = vpop.permute.xlu0 %6354
      %6357 = vset.pattern.permute.xlu0 1
      %6358 = vperm.xlu0 %6357, %v5994
      %v6359 = vpop.permute.xlu0 %6358
      %6361 = vset.pattern.permute.xlu0 1
      %6362 = vperm.xlu0 %6361, %v5995
      %v6363 = vpop.permute.xlu0 %6362
      %6365 = vset.pattern.permute.xlu0 1
      %6366 = vperm.xlu0 %6365, %v5996
      %v6367 = vpop.permute.xlu0 %6366
      %6369 = vset.pattern.permute.xlu0 1
      %6370 = vperm.xlu0 %6369, %v5997
      %v6371 = vpop.permute.xlu0 %6370
      %6373 = vset.pattern.permute.xlu0 1
      %6374 = vperm.xlu0 %6373, %v5998
      %v6375 = vpop.permute.xlu0 %6374
      %6377 = vset.pattern.permute.xlu0 1
      %6378 = vperm.xlu0 %6377, %v5999
      %v6379 = vpop.permute.xlu0 %6378
      %6381 = vset.pattern.permute.xlu0 1
      %6382 = vperm.xlu0 %6381, %v6000
      %v6383 = vpop.permute.xlu0 %6382
      %6385 = vset.pattern.permute.xlu0 1
      %6386 = vperm.xlu0 %6385, %v6001
      %v6387 = vpop.permute.xlu0 %6386
      %6389 = vset.pattern.permute.xlu0 1
      %6390 = vperm.xlu0 %6389, %v6002
      %v6391 = vpop.permute.xlu0 %6390
      %6393 = vset.pattern.permute.xlu0 1
      %6394 = vperm.xlu0 %6393, %v6003
      %v6395 = vpop.permute.xlu0 %6394
      %6397 = vset.pattern.permute.xlu0 1
      %6398 = vperm.xlu0 %6397, %v6004
      %v6399 = vpop.permute.xlu0 %6398
      %6401 = vset.pattern.permute.xlu0 1
      %6402 = vperm.xlu0 %6401, %v6005
      %v6403 = vpop.permute.xlu0 %6402
      %v6405 = vperm.slane %v6007, 1
      %v6406 = vmul.f32 %v6263, %v6405
      %v6407 = vmul.f32 %v6267, %v6405
      %v6408 = vmul.f32 %v6271, %v6405
      %v6409 = vmul.f32 %v6275, %v6405
      %v6410 = vmul.f32 %v6279, %v6405
      %v6411 = vmul.f32 %v6283, %v6405
      %v6412 = vmul.f32 %v6287, %v6405
      %v6413 = vmul.f32 %v6291, %v6405
      %v6414 = vmul.f32 %v6295, %v6405
      %v6415 = vmul.f32 %v6299, %v6405
      %v6416 = vmul.f32 %v6303, %v6405
      %v6417 = vmul.f32 %v6307, %v6405
      %v6418 = vmul.f32 %v6311, %v6405
      %v6419 = vmul.f32 %v6315, %v6405
      %v6420 = vmul.f32 %v6319, %v6405
      %v6421 = vmul.f32 %v6323, %v6405
      %v6422 = vmul.f32 %v6327, %v6405
      %v6423 = vmul.f32 %v6331, %v6405
      %v6424 = vmul.f32 %v6335, %v6405
      %v6425 = vmul.f32 %v6339, %v6405
      %v6426 = vmul.f32 %v6343, %v6405
      %v6427 = vmul.f32 %v6347, %v6405
      %v6428 = vmul.f32 %v6351, %v6405
      %v6429 = vmul.f32 %v6355, %v6405
      %v6430 = vmul.f32 %v6359, %v6405
      %v6431 = vmul.f32 %v6363, %v6405
      %v6432 = vmul.f32 %v6367, %v6405
      %v6433 = vmul.f32 %v6371, %v6405
      %v6434 = vmul.f32 %v6375, %v6405
      %v6435 = vmul.f32 %v6379, %v6405
      %v6436 = vmul.f32 %v6383, %v6405
      %v6437 = vmul.f32 %v6387, %v6405
      %v6438 = vmul.f32 %v6391, %v6405
      %v6439 = vmul.f32 %v6395, %v6405
      %v6440 = vmul.f32 %v6399, %v6405
      %v6441 = vmul.f32 %v6403, %v6405
      %v6442 = vadd.f32 %v6225, %v6406
      %v6443 = vadd.f32 %v6226, %v6407
      %v6444 = vadd.f32 %v6227, %v6408
      %v6445 = vadd.f32 %v6228, %v6409
      %v6446 = vadd.f32 %v6229, %v6410
      %v6447 = vadd.f32 %v6230, %v6411
      %v6448 = vadd.f32 %v6231, %v6412
      %v6449 = vadd.f32 %v6232, %v6413
      %v6450 = vadd.f32 %v6233, %v6414
      %v6451 = vadd.f32 %v6234, %v6415
      %v6452 = vadd.f32 %v6235, %v6416
      %v6453 = vadd.f32 %v6236, %v6417
      %v6454 = vadd.f32 %v6237, %v6418
      %v6455 = vadd.f32 %v6238, %v6419
      %v6456 = vadd.f32 %v6239, %v6420
      %v6457 = vadd.f32 %v6240, %v6421
      %v6458 = vadd.f32 %v6241, %v6422
      %v6459 = vadd.f32 %v6242, %v6423
      %v6460 = vadd.f32 %v6243, %v6424
      %v6461 = vadd.f32 %v6244, %v6425
      %v6462 = vadd.f32 %v6245, %v6426
      %v6463 = vadd.f32 %v6246, %v6427
      %v6464 = vadd.f32 %v6247, %v6428
      %v6465 = vadd.f32 %v6248, %v6429
      %v6466 = vadd.f32 %v6249, %v6430
      %v6467 = vadd.f32 %v6250, %v6431
      %v6468 = vadd.f32 %v6251, %v6432
      %v6469 = vadd.f32 %v6252, %v6433
      %v6470 = vadd.f32 %v6253, %v6434
      %v6471 = vadd.f32 %v6254, %v6435
      %v6472 = vadd.f32 %v6255, %v6436
      %v6473 = vadd.f32 %v6256, %v6437
      %v6474 = vadd.f32 %v6257, %v6438
      %v6475 = vadd.f32 %v6258, %v6439
      %v6476 = vadd.f32 %v6259, %v6440
      %v6477 = vadd.f32 %v6260, %v6441
      %6478 = vset.pattern.permute.xlu0 2
      %6479 = vperm.xlu0 %6478, %v5970
      %v6480 = vpop.permute.xlu0 %6479
      %6482 = vset.pattern.permute.xlu0 2
      %6483 = vperm.xlu0 %6482, %v5971
      %v6484 = vpop.permute.xlu0 %6483
      %6486 = vset.pattern.permute.xlu0 2
      %6487 = vperm.xlu0 %6486, %v5972
      %v6488 = vpop.permute.xlu0 %6487
      %6490 = vset.pattern.permute.xlu0 2
      %6491 = vperm.xlu0 %6490, %v5973
      %v6492 = vpop.permute.xlu0 %6491
      %6494 = vset.pattern.permute.xlu0 2
      %6495 = vperm.xlu0 %6494, %v5974
      %v6496 = vpop.permute.xlu0 %6495
      %6498 = vset.pattern.permute.xlu0 2
      %6499 = vperm.xlu0 %6498, %v5975
      %v6500 = vpop.permute.xlu0 %6499
      %6502 = vset.pattern.permute.xlu0 2
      %6503 = vperm.xlu0 %6502, %v5976
      %v6504 = vpop.permute.xlu0 %6503
      %6506 = vset.pattern.permute.xlu0 2
      %6507 = vperm.xlu0 %6506, %v5977
      %v6508 = vpop.permute.xlu0 %6507
      %6510 = vset.pattern.permute.xlu0 2
      %6511 = vperm.xlu0 %6510, %v5978
      %v6512 = vpop.permute.xlu0 %6511
      %6514 = vset.pattern.permute.xlu0 2
      %6515 = vperm.xlu0 %6514, %v5979
      %v6516 = vpop.permute.xlu0 %6515
      %6518 = vset.pattern.permute.xlu0 2
      %6519 = vperm.xlu0 %6518, %v5980
      %v6520 = vpop.permute.xlu0 %6519
      %6522 = vset.pattern.permute.xlu0 2
      %6523 = vperm.xlu0 %6522, %v5981
      %v6524 = vpop.permute.xlu0 %6523
      %6526 = vset.pattern.permute.xlu0 2
      %6527 = vperm.xlu0 %6526, %v5982
      %v6528 = vpop.permute.xlu0 %6527
      %6530 = vset.pattern.permute.xlu0 2
      %6531 = vperm.xlu0 %6530, %v5983
      %v6532 = vpop.permute.xlu0 %6531
      %6534 = vset.pattern.permute.xlu0 2
      %6535 = vperm.xlu0 %6534, %v5984
      %v6536 = vpop.permute.xlu0 %6535
      %6538 = vset.pattern.permute.xlu0 2
      %6539 = vperm.xlu0 %6538, %v5985
      %v6540 = vpop.permute.xlu0 %6539
      %6542 = vset.pattern.permute.xlu0 2
      %6543 = vperm.xlu0 %6542, %v5986
      %v6544 = vpop.permute.xlu0 %6543
      %6546 = vset.pattern.permute.xlu0 2
      %6547 = vperm.xlu0 %6546, %v5987
      %v6548 = vpop.permute.xlu0 %6547
      %6550 = vset.pattern.permute.xlu0 2
      %6551 = vperm.xlu0 %6550, %v5988
      %v6552 = vpop.permute.xlu0 %6551
      %6554 = vset.pattern.permute.xlu0 2
      %6555 = vperm.xlu0 %6554, %v5989
      %v6556 = vpop.permute.xlu0 %6555
      %6558 = vset.pattern.permute.xlu0 2
      %6559 = vperm.xlu0 %6558, %v5990
      %v6560 = vpop.permute.xlu0 %6559
      %6562 = vset.pattern.permute.xlu0 2
      %6563 = vperm.xlu0 %6562, %v5991
      %v6564 = vpop.permute.xlu0 %6563
      %6566 = vset.pattern.permute.xlu0 2
      %6567 = vperm.xlu0 %6566, %v5992
      %v6568 = vpop.permute.xlu0 %6567
      %6570 = vset.pattern.permute.xlu0 2
      %6571 = vperm.xlu0 %6570, %v5993
      %v6572 = vpop.permute.xlu0 %6571
      %6574 = vset.pattern.permute.xlu0 2
      %6575 = vperm.xlu0 %6574, %v5994
      %v6576 = vpop.permute.xlu0 %6575
      %6578 = vset.pattern.permute.xlu0 2
      %6579 = vperm.xlu0 %6578, %v5995
      %v6580 = vpop.permute.xlu0 %6579
      %6582 = vset.pattern.permute.xlu0 2
      %6583 = vperm.xlu0 %6582, %v5996
      %v6584 = vpop.permute.xlu0 %6583
      %6586 = vset.pattern.permute.xlu0 2
      %6587 = vperm.xlu0 %6586, %v5997
      %v6588 = vpop.permute.xlu0 %6587
      %6590 = vset.pattern.permute.xlu0 2
      %6591 = vperm.xlu0 %6590, %v5998
      %v6592 = vpop.permute.xlu0 %6591
      %6594 = vset.pattern.permute.xlu0 2
      %6595 = vperm.xlu0 %6594, %v5999
      %v6596 = vpop.permute.xlu0 %6595
      %6598 = vset.pattern.permute.xlu0 2
      %6599 = vperm.xlu0 %6598, %v6000
      %v6600 = vpop.permute.xlu0 %6599
      %6602 = vset.pattern.permute.xlu0 2
      %6603 = vperm.xlu0 %6602, %v6001
      %v6604 = vpop.permute.xlu0 %6603
      %6606 = vset.pattern.permute.xlu0 2
      %6607 = vperm.xlu0 %6606, %v6002
      %v6608 = vpop.permute.xlu0 %6607
      %6610 = vset.pattern.permute.xlu0 2
      %6611 = vperm.xlu0 %6610, %v6003
      %v6612 = vpop.permute.xlu0 %6611
      %6614 = vset.pattern.permute.xlu0 2
      %6615 = vperm.xlu0 %6614, %v6004
      %v6616 = vpop.permute.xlu0 %6615
      %6618 = vset.pattern.permute.xlu0 2
      %6619 = vperm.xlu0 %6618, %v6005
      %v6620 = vpop.permute.xlu0 %6619
      %v6622 = vperm.slane %v6007, 2
      %v6623 = vmul.f32 %v6480, %v6622
      %v6624 = vmul.f32 %v6484, %v6622
      %v6625 = vmul.f32 %v6488, %v6622
      %v6626 = vmul.f32 %v6492, %v6622
      %v6627 = vmul.f32 %v6496, %v6622
      %v6628 = vmul.f32 %v6500, %v6622
      %v6629 = vmul.f32 %v6504, %v6622
      %v6630 = vmul.f32 %v6508, %v6622
      %v6631 = vmul.f32 %v6512, %v6622
      %v6632 = vmul.f32 %v6516, %v6622
      %v6633 = vmul.f32 %v6520, %v6622
      %v6634 = vmul.f32 %v6524, %v6622
      %v6635 = vmul.f32 %v6528, %v6622
      %v6636 = vmul.f32 %v6532, %v6622
      %v6637 = vmul.f32 %v6536, %v6622
      %v6638 = vmul.f32 %v6540, %v6622
      %v6639 = vmul.f32 %v6544, %v6622
      %v6640 = vmul.f32 %v6548, %v6622
      %v6641 = vmul.f32 %v6552, %v6622
      %v6642 = vmul.f32 %v6556, %v6622
      %v6643 = vmul.f32 %v6560, %v6622
      %v6644 = vmul.f32 %v6564, %v6622
      %v6645 = vmul.f32 %v6568, %v6622
      %v6646 = vmul.f32 %v6572, %v6622
      %v6647 = vmul.f32 %v6576, %v6622
      %v6648 = vmul.f32 %v6580, %v6622
      %v6649 = vmul.f32 %v6584, %v6622
      %v6650 = vmul.f32 %v6588, %v6622
      %v6651 = vmul.f32 %v6592, %v6622
      %v6652 = vmul.f32 %v6596, %v6622
      %v6653 = vmul.f32 %v6600, %v6622
      %v6654 = vmul.f32 %v6604, %v6622
      %v6655 = vmul.f32 %v6608, %v6622
      %v6656 = vmul.f32 %v6612, %v6622
      %v6657 = vmul.f32 %v6616, %v6622
      %v6658 = vmul.f32 %v6620, %v6622
      %v6659 = vadd.f32 %v6442, %v6623
      %v6660 = vadd.f32 %v6443, %v6624
      %v6661 = vadd.f32 %v6444, %v6625
      %v6662 = vadd.f32 %v6445, %v6626
      %v6663 = vadd.f32 %v6446, %v6627
      %v6664 = vadd.f32 %v6447, %v6628
      %v6665 = vadd.f32 %v6448, %v6629
      %v6666 = vadd.f32 %v6449, %v6630
      %v6667 = vadd.f32 %v6450, %v6631
      %v6668 = vadd.f32 %v6451, %v6632
      %v6669 = vadd.f32 %v6452, %v6633
      %v6670 = vadd.f32 %v6453, %v6634
      %v6671 = vadd.f32 %v6454, %v6635
      %v6672 = vadd.f32 %v6455, %v6636
      %v6673 = vadd.f32 %v6456, %v6637
      %v6674 = vadd.f32 %v6457, %v6638
      %v6675 = vadd.f32 %v6458, %v6639
      %v6676 = vadd.f32 %v6459, %v6640
      %v6677 = vadd.f32 %v6460, %v6641
      %v6678 = vadd.f32 %v6461, %v6642
      %v6679 = vadd.f32 %v6462, %v6643
      %v6680 = vadd.f32 %v6463, %v6644
      %v6681 = vadd.f32 %v6464, %v6645
      %v6682 = vadd.f32 %v6465, %v6646
      %v6683 = vadd.f32 %v6466, %v6647
      %v6684 = vadd.f32 %v6467, %v6648
      %v6685 = vadd.f32 %v6468, %v6649
      %v6686 = vadd.f32 %v6469, %v6650
      %v6687 = vadd.f32 %v6470, %v6651
      %v6688 = vadd.f32 %v6471, %v6652
      %v6689 = vadd.f32 %v6472, %v6653
      %v6690 = vadd.f32 %v6473, %v6654
      %v6691 = vadd.f32 %v6474, %v6655
      %v6692 = vadd.f32 %v6475, %v6656
      %v6693 = vadd.f32 %v6476, %v6657
      %v6694 = vadd.f32 %v6477, %v6658
      %v6695 = vld [vmem:[%s2] sm:$0x1]
      %v6697 = vperm.slane %v6695, 0
      %v6699 = vadd.f32 %v6659, %v6697
      %v6700 = vadd.f32 %v6660, %v6697
      %v6701 = vadd.f32 %v6661, %v6697
      %v6702 = vadd.f32 %v6662, %v6697
      %v6703 = vadd.f32 %v6663, %v6697
      %v6704 = vadd.f32 %v6664, %v6697
      %v6705 = vadd.f32 %v6665, %v6697
      %v6706 = vadd.f32 %v6666, %v6697
      %v6707 = vadd.f32 %v6667, %v6697
      %v6708 = vadd.f32 %v6668, %v6697
      %v6709 = vadd.f32 %v6669, %v6697
      %v6710 = vadd.f32 %v6670, %v6697
      %v6711 = vadd.f32 %v6671, %v6697
      %v6712 = vadd.f32 %v6672, %v6697
      %v6713 = vadd.f32 %v6673, %v6697
      %v6714 = vadd.f32 %v6674, %v6697
      %v6715 = vadd.f32 %v6675, %v6697
      %v6716 = vadd.f32 %v6676, %v6697
      %v6717 = vadd.f32 %v6677, %v6697
      %v6718 = vadd.f32 %v6678, %v6697
      %v6719 = vadd.f32 %v6679, %v6697
      %v6720 = vadd.f32 %v6680, %v6697
      %v6721 = vadd.f32 %v6681, %v6697
      %v6722 = vadd.f32 %v6682, %v6697
      %v6723 = vadd.f32 %v6683, %v6697
      %v6724 = vadd.f32 %v6684, %v6697
      %v6725 = vadd.f32 %v6685, %v6697
      %v6726 = vadd.f32 %v6686, %v6697
      %v6727 = vadd.f32 %v6687, %v6697
      %v6728 = vadd.f32 %v6688, %v6697
      %v6729 = vadd.f32 %v6689, %v6697
      %v6730 = vadd.f32 %v6690, %v6697
      %v6731 = vadd.f32 %v6691, %v6697
      %v6732 = vadd.f32 %v6692, %v6697
      %v6733 = vadd.f32 %v6693, %v6697
      %v6734 = vadd.f32 %v6694, %v6697
      %vm6735 = vcmp.ge.f32.partialorder %v6699, 0.0
      %vm6736 = vcmp.ge.f32.partialorder %v6700, 0.0
      %vm6737 = vcmp.ge.f32.partialorder %v6701, 0.0
      %vm6738 = vcmp.ge.f32.partialorder %v6702, 0.0
      %vm6739 = vcmp.ge.f32.partialorder %v6703, 0.0
      %vm6740 = vcmp.ge.f32.partialorder %v6704, 0.0
      %vm6741 = vcmp.ge.f32.partialorder %v6705, 0.0
      %vm6742 = vcmp.ge.f32.partialorder %v6706, 0.0
      %vm6743 = vcmp.ge.f32.partialorder %v6707, 0.0
      %vm6744 = vcmp.ge.f32.partialorder %v6708, 0.0
      %vm6745 = vcmp.ge.f32.partialorder %v6709, 0.0
      %vm6746 = vcmp.ge.f32.partialorder %v6710, 0.0
      %vm6747 = vcmp.ge.f32.partialorder %v6711, 0.0
      %vm6748 = vcmp.ge.f32.partialorder %v6712, 0.0
      %vm6749 = vcmp.ge.f32.partialorder %v6713, 0.0
      %vm6750 = vcmp.ge.f32.partialorder %v6714, 0.0
      %vm6751 = vcmp.ge.f32.partialorder %v6715, 0.0
      %vm6752 = vcmp.ge.f32.partialorder %v6716, 0.0
      %vm6753 = vcmp.ge.f32.partialorder %v6717, 0.0
      %vm6754 = vcmp.ge.f32.partialorder %v6718, 0.0
      %vm6755 = vcmp.ge.f32.partialorder %v6719, 0.0
      %vm6756 = vcmp.ge.f32.partialorder %v6720, 0.0
      %vm6757 = vcmp.ge.f32.partialorder %v6721, 0.0
      %vm6758 = vcmp.ge.f32.partialorder %v6722, 0.0
      %vm6759 = vcmp.ge.f32.partialorder %v6723, 0.0
      %vm6760 = vcmp.ge.f32.partialorder %v6724, 0.0
      %vm6761 = vcmp.ge.f32.partialorder %v6725, 0.0
      %vm6762 = vcmp.ge.f32.partialorder %v6726, 0.0
      %vm6763 = vcmp.ge.f32.partialorder %v6727, 0.0
      %vm6764 = vcmp.ge.f32.partialorder %v6728, 0.0
      %vm6765 = vcmp.ge.f32.partialorder %v6729, 0.0
      %vm6766 = vcmp.ge.f32.partialorder %v6730, 0.0
      %vm6767 = vcmp.ge.f32.partialorder %v6731, 0.0
      %vm6768 = vcmp.ge.f32.partialorder %v6732, 0.0
      %vm6769 = vcmp.ge.f32.partialorder %v6733, 0.0
      %vm6770 = vcmp.ge.f32.partialorder %v6734, 0.0
      %v6771 = vmul.f32 %v6699, 0.01
      %v6772 = vmul.f32 %v6700, 0.01
      %v6773 = vmul.f32 %v6701, 0.01
      %v6774 = vmul.f32 %v6702, 0.01
      %v6775 = vmul.f32 %v6703, 0.01
      %v6776 = vmul.f32 %v6704, 0.01
      %v6777 = vmul.f32 %v6705, 0.01
      %v6778 = vmul.f32 %v6706, 0.01
      %v6779 = vmul.f32 %v6707, 0.01
      %v6780 = vmul.f32 %v6708, 0.01
      %v6781 = vmul.f32 %v6709, 0.01
      %v6782 = vmul.f32 %v6710, 0.01
      %v6783 = vmul.f32 %v6711, 0.01
      %v6784 = vmul.f32 %v6712, 0.01
      %v6785 = vmul.f32 %v6713, 0.01
      %v6786 = vmul.f32 %v6714, 0.01
      %v6787 = vmul.f32 %v6715, 0.01
      %v6788 = vmul.f32 %v6716, 0.01
      %v6789 = vmul.f32 %v6717, 0.01
      %v6790 = vmul.f32 %v6718, 0.01
      %v6791 = vmul.f32 %v6719, 0.01
      %v6792 = vmul.f32 %v6720, 0.01
      %v6793 = vmul.f32 %v6721, 0.01
      %v6794 = vmul.f32 %v6722, 0.01
      %v6795 = vmul.f32 %v6723, 0.01
      %v6796 = vmul.f32 %v6724, 0.01
      %v6797 = vmul.f32 %v6725, 0.01
      %v6798 = vmul.f32 %v6726, 0.01
      %v6799 = vmul.f32 %v6727, 0.01
      %v6800 = vmul.f32 %v6728, 0.01
      %v6801 = vmul.f32 %v6729, 0.01
      %v6802 = vmul.f32 %v6730, 0.01
      %v6803 = vmul.f32 %v6731, 0.01
      %v6804 = vmul.f32 %v6732, 0.01
      %v6805 = vmul.f32 %v6733, 0.01
      %v6806 = vmul.f32 %v6734, 0.01
      %v6807 = vsel %vm6735, %v6699, %v6771
      %v6808 = vsel %vm6736, %v6700, %v6772
      %v6809 = vsel %vm6737, %v6701, %v6773
      %v6810 = vsel %vm6738, %v6702, %v6774
      %v6811 = vsel %vm6739, %v6703, %v6775
      %v6812 = vsel %vm6740, %v6704, %v6776
      %v6813 = vsel %vm6741, %v6705, %v6777
      %v6814 = vsel %vm6742, %v6706, %v6778
      %v6815 = vsel %vm6743, %v6707, %v6779
      %v6816 = vsel %vm6744, %v6708, %v6780
      %v6817 = vsel %vm6745, %v6709, %v6781
      %v6818 = vsel %vm6746, %v6710, %v6782
      %v6819 = vsel %vm6747, %v6711, %v6783
      %v6820 = vsel %vm6748, %v6712, %v6784
      %v6821 = vsel %vm6749, %v6713, %v6785
      %v6822 = vsel %vm6750, %v6714, %v6786
      %v6823 = vsel %vm6751, %v6715, %v6787
      %v6824 = vsel %vm6752, %v6716, %v6788
      %v6825 = vsel %vm6753, %v6717, %v6789
      %v6826 = vsel %vm6754, %v6718, %v6790
      %v6827 = vsel %vm6755, %v6719, %v6791
      %v6828 = vsel %vm6756, %v6720, %v6792
      %v6829 = vsel %vm6757, %v6721, %v6793
      %v6830 = vsel %vm6758, %v6722, %v6794
      %v6831 = vsel %vm6759, %v6723, %v6795
      %v6832 = vsel %vm6760, %v6724, %v6796
      %v6833 = vsel %vm6761, %v6725, %v6797
      %v6834 = vsel %vm6762, %v6726, %v6798
      %v6835 = vsel %vm6763, %v6727, %v6799
      %v6836 = vsel %vm6764, %v6728, %v6800
      %v6837 = vsel %vm6765, %v6729, %v6801
      %v6838 = vsel %vm6766, %v6730, %v6802
      %v6839 = vsel %vm6767, %v6731, %v6803
      %v6840 = vsel %vm6768, %v6732, %v6804
      %v6841 = vsel %vm6769, %v6733, %v6805
      %v6842 = vsel %vm6770, %v6734, %v6806
      %vm6843 = vcmask 523264
      %6844 = vst.msk [vmem:[%s170] sm:$0xff] %vm6843, %v6807
      %6845 = vst.msk [vmem:[%s170 + $0x8] sm:$0xff] %vm6843, %v6808
      %s6846 = scalar_lea.vmem %s170, 16
      %vm6847 = vcmask 523266
      %6848 = vst.msk [vmem:[%s6846 - $0x2] sm:$0xfc] %vm6847, %v6809
      %6849 = vst.msk [vmem:[%s6846 + $0x6] sm:$0xff] %vm6843, %v6810
      %vm6850 = vcmask 517120
      %6851 = vst.msk [vmem:[%s6846 + $0xe] sm:$0x3] %vm6850, %v6811
      %s6852 = scalar_lea.vmem %s170, 32
      %vm6853 = vcmask 523268
      %6854 = vst.msk [vmem:[%s6852 - $0x4] sm:$0xf0] %vm6853, %v6811
      %6855 = vst.msk [vmem:[%s6852 + $0x4] sm:$0xff] %vm6843, %v6812
      %vm6856 = vcmask 519168
      %6857 = vst.msk [vmem:[%s6852 + $0xc] sm:$0xf] %vm6856, %v6813
      %s6858 = scalar_lea.vmem %s170, 48
      %vm6859 = vcmask 523270
      %6860 = vst.msk [vmem:[%s6858 - $0x6] sm:$0xc0] %vm6859, %v6813
      %6861 = vst.msk [vmem:[%s6858 + $0x2] sm:$0xff] %vm6843, %v6814
      %vm6862 = vcmask 521216
      %6863 = vst.msk [vmem:[%s6858 + $0xa] sm:$0x3f] %vm6862, %v6815
      %s6864 = scalar_lea.vmem %s170, 64
      %6865 = vst.msk [vmem:[%s6864] sm:$0xff] %vm6843, %v6816
      %6866 = vst.msk [vmem:[%s6864 + $0x8] sm:$0xff] %vm6843, %v6817
      %s6867 = scalar_lea.vmem %s170, 80
      %6868 = vst.msk [vmem:[%s6867 - $0x2] sm:$0xfc] %vm6847, %v6818
      %6869 = vst.msk [vmem:[%s6867 + $0x6] sm:$0xff] %vm6843, %v6819
      %6870 = vst.msk [vmem:[%s6867 + $0xe] sm:$0x3] %vm6850, %v6820
      %s6871 = scalar_lea.vmem %s170, 96
      %6872 = vst.msk [vmem:[%s6871 - $0x4] sm:$0xf0] %vm6853, %v6820
      %6873 = vst.msk [vmem:[%s6871 + $0x4] sm:$0xff] %vm6843, %v6821
      %6874 = vst.msk [vmem:[%s6871 + $0xc] sm:$0xf] %vm6856, %v6822
      %s6875 = scalar_lea.vmem %s170, 112
      %6876 = vst.msk [vmem:[%s6875 - $0x6] sm:$0xc0] %vm6859, %v6822
      %6877 = vst.msk [vmem:[%s6875 + $0x2] sm:$0xff] %vm6843, %v6823
      %6878 = vst.msk [vmem:[%s6875 + $0xa] sm:$0x3f] %vm6862, %v6824
      %s6879 = scalar_lea.vmem %s170, 128
      %6880 = vst.msk [vmem:[%s6879] sm:$0xff] %vm6843, %v6825
      %6881 = vst.msk [vmem:[%s6879 + $0x8] sm:$0xff] %vm6843, %v6826
      %s6882 = scalar_lea.vmem %s170, 144
      %6883 = vst.msk [vmem:[%s6882 - $0x2] sm:$0xfc] %vm6847, %v6827
      %6884 = vst.msk [vmem:[%s6882 + $0x6] sm:$0xff] %vm6843, %v6828
      %6885 = vst.msk [vmem:[%s6882 + $0xe] sm:$0x3] %vm6850, %v6829
      %s6886 = scalar_lea.vmem %s170, 160
      %6887 = vst.msk [vmem:[%s6886 - $0x4] sm:$0xf0] %vm6853, %v6829
      %6888 = vst.msk [vmem:[%s6886 + $0x4] sm:$0xff] %vm6843, %v6830
      %6889 = vst.msk [vmem:[%s6886 + $0xc] sm:$0xf] %vm6856, %v6831
      %s6890 = scalar_lea.vmem %s170, 176
      %6891 = vst.msk [vmem:[%s6890 - $0x6] sm:$0xc0] %vm6859, %v6831
      %6892 = vst.msk [vmem:[%s6890 + $0x2] sm:$0xff] %vm6843, %v6832
      %6893 = vst.msk [vmem:[%s6890 + $0xa] sm:$0x3f] %vm6862, %v6833
      %s6894 = scalar_lea.vmem %s170, 192
      %6895 = vst.msk [vmem:[%s6894] sm:$0xff] %vm6843, %v6834
      %6896 = vst.msk [vmem:[%s6894 + $0x8] sm:$0xff] %vm6843, %v6835
      %s6897 = scalar_lea.vmem %s170, 208
      %6898 = vst.msk [vmem:[%s6897 - $0x2] sm:$0xfc] %vm6847, %v6836
      %6899 = vst.msk [vmem:[%s6897 + $0x6] sm:$0xff] %vm6843, %v6837
      %6900 = vst.msk [vmem:[%s6897 + $0xe] sm:$0x3] %vm6850, %v6838
      %s6901 = scalar_lea.vmem %s170, 224
      %6902 = vst.msk [vmem:[%s6901 - $0x4] sm:$0xf0] %vm6853, %v6838
      %6903 = vst.msk [vmem:[%s6901 + $0x4] sm:$0xff] %vm6843, %v6839
      %6904 = vst.msk [vmem:[%s6901 + $0xc] sm:$0xf] %vm6856, %v6840
      %s6905 = scalar_lea.vmem %s170, 240
      %6906 = vst.msk [vmem:[%s6905 - $0x6] sm:$0xc0] %vm6859, %v6840
      %6907 = vst.msk [vmem:[%s6905 + $0x2] sm:$0xff] %vm6843, %v6841
      %6908 = vst.msk [vmem:[%s6905 + $0xa] sm:$0x3f] %vm6862, %v6842
      %p6909 = scmp.lt.s32.totalorder %s14, 1
      %s6910 = scalar_select %p6909, %s14, 1
      %s6911 = smul.addr %s6910, 32
      %s6912 = smul.addr %s6911, 8
      %s6913 = scalar_lea.vmem %s3, %s6912
      // Predicated region
      $region33: #{inputproj_forward.1} parent=31 // pred_check
        %p6914 = pneg %p100
      $region34: #{inputproj_forward.1} parent=31 // pred_check_branch
        %6916 = sbr.rel (%p6914) target = $region36
      $region35: #{inputproj_forward.1} parent=31 // pred_region
        _
      $region36: #{inputproj_forward.1} parent=31 // pred_fallthru
        _
    $region32: #{inputproj_forward.1} parent=5 // pred_fallthru
      _
    %p6917 = scmp.le.s32.totalorder 2, %s9
    // Predicated region
    $region37: #{inputproj_forward.1} parent=5 // pred_check
      %p6918 = pneg %p6917
    $region38: #{inputproj_forward.1} parent=5 // pred_check_branch
      %6920 = sbr.rel (%p6918) target = $region40
    $region39: #{inputproj_forward.1} parent=5 // pred_region
      %s6921 = ssub.s32 %s9, 2
      // Predicated region
      $region41: #{inputproj_forward.1} parent=39 // pred_check
        %p6922 = pneg %p106
      $region42: #{inputproj_forward.1} parent=39 // pred_check_branch
        %6924 = sbr.rel (%p6922) target = $region44
      $region43: #{inputproj_forward.1} parent=39 // pred_region
        %p6925 = scmp.lt.s32.totalorder %s15, 1
        %s6926 = scalar_select %p6925, %s15, 1
        %s6927 = smul.addr %s6926, 32
        %s6928 = smul.addr %s6927, 8
        %s6929 = scalar_lea.vmem %s3, %s6928
      $region44: #{inputproj_forward.1} parent=39 // pred_fallthru
        _
    $region40: #{inputproj_forward.1} parent=5 // pred_fallthru
      _
  $region6: #{inputproj_forward.1} parent=0 // loop_footer
    %s13 = sadd.s32 1, %s9
  $region7: #{inputproj_forward.1} parent=0 // loop_footer_branch
    %8 = sbr.rel target = $region3
  $region8: #{inputproj_forward.1} parent=0 // loop_exit
    _

</llo_original>
